<compile_context>
chip_gen: v7x
topology: tpu7x:2x2x1
jax: 0.10.0
libtpu: 0.0.40
codegen_flags: <defaults>
</compile_context>

<pallas_src>
import jax
import jax.numpy as jnp
from jax.experimental import pallas as pl
from jax.experimental.pallas import tpu as pltpu

LN_EPS = 1e-5


# ----------------------------- fused encoder kernel -----------------------------
def make_encoder_kernel(num_heads):
    def kernel(x_ref, wqkv_ref, wo_ref, w1_ref, w2_ref, small_ref, o_ref):
        layer = pl.program_id(1)
        Bb, S, E = x_ref.shape
        F = w1_ref.shape[-1]
        H = num_heads
        dh = E // H
        N = Bb * S
        cdt = wqkv_ref.dtype                      # matmul operand dtype (f32 or bf16)

        # Load the activation from HBM only at the first layer of this batch block;
        # afterwards it stays resident in the (constant-block-index) output buffer.
        @pl.when(layer == 0)
        def _():
            o_ref[...] = x_ref[...]

        x = o_ref[...].reshape(N, E)              # running activation, f32
        xm = x.astype(cdt)

        # --- per-layer small params: one packed (8, W) f32 tile ---
        sp = small_ref[0]
        bqkv  = sp[0:1, :3 * E]                   # scale pre-folded into the Q third
        bo    = sp[1:2, :E]
        b1    = sp[2:3, :F]
        b2    = sp[3:4, :E]
        ln1_w = sp[4:5, :E]
        ln1_b = sp[5:6, :E]
        ln2_w = sp[6:7, :E]
        ln2_b = sp[7:8, :E]

        # --- fused QKV projection: one full-width (N,E)@(E,3E) MXU matmul ---
        qkv = jnp.dot(xm, wqkv_ref[0], preferred_element_type=jnp.float32) + bqkv

        def to_heads(t):                          # (N, E) -> (H*Bb, S, dh)
            t = t.reshape(N, H, dh)               # split the lane dim into (head, dh)
            t = jnp.transpose(t, (1, 0, 2))       # "nhd -> hnd" (lane dim untouched)
            return t.reshape(H * Bb, S, dh)       # major-dim reshape (free)

        q = to_heads(qkv[:, 0:E])
        k = to_heads(qkv[:, E:2 * E])
        v = to_heads(qkv[:, 2 * E:3 * E])

        # --- attention: single batched einsums over the merged (head, batch) axis ---
        s = jnp.einsum('bqd,bkd->bqk', q.astype(cdt), k.astype(cdt),
                       preferred_element_type=jnp.float32)          # (H*Bb, S, S)
        s = s - jnp.max(s, axis=-1, keepdims=True)                  # stable softmax
        p = jnp.exp(s)
        denom = jnp.sum(p, axis=-1, keepdims=True)
        r = pl.reciprocal(denom, approx=True)                       # EUP slot
        r = r * (2.0 - denom * r)                                   # one Newton step -> f32 accuracy
        p = p * r
        ctx = jnp.einsum('bqk,bkd->bqd', p.astype(cdt), v.astype(cdt),
                         preferred_element_type=jnp.float32)        # (H*Bb, S, dh)

        # undo the head-major layout, fold heads back into the lane dim
        ctx = jnp.transpose(ctx.reshape(H, N, dh), (1, 0, 2)).reshape(N, E)

        # --- out-projection: one full-width (N,E)@(E,E) matmul ---
        attn = jnp.dot(ctx.astype(cdt), wo_ref[0],
                       preferred_element_type=jnp.float32) + bo

        # --- residual + LayerNorm 1 (dropout omitted: eval semantics) ---
        y = x + attn
        mu = jnp.mean(y, axis=-1, keepdims=True)
        var = jnp.mean((y - mu) ** 2, axis=-1, keepdims=True)
        y = (y - mu) * jax.lax.rsqrt(var + LN_EPS) * ln1_w + ln1_b

        # --- feed-forward (ReLU), full-width matmuls ---
        # TODO(synk): for production E/F that overflow VMEM, tile the FFN over F chunks.
        h1 = jnp.dot(y.astype(cdt), w1_ref[0], preferred_element_type=jnp.float32) + b1
        h1 = jnp.maximum(h1, 0.0)
        h2 = jnp.dot(h1.astype(cdt), w2_ref[0], preferred_element_type=jnp.float32) + b2

        # --- residual + LayerNorm 2 ---
        z = y + h2
        mu2 = jnp.mean(z, axis=-1, keepdims=True)
        var2 = jnp.mean((z - mu2) ** 2, axis=-1, keepdims=True)
        z = (z - mu2) * jax.lax.rsqrt(var2 + LN_EPS) * ln2_w + ln2_b

        # Keep the activation resident for the next layer; Pallas writes the block back
        # to HBM only when the batch-block index changes / at the end of the grid.
        o_ref[...] = z.reshape(Bb, S, E)
    return kernel


# ----------------------------- wrapper / pallas_call -----------------------------
def _padded_tile_bytes(shape, dtype):
    """VMEM footprint of one block after (sublane, lane) tile padding."""
    itemsize = jnp.dtype(dtype).itemsize
    sub = {4: 8, 2: 16, 1: 32}.get(itemsize, 8)
    dims = list(shape)
    if dims:
        dims[-1] = pl.cdiv(dims[-1], 128) * 128
    if len(dims) >= 2:
        dims[-2] = pl.cdiv(dims[-2], sub) * sub
    n = 1
    for d in dims:
        n *= d
    return n * itemsize


def _derive_vmem_limit(Bb, S, E, F, kparams):
    weights = (kparams["wqkv"], kparams["wo"], kparams["w1"], kparams["w2"], kparams["small"])
    wbytes = sum(_padded_tile_bytes(a.shape[1:], a.dtype) for a in weights)
    abytes = _padded_tile_bytes((Bb, S, E), jnp.float32)
    N = Bb * S
    ibytes = (_padded_tile_bytes((N, 3 * E), jnp.float32)
              + _padded_tile_bytes((N, F), jnp.float32)
              + 4 * _padded_tile_bytes((N, E), jnp.float32))
    est = 2 * wbytes + 3 * abytes + ibytes      # double-buffered weights + in/out blocks + temps
    # generous slack, but stay well under v7x's 64 MiB-per-TensorCore physical VMEM
    return int(min(max(2 * est, 8 << 20), 48 << 20))


def transformer_encoder_pallas(x, kparams, num_heads, *, num_batch_blocks=None,
                               vmem_limit_bytes=None):
    """x: (B, S, E) float32 -> (B, S, E) float32, all encoder layers in one pallas_call."""
    B, S, E = x.shape
    L, _, threeE = kparams["wqkv"].shape
    F = kparams["w1"].shape[-1]
    W = kparams["small"].shape[-1]
    assert threeE == 3 * E and E % num_heads == 0

    if num_batch_blocks is None:
        # Single block on 1-TC chips / small problems so the matmul M dim (Bb*S) stays big;
        # split in two only when each half still has >= 256 rows (feeds v7x's 2nd core).
        num_batch_blocks = 2 if (B % 2 == 0 and (B // 2) * S >= 256) else 1
    assert B % num_batch_blocks == 0
    Bb = B // num_batch_blocks

    if vmem_limit_bytes is None:
        vmem_limit_bytes = _derive_vmem_limit(Bb, S, E, F, kparams)

    xo_spec = pl.BlockSpec((Bb, S, E), lambda b, l: (b, 0, 0))
    layer_spec = lambda shape: pl.BlockSpec((1,) + shape, lambda b, l: (l, 0, 0))

    return pl.pallas_call(
        make_encoder_kernel(num_heads),
        out_shape=jax.ShapeDtypeStruct((B, S, E), jnp.float32),
        grid=(num_batch_blocks, L),
        in_specs=[
            xo_spec,
            layer_spec((E, 3 * E)),   # fused QKV weight (lane-dense, packed)
            layer_spec((E, E)),       # out-projection weight
            layer_spec((E, F)),       # FFN weight 1
            layer_spec((F, E)),       # FFN weight 2
            layer_spec((8, W)),       # packed small params (biases + LN affines)
        ],
        out_specs=xo_spec,
        compiler_params=pltpu.CompilerParams(
            # Layer axis must stay "arbitrary": the output block (the running activation)
            # is revisited/read across it.
            dimension_semantics=("parallel", "arbitrary"),
            vmem_limit_bytes=vmem_limit_bytes),
    )(x, kparams["wqkv"], kparams["wo"], kparams["w1"], kparams["w2"], kparams["small"])


def prepare_kernel_params(params, num_heads, compute_dtype=jnp.float32):
    """One-time wrapper-side prep: fuse QKV, fold 1/sqrt(dh) into the Q weights/bias,
    pack the small per-layer params into one (8, W) tile per layer, stack everything
    along a leading layer axis.  Weights are cast to `compute_dtype` (bf16 halves weight
    DMA + VMEM; accumulation stays f32 in the kernel)."""
    layers = params["layers"]
    E = layers[0]["wq_t"].shape[0]
    F = layers[0]["w1_t"].shape[1]
    dh = E // num_heads
    scale = 1.0 / jnp.sqrt(jnp.float32(dh))
    W = max(3 * E, F)

    def row(v):
        v = v.reshape(1, -1)
        return jnp.pad(v, ((0, 0), (0, W - v.shape[1])))

    wqkv, wo, w1, w2, small = [], [], [], [], []
    for lp in layers:
        wqkv.append(jnp.concatenate([lp["wq_t"] * scale, lp["wk_t"], lp["wv_t"]], axis=1))
        wo.append(lp["wo_t"])
        w1.append(lp["w1_t"])
        w2.append(lp["w2_t"])
        bqkv = jnp.concatenate([lp["bq"] * scale, lp["bk"], lp["bv"]], axis=1)
        small.append(jnp.concatenate([
            row(bqkv), row(lp["bo"]), row(lp["b1"]), row(lp["b2"]),
            row(lp["ln1_w"]), row(lp["ln1_b"]), row(lp["ln2_w"]), row(lp["ln2_b"]),
        ], axis=0))

    return {
        "wqkv":  jnp.stack(wqkv).astype(compute_dtype),   # (L, E, 3E)
        "wo":    jnp.stack(wo).astype(compute_dtype),     # (L, E, E)
        "w1":    jnp.stack(w1).astype(compute_dtype),     # (L, E, F)
        "w2":    jnp.stack(w2).astype(compute_dtype),     # (L, F, E)
        "small": jnp.stack(small).astype(jnp.float32),    # (L, 8, max(3E,F))
    }


def transformer_forward(tokens, attention_mask, token_type_ids, params, num_heads,
                        matmul_dtype=jnp.float32):
    """Mirrors TransformerModel.forward. tokens/mask/ids: (S, B) int32 -> (S, B, E)."""
    # NOTE: like the PyTorch module, attention_mask only mutates the embedding indices;
    # it is NOT applied as a key-padding mask inside attention.
    idx = tokens * attention_mask + token_type_ids
    src = jnp.take(params["embedding"], idx, axis=0)        # (S, B, E) gather (plain JAX glue)
    x = jnp.transpose(src, (1, 0, 2))                       # (B, S, E) for the kernel
    kp = prepare_kernel_params(params, num_heads, compute_dtype=matmul_dtype)
    y = transformer_encoder_pallas(x, kp, num_heads)
    return jnp.transpose(y, (1, 0, 2))                      # back to (S, B, E)


# ------------------------------- pure-JAX reference -------------------------------
def encoder_layer_ref(x, p, num_heads):
    B, S, E = x.shape
    dh = E // num_heads
    scale = 1.0 / jnp.sqrt(jnp.float32(dh))
    q = x @ p["wq_t"] + p["bq"]
    k = x @ p["wk_t"] + p["bk"]
    v = x @ p["wv_t"] + p["bv"]
    qh = q.reshape(B, S, num_heads, dh).transpose(0, 2, 1, 3)
    kh = k.reshape(B, S, num_heads, dh).transpose(0, 2, 1, 3)
    vh = v.reshape(B, S, num_heads, dh).transpose(0, 2, 1, 3)
    s = jnp.einsum("bhqd,bhkd->bhqk", qh, kh) * scale
    p_attn = jax.nn.softmax(s, axis=-1)
    ctx = jnp.einsum("bhqk,bhkd->bhqd", p_attn, vh)
    ctx = ctx.transpose(0, 2, 1, 3).reshape(B, S, E)
    attn = ctx @ p["wo_t"] + p["bo"]

    def ln(t, w, b):
        mu = jnp.mean(t, axis=-1, keepdims=True)
        var = jnp.mean((t - mu) ** 2, axis=-1, keepdims=True)
        return (t - mu) * jax.lax.rsqrt(var + LN_EPS) * w + b

    y = ln(x + attn, p["ln1_w"], p["ln1_b"])
    ff = jnp.maximum(y @ p["w1_t"] + p["b1"], 0.0) @ p["w2_t"] + p["b2"]
    return ln(y + ff, p["ln2_w"], p["ln2_b"])


def transformer_forward_ref(tokens, attention_mask, token_type_ids, params, num_heads):
    idx = tokens * attention_mask + token_type_ids
    src = jnp.take(params["embedding"], idx, axis=0)
    x = jnp.transpose(src, (1, 0, 2))
    for lp in params["layers"]:
        x = encoder_layer_ref(x, lp, num_heads)
    return jnp.transpose(x, (1, 0, 2))


# ------------------------------- deterministic init -------------------------------
def init_params(key, vocab_size, emb_size, hidden_dim, num_layers):
    keys = jax.random.split(key, 1 + num_layers)
    E, F = emb_size, hidden_dim
    params = {"embedding": 0.1 * jax.random.normal(keys[0], (vocab_size, E), jnp.float32),
              "layers": []}
    for l in range(num_layers):
        ks = jax.random.split(keys[1 + l], 12)
        n = lambda k, shape, s: (s * jax.random.normal(k, shape, jnp.float32))
        # PyTorch Linear stores W as (out, in); we pre-transpose so the math is x @ W_t.
        wq, wk, wv = n(ks[0], (E, E), 0.05), n(ks[1], (E, E), 0.05), n(ks[2], (E, E), 0.05)
        wo = n(ks[3], (E, E), 0.05)
        w1 = n(ks[4], (F, E), 0.05)
        w2 = n(ks[5], (E, F), 0.05)
        layer = dict(
            wq_t=wq.T, wk_t=wk.T, wv_t=wv.T,
            bq=n(ks[6], (1, E), 0.01), bk=n(ks[7], (1, E), 0.01), bv=n(ks[8], (1, E), 0.01),
            wo_t=wo.T, bo=n(ks[9], (1, E), 0.01),
            ln1_w=jnp.ones((1, E), jnp.float32), ln1_b=jnp.zeros((1, E), jnp.float32),
            w1_t=w1.T, b1=n(ks[10], (1, F), 0.01),
            w2_t=w2.T, b2=n(ks[11], (1, E), 0.01),
            ln2_w=jnp.ones((1, E), jnp.float32), ln2_b=jnp.zeros((1, E), jnp.float32),
        )
        params["layers"].append(layer)
    return params


if __name__ == "__main__":
    vocab_size, emb_size, num_heads, hidden_dim, num_layers = 100, 64, 4, 128, 2
    seq_len, batch = 16, 2

    key = jax.random.PRNGKey(0)
    k_params, k_tok, k_mask, k_type = jax.random.split(key, 4)
    params = init_params(k_params, vocab_size, emb_size, hidden_dim, num_layers)

    tokens = jax.random.randint(k_tok, (seq_len, batch), 0, vocab_size - 1, dtype=jnp.int32)
    attention_mask = (jax.random.uniform(k_mask, (seq_len, batch)) > 0.2).astype(jnp.int32)
    token_type_ids = jax.random.randint(k_type, (seq_len, batch), 0, 2, dtype=jnp.int32)

    # f32 matmul path: strict numeric check against the pure-JAX reference.
    out = jax.block_until_ready(
        transformer_forward(tokens, attention_mask, token_type_ids, params, num_heads))
    ref = transformer_forward_ref(tokens, attention_mask, token_type_ids, params, num_heads)
    assert out.shape == (seq_len, batch, emb_size)
    assert jnp.allclose(out, ref, atol=2e-3, rtol=2e-3), "Pallas output mismatch vs JAX reference"

    # bf16 matmul-operand path (production perf mode): compiles/runs + loose sanity check.
    out_bf16 = jax.block_until_ready(
        transformer_forward(tokens, attention_mask, token_type_ids, params, num_heads,
                            matmul_dtype=jnp.bfloat16))
    assert out_bf16.shape == (seq_len, batch, emb_size)
    assert bool(jnp.all(jnp.isfinite(out_bf16)))
    assert float(jnp.max(jnp.abs(out_bf16 - ref))) < 0.25  # bf16 operands, f32 accumulation

    print("KERNEL_OK")
</pallas_src>

<mosaic_0001>
module attributes {stable_mosaic.version = 11 : i64} {
  func.func @kernel(%arg0: i32, %arg1: i32, %arg2: memref<2x16x64xf32, #tpu.memory_space<vmem>>, %arg3: memref<1x64x192xf32, #tpu.memory_space<vmem>>, %arg4: memref<1x64x64xf32, #tpu.memory_space<vmem>>, %arg5: memref<1x64x128xf32, #tpu.memory_space<vmem>>, %arg6: memref<1x128x64xf32, #tpu.memory_space<vmem>>, %arg7: memref<1x8x192xf32, #tpu.memory_space<vmem>>, %arg8: memref<2x16x64xf32, #tpu.memory_space<vmem>>) attributes {dimension_semantics = [#tpu.dimension_semantics<parallel>, #tpu.dimension_semantics<arbitrary>], iteration_bounds = array<i64: 1, 2>, scalar_prefetch = 0 : i64, scratch_operands = 0 : i64, tpu.core_type = #tpu.core_type<tc>, window_params = [{transform_indices = @transform_0, window_bounds = array<i64: 2, 16, 64>}, {transform_indices = @transform_1, window_bounds = array<i64: 1, 64, 192>}, {transform_indices = @transform_2, window_bounds = array<i64: 1, 64, 64>}, {transform_indices = @transform_3, window_bounds = array<i64: 1, 64, 128>}, {transform_indices = @transform_4, window_bounds = array<i64: 1, 128, 64>}, {transform_indices = @transform_5, window_bounds = array<i64: 1, 8, 192>}, {transform_indices = @transform_6, window_bounds = array<i64: 2, 16, 64>}]} {
    %c0_i32 = arith.constant 0 : i32
    %0 = arith.cmpi eq, %arg1, %c0_i32 : i32
    %1 = arith.extui %0 : i1 to i32
    %c0_i32_0 = arith.constant 0 : i32
    %2 = arith.cmpi ne, %1, %c0_i32_0 : i32
    scf.if %2 {
      %c0_40 = arith.constant 0 : index
      %c0_41 = arith.constant 0 : index
      %c0_42 = arith.constant 0 : index
      %116 = vector.load %arg2[%c0_40, %c0_41, %c0_42] : memref<2x16x64xf32, #tpu.memory_space<vmem>>, vector<2x16x64xf32>
      %c0_43 = arith.constant 0 : index
      %c0_44 = arith.constant 0 : index
      %c0_45 = arith.constant 0 : index
      %117 = vector.load %arg8[%c0_43, %c0_44, %c0_45] : memref<2x16x64xf32, #tpu.memory_space<vmem>>, vector<2x16x64xf32>
      tpu.vector_store %arg8[%c0_43, %c0_44, %c0_45], %116 {strides = array<i32>} : memref<2x16x64xf32, #tpu.memory_space<vmem>>, vector<2x16x64xf32>,
    } else {
    }
    %c0 = arith.constant 0 : index
    %c0_1 = arith.constant 0 : index
    %c0_2 = arith.constant 0 : index
    %3 = vector.load %arg8[%c0, %c0_1, %c0_2] : memref<2x16x64xf32, #tpu.memory_space<vmem>>, vector<2x16x64xf32>
    %4 = vector.shape_cast %3 : vector<2x16x64xf32> to vector<32x64xf32>
    %c0_3 = arith.constant 0 : index
    %c0_4 = arith.constant 0 : index
    %c0_5 = arith.constant 0 : index
    %5 = vector.load %arg7[%c0_3, %c0_4, %c0_5] : memref<1x8x192xf32, #tpu.memory_space<vmem>>, vector<1x8x192xf32>
    %6 = vector.shape_cast %5 : vector<1x8x192xf32> to vector<8x192xf32>
    %7 = vector.extract_strided_slice %6 {offsets = [0, 0], sizes = [1, 192], strides = [1, 1]} : vector<8x192xf32> to vector<1x192xf32>
    %8 = vector.extract_strided_slice %6 {offsets = [1, 0], sizes = [1, 64], strides = [1, 1]} : vector<8x192xf32> to vector<1x64xf32>
    %9 = vector.extract_strided_slice %6 {offsets = [2, 0], sizes = [1, 128], strides = [1, 1]} : vector<8x192xf32> to vector<1x128xf32>
    %10 = vector.extract_strided_slice %6 {offsets = [3, 0], sizes = [1, 64], strides = [1, 1]} : vector<8x192xf32> to vector<1x64xf32>
    %11 = vector.extract_strided_slice %6 {offsets = [4, 0], sizes = [1, 64], strides = [1, 1]} : vector<8x192xf32> to vector<1x64xf32>
    %12 = vector.extract_strided_slice %6 {offsets = [5, 0], sizes = [1, 64], strides = [1, 1]} : vector<8x192xf32> to vector<1x64xf32>
    %13 = vector.extract_strided_slice %6 {offsets = [6, 0], sizes = [1, 64], strides = [1, 1]} : vector<8x192xf32> to vector<1x64xf32>
    %14 = vector.extract_strided_slice %6 {offsets = [7, 0], sizes = [1, 64], strides = [1, 1]} : vector<8x192xf32> to vector<1x64xf32>
    %c0_6 = arith.constant 0 : index
    %c0_7 = arith.constant 0 : index
    %c0_8 = arith.constant 0 : index
    %15 = vector.load %arg3[%c0_6, %c0_7, %c0_8] : memref<1x64x192xf32, #tpu.memory_space<vmem>>, vector<1x64x192xf32>
    %16 = vector.shape_cast %15 : vector<1x64x192xf32> to vector<64x192xf32>
    %cst = arith.constant dense<0.000000e+00> : vector<32x192xf32>
    %17 = tpu.matmul %4, %16, %cst {dimension_numbers = #tpu.dot_dimension_numbers<[1], [0], [0], [1], [0, 0, 1, 1], [], []>} : vector<32x64xf32>, vector<64x192xf32>, vector<32x192xf32> -> vector<32x192xf32>
    %18 = vector.broadcast %7 : vector<1x192xf32> to vector<32x192xf32>
    %19 = arith.addf %17, %18 : vector<32x192xf32>
    %20 = vector.extract_strided_slice %19 {offsets = [0, 0], sizes = [32, 64], strides = [1, 1]} : vector<32x192xf32> to vector<32x64xf32>
    %21 = vector.shape_cast %20 : vector<32x64xf32> to vector<32x4x16xf32>
    %22 = tpu.transpose %21, [1, 0, 2] : vector<32x4x16xf32> -> vector<4x32x16xf32>
    %23 = vector.shape_cast %22 : vector<4x32x16xf32> to vector<8x16x16xf32>
    %24 = vector.extract_strided_slice %19 {offsets = [0, 64], sizes = [32, 64], strides = [1, 1]} : vector<32x192xf32> to vector<32x64xf32>
    %25 = vector.shape_cast %24 : vector<32x64xf32> to vector<32x4x16xf32>
    %26 = tpu.transpose %25, [1, 0, 2] : vector<32x4x16xf32> -> vector<4x32x16xf32>
    %27 = vector.shape_cast %26 : vector<4x32x16xf32> to vector<8x16x16xf32>
    %28 = vector.extract_strided_slice %19 {offsets = [0, 128], sizes = [32, 64], strides = [1, 1]} : vector<32x192xf32> to vector<32x64xf32>
    %29 = vector.shape_cast %28 : vector<32x64xf32> to vector<32x4x16xf32>
    %30 = tpu.transpose %29, [1, 0, 2] : vector<32x4x16xf32> -> vector<4x32x16xf32>
    %31 = vector.shape_cast %30 : vector<4x32x16xf32> to vector<8x16x16xf32>
    "tpu.trace_start"() <{level = 10 : i32, message = "bqd,bkd->bqk"}> : () -> ()
    %cst_9 = arith.constant dense<0.000000e+00> : vector<8x16x16xf32>
    %32 = tpu.matmul %23, %27, %cst_9 {dimension_numbers = #tpu.dot_dimension_numbers<[2], [2], [1], [1], [0, 0, 0, 1, 1, 1], [0], [0]>} : vector<8x16x16xf32>, vector<8x16x16xf32>, vector<8x16x16xf32> -> vector<8x16x16xf32>
    "tpu.trace_stop"() : () -> ()
    %cst_10 = arith.constant dense<0xFF800000> : vector<8x16xf32>
    %33 = vector.multi_reduction <maximumf>, %32, %cst_10 [2] : vector<8x16x16xf32> to vector<8x16xf32>
    %34 = vector.shape_cast %33 : vector<8x16xf32> to vector<8x16x1xf32>
    %35 = vector.broadcast %34 : vector<8x16x1xf32> to vector<8x16x16xf32>
    %36 = arith.subf %32, %35 : vector<8x16x16xf32>
    %37 = math.exp %36 : vector<8x16x16xf32>
    %cst_11 = arith.constant dense<0.000000e+00> : vector<8x16xf32>
    %38 = vector.multi_reduction <add>, %37, %cst_11 [2] : vector<8x16x16xf32> to vector<8x16xf32>
    %39 = vector.shape_cast %38 : vector<8x16xf32> to vector<8x16x1xf32>
    %40 = tpu.reciprocal %39 {approx = true} : vector<8x16x1xf32> -> vector<8x16x1xf32>
    %41 = arith.mulf %39, %40 : vector<8x16x1xf32>
    %cst_12 = arith.constant 2.000000e+00 : f32
    %42 = vector.broadcast %cst_12 : f32 to vector<8x16x1xf32>
    %43 = arith.subf %42, %41 : vector<8x16x1xf32>
    %44 = arith.mulf %40, %43 : vector<8x16x1xf32>
    %45 = vector.broadcast %44 : vector<8x16x1xf32> to vector<8x16x16xf32>
    %46 = arith.mulf %37, %45 : vector<8x16x16xf32>
    "tpu.trace_start"() <{level = 10 : i32, message = "bqk,bkd->bqd"}> : () -> ()
    %cst_13 = arith.constant dense<0.000000e+00> : vector<8x16x16xf32>
    %47 = tpu.matmul %46, %31, %cst_13 {dimension_numbers = #tpu.dot_dimension_numbers<[2], [1], [1], [2], [0, 0, 0, 1, 1, 2], [0], [0]>} : vector<8x16x16xf32>, vector<8x16x16xf32>, vector<8x16x16xf32> -> vector<8x16x16xf32>
    "tpu.trace_stop"() : () -> ()
    %48 = vector.shape_cast %47 : vector<8x16x16xf32> to vector<4x32x16xf32>
    %49 = tpu.transpose %48, [1, 0, 2] : vector<4x32x16xf32> -> vector<32x4x16xf32>
    %50 = vector.shape_cast %49 : vector<32x4x16xf32> to vector<32x64xf32>
    %c0_14 = arith.constant 0 : index
    %c0_15 = arith.constant 0 : index
    %c0_16 = arith.constant 0 : index
    %51 = vector.load %arg4[%c0_14, %c0_15, %c0_16] : memref<1x64x64xf32, #tpu.memory_space<vmem>>, vector<1x64x64xf32>
    %52 = vector.shape_cast %51 : vector<1x64x64xf32> to vector<64x64xf32>
    %cst_17 = arith.constant dense<0.000000e+00> : vector<32x64xf32>
    %53 = tpu.matmul %50, %52, %cst_17 {dimension_numbers = #tpu.dot_dimension_numbers<[1], [0], [0], [1], [0, 0, 1, 1], [], []>} : vector<32x64xf32>, vector<64x64xf32>, vector<32x64xf32> -> vector<32x64xf32>
    %54 = vector.broadcast %8 : vector<1x64xf32> to vector<32x64xf32>
    %55 = arith.addf %53, %54 : vector<32x64xf32>
    %56 = arith.addf %4, %55 : vector<32x64xf32>
    %cst_18 = arith.constant dense<0.000000e+00> : vector<32xf32>
    %57 = vector.multi_reduction <add>, %56, %cst_18 [1] : vector<32x64xf32> to vector<32xf32>
    %58 = vector.shape_cast %57 : vector<32xf32> to vector<32x1xf32>
    %cst_19 = arith.constant 6.400000e+01 : f32
    %59 = vector.broadcast %cst_19 : f32 to vector<32x1xf32>
    %60 = arith.divf %58, %59 : vector<32x1xf32>
    %61 = vector.broadcast %60 : vector<32x1xf32> to vector<32x64xf32>
    %62 = arith.subf %56, %61 : vector<32x64xf32>
    %63 = arith.mulf %62, %62 : vector<32x64xf32>
    %cst_20 = arith.constant dense<0.000000e+00> : vector<32xf32>
    %64 = vector.multi_reduction <add>, %63, %cst_20 [1] : vector<32x64xf32> to vector<32xf32>
    %65 = vector.shape_cast %64 : vector<32xf32> to vector<32x1xf32>
    %cst_21 = arith.constant 6.400000e+01 : f32
    %66 = vector.broadcast %cst_21 : f32 to vector<32x1xf32>
    %67 = arith.divf %65, %66 : vector<32x1xf32>
    %68 = vector.broadcast %60 : vector<32x1xf32> to vector<32x64xf32>
    %69 = arith.subf %56, %68 : vector<32x64xf32>
    %cst_22 = arith.constant 9.99999974E-6 : f32
    %70 = vector.broadcast %cst_22 : f32 to vector<32x1xf32>
    %71 = arith.addf %67, %70 : vector<32x1xf32>
    %72 = math.rsqrt %71 : vector<32x1xf32>
    %73 = vector.broadcast %72 : vector<32x1xf32> to vector<32x64xf32>
    %74 = arith.mulf %69, %73 : vector<32x64xf32>
    %75 = vector.broadcast %11 : vector<1x64xf32> to vector<32x64xf32>
    %76 = arith.mulf %74, %75 : vector<32x64xf32>
    %77 = vector.broadcast %12 : vector<1x64xf32> to vector<32x64xf32>
    %78 = arith.addf %76, %77 : vector<32x64xf32>
    %c0_23 = arith.constant 0 : index
    %c0_24 = arith.constant 0 : index
    %c0_25 = arith.constant 0 : index
    %79 = vector.load %arg5[%c0_23, %c0_24, %c0_25] : memref<1x64x128xf32, #tpu.memory_space<vmem>>, vector<1x64x128xf32>
    %80 = vector.shape_cast %79 : vector<1x64x128xf32> to vector<64x128xf32>
    %cst_26 = arith.constant dense<0.000000e+00> : vector<32x128xf32>
    %81 = tpu.matmul %78, %80, %cst_26 {dimension_numbers = #tpu.dot_dimension_numbers<[1], [0], [0], [1], [0, 0, 1, 1], [], []>} : vector<32x64xf32>, vector<64x128xf32>, vector<32x128xf32> -> vector<32x128xf32>
    %82 = vector.broadcast %9 : vector<1x128xf32> to vector<32x128xf32>
    %83 = arith.addf %81, %82 : vector<32x128xf32>
    %cst_27 = arith.constant 0.000000e+00 : f32
    %84 = vector.broadcast %cst_27 : f32 to vector<32x128xf32>
    %85 = arith.maximumf %83, %84 : vector<32x128xf32>
    %c0_28 = arith.constant 0 : index
    %c0_29 = arith.constant 0 : index
    %c0_30 = arith.constant 0 : index
    %86 = vector.load %arg6[%c0_28, %c0_29, %c0_30] : memref<1x128x64xf32, #tpu.memory_space<vmem>>, vector<1x128x64xf32>
    %87 = vector.shape_cast %86 : vector<1x128x64xf32> to vector<128x64xf32>
    %cst_31 = arith.constant dense<0.000000e+00> : vector<32x64xf32>
    %88 = tpu.matmul %85, %87, %cst_31 {dimension_numbers = #tpu.dot_dimension_numbers<[1], [0], [0], [1], [0, 0, 1, 1], [], []>} : vector<32x128xf32>, vector<128x64xf32>, vector<32x64xf32> -> vector<32x64xf32>
    %89 = vector.broadcast %10 : vector<1x64xf32> to vector<32x64xf32>
    %90 = arith.addf %88, %89 : vector<32x64xf32>
    %91 = arith.addf %78, %90 : vector<32x64xf32>
    %cst_32 = arith.constant dense<0.000000e+00> : vector<32xf32>
    %92 = vector.multi_reduction <add>, %91, %cst_32 [1] : vector<32x64xf32> to vector<32xf32>
    %93 = vector.shape_cast %92 : vector<32xf32> to vector<32x1xf32>
    %cst_33 = arith.constant 6.400000e+01 : f32
    %94 = vector.broadcast %cst_33 : f32 to vector<32x1xf32>
    %95 = arith.divf %93, %94 : vector<32x1xf32>
    %96 = vector.broadcast %95 : vector<32x1xf32> to vector<32x64xf32>
    %97 = arith.subf %91, %96 : vector<32x64xf32>
    %98 = arith.mulf %97, %97 : vector<32x64xf32>
    %cst_34 = arith.constant dense<0.000000e+00> : vector<32xf32>
    %99 = vector.multi_reduction <add>, %98, %cst_34 [1] : vector<32x64xf32> to vector<32xf32>
    %100 = vector.shape_cast %99 : vector<32xf32> to vector<32x1xf32>
    %cst_35 = arith.constant 6.400000e+01 : f32
    %101 = vector.broadcast %cst_35 : f32 to vector<32x1xf32>
    %102 = arith.divf %100, %101 : vector<32x1xf32>
    %103 = vector.broadcast %95 : vector<32x1xf32> to vector<32x64xf32>
    %104 = arith.subf %91, %103 : vector<32x64xf32>
    %cst_36 = arith.constant 9.99999974E-6 : f32
    %105 = vector.broadcast %cst_36 : f32 to vector<32x1xf32>
    %106 = arith.addf %102, %105 : vector<32x1xf32>
    %107 = math.rsqrt %106 : vector<32x1xf32>
    %108 = vector.broadcast %107 : vector<32x1xf32> to vector<32x64xf32>
    %109 = arith.mulf %104, %108 : vector<32x64xf32>
    %110 = vector.broadcast %13 : vector<1x64xf32> to vector<32x64xf32>
    %111 = arith.mulf %109, %110 : vector<32x64xf32>
    %112 = vector.broadcast %14 : vector<1x64xf32> to vector<32x64xf32>
    %113 = arith.addf %111, %112 : vector<32x64xf32>
    %114 = vector.shape_cast %113 : vector<32x64xf32> to vector<2x16x64xf32>
    %c0_37 = arith.constant 0 : index
    %c0_38 = arith.constant 0 : index
    %c0_39 = arith.constant 0 : index
    %115 = vector.load %arg8[%c0_37, %c0_38, %c0_39] : memref<2x16x64xf32, #tpu.memory_space<vmem>>, vector<2x16x64xf32>
    tpu.vector_store %arg8[%c0_37, %c0_38, %c0_39], %114 {strides = array<i32>} : memref<2x16x64xf32, #tpu.memory_space<vmem>>, vector<2x16x64xf32>,
    return
  }
  func.func @transform_0(%arg0: i32, %arg1: i32) -> (i32, i32, i32) {
    %c0_i32 = arith.constant 0 : i32
    %c0_i32_0 = arith.constant 0 : i32
    %c0_i32_1 = arith.constant 0 : i32
    return %arg0, %c0_i32, %c0_i32_0 : i32, i32, i32
  }
  func.func @transform_1(%arg0: i32, %arg1: i32) -> (i32, i32, i32) {
    %c0_i32 = arith.constant 0 : i32
    %c0_i32_0 = arith.constant 0 : i32
    %c0_i32_1 = arith.constant 0 : i32
    return %arg1, %c0_i32, %c0_i32_0 : i32, i32, i32
  }
  func.func @transform_2(%arg0: i32, %arg1: i32) -> (i32, i32, i32) {
    %c0_i32 = arith.constant 0 : i32
    %c0_i32_0 = arith.constant 0 : i32
    %c0_i32_1 = arith.constant 0 : i32
    return %arg1, %c0_i32, %c0_i32_0 : i32, i32, i32
  }
  func.func @transform_3(%arg0: i32, %arg1: i32) -> (i32, i32, i32) {
    %c0_i32 = arith.constant 0 : i32
    %c0_i32_0 = arith.constant 0 : i32
    %c0_i32_1 = arith.constant 0 : i32
    return %arg1, %c0_i32, %c0_i32_0 : i32, i32, i32
  }
  func.func @transform_4(%arg0: i32, %arg1: i32) -> (i32, i32, i32) {
    %c0_i32 = arith.constant 0 : i32
    %c0_i32_0 = arith.constant 0 : i32
    %c0_i32_1 = arith.constant 0 : i32
    return %arg1, %c0_i32, %c0_i32_0 : i32, i32, i32
  }
  func.func @transform_5(%arg0: i32, %arg1: i32) -> (i32, i32, i32) {
    %c0_i32 = arith.constant 0 : i32
    %c0_i32_0 = arith.constant 0 : i32
    %c0_i32_1 = arith.constant 0 : i32
    return %arg1, %c0_i32, %c0_i32_0 : i32, i32, i32
  }
  func.func @transform_6(%arg0: i32, %arg1: i32) -> (i32, i32, i32) {
    %c0_i32 = arith.constant 0 : i32
    %c0_i32_0 = arith.constant 0 : i32
    %c0_i32_1 = arith.constant 0 : i32
    return %arg0, %c0_i32, %c0_i32_0 : i32, i32, i32
  }
}

</mosaic_0001>

<llo_original>
// kernel: tpu_custom_call.1
$region0: #{tpu_custom_call.1}
  #allocation0 [shape = 'u32[]', space=smem, size = 0x4, offset = 0x4, fixed_abs, tag = 'smem constant byte address 0x4 - core index']
  #allocation1 [shape = 'u32[144,128]{1,0:T(1,128)}', space=vmem, size = 0x12000, scoped, tag = 'internal scratch']
  %s0 = inlined_call_operand.hbm [shape: f32[2,16,64], index: 0, kind: input, shape index: {}]
  %s1 = inlined_call_operand.vmem [shape: f32[2,64,192], index: 1, kind: input, shape index: {}]
  %s2 = inlined_call_operand.vmem [shape: f32[2,64,64], index: 2, kind: input, shape index: {}]
  %s3 = inlined_call_operand.hbm [shape: f32[2,64,128], index: 3, kind: input, shape index: {}]
  %s4 = inlined_call_operand.vmem [shape: f32[2,128,64], index: 4, kind: input, shape index: {}]
  %s5 = inlined_call_operand.hbm [shape: f32[2,8,192], index: 5, kind: input, shape index: {}]
  %s6 = inlined_call_operand.hbm [shape: f32[2,16,64], index: 6, kind: output, shape index: {}]
  %s7 = sld [smem:[#allocation0]]
  $region73: #{tpu_custom_call.1} parent=0
    _
  %s9 = ssub.s32 1, %s7
  %s10 = scalar_select 0, %s9, %s7
  $region1: #{tpu_custom_call.1} parent=0
    #allocation2 [shape = 'u8[16384]{0}', space=vmem, size = 0x4000, scoped, tag = 'input window, operand 0, single buffered']
    #allocation3 [shape = 's32[2]{0}', space=sflag, size = 0x8, scoped, tag = 'scoped memory for tpu_custom_call.1']
    #allocation4 [shape = 's32[2]{0}', space=sflag, size = 0x8, scoped, tag = 'scoped memory for tpu_custom_call.1']
    #allocation5 [shape = 'u8[65536]{0}', space=vmem, size = 0x10000, scoped, tag = 'input window, operand 3']
    #allocation6 [shape = 's32[2]{0}', space=sflag, size = 0x8, scoped, tag = 'scoped memory for tpu_custom_call.1']
    #allocation7 [shape = 'u8[16384]{0}', space=vmem, size = 0x4000, scoped, tag = 'input window, operand 5']
    #allocation8 [shape = 'u8[16384]{0}', space=vmem, size = 0x4000, scoped, tag = 'output window, operand 0, single buffered']
    %11 = vsyncpa [#allocation3], 0
    %12 = vsyncpa [#allocation6], 0
    %s13 = scalar_lea.sflag [#allocation6], 1
    %14 = vsyncpa %s13, 0
    %15 = vsyncpa [#allocation4], 0
    loop: start=0, step=1, limit=4
    $region2: #{tpu_custom_call.1} parent=1 // loop_pre_header
      _
    $region3: #{tpu_custom_call.1} parent=1 // loop_header
      %s17 = sphi 0, %s21
      %p18 = scmp.ge.s32.totalorder %s17, 4
      %s24 = sphi 0, %s36
      %s25 = sphi 0, %s32
      %s26 = sphi 0, %s24
      %s27 = sphi 0, %s25
      %s28 = sphi 0, %s26
      %s29 = sphi 0, %s27
      %s39 = sphi 0, %s41
      %s42 = sphi 0, %s39
      %s43 = sphi 0, %s42
      %s59 = sphi 0, %s43
      %s65 = sphi 0, %s67
      %s68 = sphi 0, %s65
      %s69 = sphi 0, %s68
      %s85 = sphi 0, %s69
      %s91 = sphi 0, %s93
      %s94 = sphi 0, %s91
      %s95 = sphi 0, %s94
      %s111 = sphi 0, %s95
      %s117 = sphi 0, %s119
      %s120 = sphi 0, %s117
      %s121 = sphi 0, %s120
      %s137 = sphi 0, %s121
      %s143 = sphi 0, %s145
      %s146 = sphi 0, %s143
      %s147 = sphi 0, %s146
      %s163 = sphi 0, %s147
      %s169 = sphi 0, %s171
      %s172 = sphi 0, %s169
      %s173 = sphi 0, %s172
      %s189 = sphi 0, %s173
      %s195 = sphi 0, %s197
      %s198 = sphi 0, %s195
      %s199 = sphi 0, %s198
      %s215 = sphi 0, %s199
    $region4: #{tpu_custom_call.1} parent=1 // loop_header_branch
      %20 = sbr.rel (%p18) target = $region8
    $region5: #{tpu_custom_call.1} parent=1 // loop_body
      %s22 = ssub.s32 %s17, 1
      %s23 = ssub.s32 %s17, 2
      %s30 = sadd.s32 1, %s25
      %p31 = scmp.ge.s32.totalorder %s30, 2
      %s32 = scalar_select %p31, 0, %s30
      %s33 = sadd.s32 1, %s24
      %s34 = scalar_select %p31, %s33, %s24
      %p35 = scmp.ge.s32.totalorder %s34, 1
      %s36 = scalar_select %p35, 0, %s34
      %s37 = ssub.s32 %s24, %s36
      %p38 = scmp.eq.s32.totalorder %s37, 0
      %s40 = sadd.s32 %s39, 1
      %s41 = scalar_select %p38, %s39, %s40
      %p44 = pneg %p38
      %p45 = scmp.eq.s32.totalorder %s17, 1
      %p46 = por %p44, %p45
      %p47 = scmp.ne.s32.totalorder %s39, %s42
      %p48 = scmp.eq.s32.totalorder %s17, 0
      %p49 = por %p47, %p48
      %p50 = scmp.ne.s32.totalorder %s39, %s42
      %p51 = scmp.eq.s32.totalorder %s22, 1
      %p52 = por %p50, %p51
      %p53 = scmp.ne.s32.totalorder %s42, %s43
      %p54 = scmp.eq.s32.totalorder %s22, 0
      %p55 = por %p53, %p54
      %p56 = scmp.ne.s32.totalorder %s42, %s43
      %p57 = scmp.eq.s32.totalorder %s23, 1
      %p58 = por %p56, %p57
      %p60 = scmp.ne.s32.totalorder %s43, %s59
      %p61 = scmp.eq.s32.totalorder %s23, 0
      %p62 = por %p60, %p61
      %s63 = ssub.s32 %s25, %s32
      %p64 = scmp.eq.s32.totalorder %s63, 0
      %s66 = sadd.s32 %s65, 1
      %s67 = scalar_select %p64, %s65, %s66
      %p70 = pneg %p64
      %p71 = scmp.eq.s32.totalorder %s17, 1
      %p72 = por %p70, %p71
      %p73 = scmp.ne.s32.totalorder %s65, %s68
      %p74 = scmp.eq.s32.totalorder %s17, 0
      %p75 = por %p73, %p74
      %p76 = scmp.ne.s32.totalorder %s65, %s68
      %p77 = scmp.eq.s32.totalorder %s22, 1
      %p78 = por %p76, %p77
      %p79 = scmp.ne.s32.totalorder %s68, %s69
      %p80 = scmp.eq.s32.totalorder %s22, 0
      %p81 = por %p79, %p80
      %p82 = scmp.ne.s32.totalorder %s68, %s69
      %p83 = scmp.eq.s32.totalorder %s23, 1
      %p84 = por %p82, %p83
      %p86 = scmp.ne.s32.totalorder %s69, %s85
      %p87 = scmp.eq.s32.totalorder %s23, 0
      %p88 = por %p86, %p87
      %s89 = ssub.s32 %s25, %s32
      %p90 = scmp.eq.s32.totalorder %s89, 0
      %s92 = sadd.s32 %s91, 1
      %s93 = scalar_select %p90, %s91, %s92
      %p96 = pneg %p90
      %p97 = scmp.eq.s32.totalorder %s17, 1
      %p98 = por %p96, %p97
      %p99 = scmp.ne.s32.totalorder %s91, %s94
      %p100 = scmp.eq.s32.totalorder %s17, 0
      %p101 = por %p99, %p100
      %p102 = scmp.ne.s32.totalorder %s91, %s94
      %p103 = scmp.eq.s32.totalorder %s22, 1
      %p104 = por %p102, %p103
      %p105 = scmp.ne.s32.totalorder %s94, %s95
      %p106 = scmp.eq.s32.totalorder %s22, 0
      %p107 = por %p105, %p106
      %p108 = scmp.ne.s32.totalorder %s94, %s95
      %p109 = scmp.eq.s32.totalorder %s23, 1
      %p110 = por %p108, %p109
      %p112 = scmp.ne.s32.totalorder %s95, %s111
      %p113 = scmp.eq.s32.totalorder %s23, 0
      %p114 = por %p112, %p113
      %s115 = ssub.s32 %s25, %s32
      %p116 = scmp.eq.s32.totalorder %s115, 0
      %s118 = sadd.s32 %s117, 1
      %s119 = scalar_select %p116, %s117, %s118
      %p122 = pneg %p116
      %p123 = scmp.eq.s32.totalorder %s17, 1
      %p124 = por %p122, %p123
      %p125 = scmp.ne.s32.totalorder %s117, %s120
      %p126 = scmp.eq.s32.totalorder %s17, 0
      %p127 = por %p125, %p126
      %p128 = scmp.ne.s32.totalorder %s117, %s120
      %p129 = scmp.eq.s32.totalorder %s22, 1
      %p130 = por %p128, %p129
      %p131 = scmp.ne.s32.totalorder %s120, %s121
      %p132 = scmp.eq.s32.totalorder %s22, 0
      %p133 = por %p131, %p132
      %p134 = scmp.ne.s32.totalorder %s120, %s121
      %p135 = scmp.eq.s32.totalorder %s23, 1
      %p136 = por %p134, %p135
      %p138 = scmp.ne.s32.totalorder %s121, %s137
      %p139 = scmp.eq.s32.totalorder %s23, 0
      %p140 = por %p138, %p139
      %s141 = ssub.s32 %s25, %s32
      %p142 = scmp.eq.s32.totalorder %s141, 0
      %s144 = sadd.s32 %s143, 1
      %s145 = scalar_select %p142, %s143, %s144
      %p148 = pneg %p142
      %p149 = scmp.eq.s32.totalorder %s17, 1
      %p150 = por %p148, %p149
      %p151 = scmp.ne.s32.totalorder %s143, %s146
      %p152 = scmp.eq.s32.totalorder %s17, 0
      %p153 = por %p151, %p152
      %p154 = scmp.ne.s32.totalorder %s143, %s146
      %p155 = scmp.eq.s32.totalorder %s22, 1
      %p156 = por %p154, %p155
      %p157 = scmp.ne.s32.totalorder %s146, %s147
      %p158 = scmp.eq.s32.totalorder %s22, 0
      %p159 = por %p157, %p158
      %p160 = scmp.ne.s32.totalorder %s146, %s147
      %p161 = scmp.eq.s32.totalorder %s23, 1
      %p162 = por %p160, %p161
      %p164 = scmp.ne.s32.totalorder %s147, %s163
      %p165 = scmp.eq.s32.totalorder %s23, 0
      %p166 = por %p164, %p165
      %s167 = ssub.s32 %s25, %s32
      %p168 = scmp.eq.s32.totalorder %s167, 0
      %s170 = sadd.s32 %s169, 1
      %s171 = scalar_select %p168, %s169, %s170
      %p174 = pneg %p168
      %p175 = scmp.eq.s32.totalorder %s17, 1
      %p176 = por %p174, %p175
      %p177 = scmp.ne.s32.totalorder %s169, %s172
      %p178 = scmp.eq.s32.totalorder %s17, 0
      %p179 = por %p177, %p178
      %p180 = scmp.ne.s32.totalorder %s169, %s172
      %p181 = scmp.eq.s32.totalorder %s22, 1
      %p182 = por %p180, %p181
      %p183 = scmp.ne.s32.totalorder %s172, %s173
      %p184 = scmp.eq.s32.totalorder %s22, 0
      %p185 = por %p183, %p184
      %p186 = scmp.ne.s32.totalorder %s172, %s173
      %p187 = scmp.eq.s32.totalorder %s23, 1
      %p188 = por %p186, %p187
      %p190 = scmp.ne.s32.totalorder %s173, %s189
      %p191 = scmp.eq.s32.totalorder %s23, 0
      %p192 = por %p190, %p191
      %s193 = ssub.s32 %s24, %s36
      %p194 = scmp.eq.s32.totalorder %s193, 0
      %s196 = sadd.s32 %s195, 1
      %s197 = scalar_select %p194, %s195, %s196
      %p200 = pneg %p194
      %p201 = scmp.eq.s32.totalorder %s17, 1
      %p202 = por %p200, %p201
      %p203 = scmp.ne.s32.totalorder %s195, %s198
      %p204 = scmp.eq.s32.totalorder %s17, 0
      %p205 = por %p203, %p204
      %p206 = scmp.ne.s32.totalorder %s195, %s198
      %p207 = scmp.eq.s32.totalorder %s22, 1
      %p208 = por %p206, %p207
      %p209 = scmp.ne.s32.totalorder %s198, %s199
      %p210 = scmp.eq.s32.totalorder %s22, 0
      %p211 = por %p209, %p210
      %p212 = scmp.ne.s32.totalorder %s198, %s199
      %p213 = scmp.eq.s32.totalorder %s23, 1
      %p214 = por %p212, %p213
      %p216 = scmp.ne.s32.totalorder %s199, %s215
      %p217 = scmp.eq.s32.totalorder %s23, 0
      %p218 = por %p216, %p217
      %p219 = scmp.le.s32.totalorder 1, %s17
      %p220 = scmp.lt.s32.totalorder %s17, 3
      %p221 = pnand %p219, %p220
      %p222 = pneg %p221
      // Predicated region
      $region9: #{tpu_custom_call.1} parent=5 // pred_check
        _
      $region10: #{tpu_custom_call.1} parent=5 // pred_check_branch
        %224 = sbr.rel (%p221) target = $region12
      $region11: #{tpu_custom_call.1} parent=5 // pred_region
        %s225 = ssub.s32 %s17, 1
        // Predicated region
        $region13: #{tpu_custom_call.1} parent=11 // pred_check
          %p226 = pneg %p55
        $region14: #{tpu_custom_call.1} parent=11 // pred_check_branch
          %228 = sbr.rel (%p226) target = $region16
        $region15: #{tpu_custom_call.1} parent=11 // pred_region
          %s229 = smul.u32 2, %s26
          %s231 = ssub.s32 512, 512
          %232 = vsyncadd [#allocation3], %s231
          %s233 = smul.addr %s229, 2
          %s234 = smul.addr %s233, 128
          %s235 = scalar_lea.hbm %s0, %s234
          %s236 = sshll.u32 [#allocation2], 4
          %s237 = int_to_ptr.vmem [resolvable:$true] %s236
          %242 = dma.hbm_to_vmem [thread:$0]  %s235, 512, %s237, [#allocation3], 128, 128, 8
        $region16: #{tpu_custom_call.1} parent=11 // pred_fallthru
          _
      $region12: #{tpu_custom_call.1} parent=5 // pred_fallthru
        _
      %p243 = scmp.lt.s32.totalorder %s17, 2
      // Predicated region
      $region17: #{tpu_custom_call.1} parent=5 // pred_check
        %p244 = pneg %p243
      $region18: #{tpu_custom_call.1} parent=5 // pred_check_branch
        %246 = sbr.rel (%p244) target = $region20
      $region19: #{tpu_custom_call.1} parent=5 // pred_region
        // Predicated region
        $region21: #{tpu_custom_call.1} parent=19 // pred_check
          %p247 = pneg %p75
        $region22: #{tpu_custom_call.1} parent=19 // pred_check_branch
          %249 = sbr.rel (%p247) target = $region24
        $region23: #{tpu_custom_call.1} parent=19 // pred_region
          %p250 = scmp.lt.s32.totalorder %s25, 1
          %s251 = scalar_select %p250, %s25, 1
          %s252 = smul.addr %s251, 16
          %s253 = smul.addr %s252, 8
          %s254 = scalar_lea.vmem %s1, %s253
        $region24: #{tpu_custom_call.1} parent=19 // pred_fallthru
          _
        // Predicated region
        $region25: #{tpu_custom_call.1} parent=19 // pred_check
          %p255 = pneg %p101
        $region26: #{tpu_custom_call.1} parent=19 // pred_check_branch
          %257 = sbr.rel (%p255) target = $region28
        $region27: #{tpu_custom_call.1} parent=19 // pred_region
          %p258 = scmp.lt.s32.totalorder %s25, 1
          %s259 = scalar_select %p258, %s25, 1
          %s260 = smul.addr %s259, 8
          %s261 = smul.addr %s260, 8
          %s262 = scalar_lea.vmem %s2, %s261
        $region28: #{tpu_custom_call.1} parent=19 // pred_fallthru
          _
        // Predicated region
        $region29: #{tpu_custom_call.1} parent=19 // pred_check
          %p263 = pneg %p127
        $region30: #{tpu_custom_call.1} parent=19 // pred_check_branch
          %265 = sbr.rel (%p263) target = $region32
        $region31: #{tpu_custom_call.1} parent=19 // pred_region
          %s266 = sand.u32 %s17, 1
          %s267 = scalar_lea.sflag [#allocation6], %s266
          %s268 = sand.u32 %s117, 1
          %s269 = smul.addr %s268, 64
          %s270 = scalar_lea.vmem [#allocation5], %s269
          %s272 = ssub.s32 1024, 1024
          %273 = vsyncadd %s267, %s272
          %s274 = smul.addr %s25, 8
          %s275 = smul.addr %s274, 128
          %s276 = scalar_lea.hbm %s3, %s275
          %s277 = sshll.u32 %s270, 4
          %s278 = int_to_ptr.vmem [resolvable:$true] %s277
          %283 = dma.hbm_to_vmem [thread:$0]  %s276, 1024, %s278, %s267, 128, 128, 8
        $region32: #{tpu_custom_call.1} parent=19 // pred_fallthru
          _
        // Predicated region
        $region33: #{tpu_custom_call.1} parent=19 // pred_check
          %p284 = pneg %p153
        $region34: #{tpu_custom_call.1} parent=19 // pred_check_branch
          %286 = sbr.rel (%p284) target = $region36
        $region35: #{tpu_custom_call.1} parent=19 // pred_region
          %p287 = scmp.lt.s32.totalorder %s25, 1
          %s288 = scalar_select %p287, %s25, 1
          %s289 = smul.addr %s288, 16
          %s290 = smul.addr %s289, 8
          %s291 = scalar_lea.vmem %s4, %s290
        $region36: #{tpu_custom_call.1} parent=19 // pred_fallthru
          _
        // Predicated region
        $region37: #{tpu_custom_call.1} parent=19 // pred_check
          %p292 = pneg %p179
        $region38: #{tpu_custom_call.1} parent=19 // pred_check_branch
          %294 = sbr.rel (%p292) target = $region40
        $region39: #{tpu_custom_call.1} parent=19 // pred_region
          %s295 = sand.u32 %s17, 1
          %s296 = scalar_lea.sflag [#allocation6], %s295
          %s297 = sand.u32 %s169, 1
          %s298 = smul.addr %s297, 16
          %s299 = scalar_lea.vmem [#allocation7], %s298
          %s301 = ssub.s32 256, 256
          %302 = vsyncadd %s296, %s301
          %s303 = smul.addr %s25, 2
          %s304 = smul.addr %s303, 128
          %s305 = scalar_lea.hbm %s5, %s304
          %s307 = sshll.u32 %s299, 4
          %s308 = int_to_ptr.vmem [resolvable:$true] %s307
          %310 = dma.hbm_to_vmem [thread:$0]  %s305, 256, %s308, %s296
        $region40: #{tpu_custom_call.1} parent=19 // pred_fallthru
          _
      $region20: #{tpu_custom_call.1} parent=5 // pred_fallthru
        _
      %p311 = scmp.le.s32.totalorder 1, %s17
      %p312 = scmp.lt.s32.totalorder %s17, 3
      %p313 = pnand %p311, %p312
      %p314 = pneg %p313
      // Predicated region
      $region41: #{tpu_custom_call.1} parent=5 // pred_check
        _
      $region42: #{tpu_custom_call.1} parent=5 // pred_check_branch
        %316 = sbr.rel (%p313) target = $region44
      $region43: #{tpu_custom_call.1} parent=5 // pred_region
        %s317 = ssub.s32 %s17, 1
        // Predicated region
        $region45: #{tpu_custom_call.1} parent=43 // pred_check
          %p318 = pneg %p55
        $region46: #{tpu_custom_call.1} parent=43 // pred_check_branch
          %320 = sbr.rel (%p318) target = $region48
        $region47: #{tpu_custom_call.1} parent=43 // pred_region
          %321 = dma.done [#allocation3], 512
        $region48: #{tpu_custom_call.1} parent=43 // pred_fallthru
          _
        %s322 = sand.u32 %s22, 1
        %s323 = scalar_lea.sflag [#allocation6], %s322
        %s324 = sand.u32 %s120, 1
        %s325 = smul.addr %s324, 64
        %s326 = scalar_lea.vmem [#allocation5], %s325
        // Predicated region
        $region49: #{tpu_custom_call.1} parent=43 // pred_check
          %p327 = pneg %p133
        $region50: #{tpu_custom_call.1} parent=43 // pred_check_branch
          %329 = sbr.rel (%p327) target = $region52
        $region51: #{tpu_custom_call.1} parent=43 // pred_region
          %330 = dma.done %s323, 1024
        $region52: #{tpu_custom_call.1} parent=43 // pred_fallthru
          _
        %s331 = sand.u32 %s22, 1
        %s332 = scalar_lea.sflag [#allocation6], %s331
        %s333 = sand.u32 %s172, 1
        %s334 = smul.addr %s333, 16
        %s335 = scalar_lea.vmem [#allocation7], %s334
        // Predicated region
        $region53: #{tpu_custom_call.1} parent=43 // pred_check
          %p336 = pneg %p185
        $region54: #{tpu_custom_call.1} parent=43 // pred_check_branch
          %338 = sbr.rel (%p336) target = $region56
        $region55: #{tpu_custom_call.1} parent=43 // pred_region
          %339 = dma.done %s332, 256
        $region56: #{tpu_custom_call.1} parent=43 // pred_fallthru
          _
        %p340 = pneg %p55
        %p341 = pneg %p52
        %p342 = scmp.lt.s32.totalorder %s27, 1
        %s343 = scalar_select %p342, %s27, 1
        %s344 = smul.addr %s343, 16
        %s345 = smul.addr %s344, 8
        %s346 = scalar_lea.vmem %s1, %s345
        %p347 = pneg %p81
        %p348 = pneg %p78
        %p349 = scmp.lt.s32.totalorder %s27, 1
        %s350 = scalar_select %p349, %s27, 1
        %s351 = smul.addr %s350, 8
        %s352 = smul.addr %s351, 8
        %s353 = scalar_lea.vmem %s2, %s352
        %p354 = pneg %p107
        %p355 = pneg %p104
        %s356 = sand.u32 %s22, 1
        %s357 = scalar_lea.sflag [#allocation6], %s356
        %s358 = sand.u32 %s120, 1
        %s359 = smul.addr %s358, 64
        %s360 = scalar_lea.vmem [#allocation5], %s359
        %p361 = pneg %p133
        %p362 = pneg %p130
        %p363 = scmp.lt.s32.totalorder %s27, 1
        %s364 = scalar_select %p363, %s27, 1
        %s365 = smul.addr %s364, 16
        %s366 = smul.addr %s365, 8
        %s367 = scalar_lea.vmem %s4, %s366
        %p368 = pneg %p159
        %p369 = pneg %p156
        %s370 = sand.u32 %s22, 1
        %s371 = scalar_lea.sflag [#allocation6], %s370
        %s372 = sand.u32 %s172, 1
        %s373 = smul.addr %s372, 16
        %s374 = scalar_lea.vmem [#allocation7], %s373
        %p375 = pneg %p185
        %p376 = pneg %p182
        %p377 = pneg %p211
        %p378 = pneg %p208
        %s379 = smul.u32 2, %s26
        %p380 = scmp.lt.s32.totalorder %s27, 1
        %s381 = scalar_select %p380, %s27, 1
        %s382 = smul.addr %s381, 16
        %s383 = smul.addr %s382, 8
        %s384 = scalar_lea.vmem %s1, %s383
        %p385 = scmp.lt.s32.totalorder %s27, 1
        %s386 = scalar_select %p385, %s27, 1
        %s387 = smul.addr %s386, 8
        %s388 = smul.addr %s387, 8
        %s389 = scalar_lea.vmem %s2, %s388
        %p390 = scmp.lt.s32.totalorder %s27, 1
        %s391 = scalar_select %p390, %s27, 1
        %s392 = smul.addr %s391, 16
        %s393 = smul.addr %s392, 8
        %s394 = scalar_lea.vmem %s4, %s393
        %s395 = smul.u32 2, %s26
        %p396 = scmp.eq.s32.totalorder %s27, 0
        // Predicated region
        $region57: #{tpu_custom_call.1} parent=43 // pred_check
          %p397 = pneg %p396
        $region58: #{tpu_custom_call.1} parent=43 // pred_check_branch
          %399 = sbr.rel (%p397) target = $region60
        $region59: #{tpu_custom_call.1} parent=43 // pred_region
          %v400 = vld [vmem:[#allocation2] sm:$0xff]
          %v401 = vld [vmem:[#allocation2 + $0x8] sm:$0xff]
          %v402 = vld [vmem:[#allocation2 + $0x10] sm:$0xff]
          %v403 = vld [vmem:[#allocation2 + $0x18] sm:$0xff]
          %vm404 = vcmask 523264
          %405 = vst.msk [vmem:[#allocation8] sm:$0xff] %vm404, %v400
          %406 = vst.msk [vmem:[#allocation8 + $0x8] sm:$0xff] %vm404, %v401
          %407 = vst.msk [vmem:[#allocation8 + $0x10] sm:$0xff] %vm404, %v402
          %408 = vst.msk [vmem:[#allocation8 + $0x18] sm:$0xff] %vm404, %v403
        $region60: #{tpu_custom_call.1} parent=43 // pred_fallthru
          _
        %v409 = vld [vmem:[#allocation8] sm:$0xff]
        %v410 = vld [vmem:[#allocation8 + $0x8] sm:$0xff]
        %v411 = vld [vmem:[#allocation8 + $0x10] sm:$0xff]
        %v412 = vld [vmem:[#allocation8 + $0x18] sm:$0xff]
        %v413 = vld [vmem:[%s335] sm:$0xff]
        %v414 = vld [vmem:[%s335 + $0x8] sm:$0xff]
        %v415 = vld [vmem:[%s384] sm:$0xff]
        %v416 = vld [vmem:[%s384 + $0x8] sm:$0xff]
        %v417 = vld [vmem:[%s384 + $0x10] sm:$0xff]
        %v418 = vld [vmem:[%s384 + $0x18] sm:$0xff]
        %v419 = vld [vmem:[%s384 + $0x20] sm:$0xff]
        %v420 = vld [vmem:[%s384 + $0x28] sm:$0xff]
        %v421 = vld [vmem:[%s384 + $0x30] sm:$0xff]
        %v422 = vld [vmem:[%s384 + $0x38] sm:$0xff]
        %v423 = vld [vmem:[%s384 + $0x40] sm:$0xff]
        %v424 = vld [vmem:[%s384 + $0x48] sm:$0xff]
        %v425 = vld [vmem:[%s384 + $0x50] sm:$0xff]
        %v426 = vld [vmem:[%s384 + $0x58] sm:$0xff]
        %v427 = vld [vmem:[%s384 + $0x60] sm:$0xff]
        %v428 = vld [vmem:[%s384 + $0x68] sm:$0xff]
        %v429 = vld [vmem:[%s384 + $0x70] sm:$0xff]
        %v430 = vld [vmem:[%s384 + $0x78] sm:$0xff]
        %v431 = vlaneseq
        %v432 = vshrl.u32 %v431, 7
        %v433 = vsub.s32 0, %v432
        %v434 = vrot.slane %v413, %v433
        %v435 = vlaneseq
        %v436 = vshrl.u32 %v435, 7
        %v437 = vsub.s32 0, %v436
        %v438 = vrot.slane %v414, %v437
        %vm439 = vcmask 523264
        %v441 = vsel %vm439, %v409, 0
        %v444 = vsel %vm439, %v410, 0
        %v447 = vsel %vm439, %v411, 0
        %v450 = vsel %vm439, %v412, 0
        %452 = vmatprep.subr.mxu0 %v416
        %453 = vmatpush1.msra.mxu0 %v415
        %454 = vmatprep.subr.mxu0 %v418
        %455 = vmatpush1.msra.mxu0 %v417
        %456 = vmatprep.subr.mxu0 %v420
        %457 = vmatpush1.msra.mxu0 %v419
        %458 = vmatprep.subr.mxu0 %v422
        %459 = vmatpush1.msra.mxu0 %v421
        %460 = vmatprep.subr.mxu0 %v424
        %461 = vmatpush1.msra.mxu0 %v423
        %462 = vmatprep.subr.mxu0 %v426
        %463 = vmatpush1.msra.mxu0 %v425
        %464 = vmatprep.subr.mxu0 %v428
        %465 = vmatpush1.msra.mxu0 %v427
        %466 = vmatprep.subr.mxu0 %v430
        %467 = vmatpush1.msra.mxu0 %v429
        %468 = vmatprep.subr.mxu0 0.0
        %469 = vmatpush1.msra.mxu0 0.0
        %470 = vmatprep.subr.mxu0 0.0
        %471 = vmatpush1.msra.mxu0 0.0
        %472 = vmatprep.subr.mxu0 0.0
        %473 = vmatpush1.msra.mxu0 0.0
        %474 = vmatprep.subr.mxu0 0.0
        %475 = vmatpush1.msra.mxu0 0.0
        %476 = vmatprep.subr.mxu0 0.0
        %477 = vmatpush1.msra.mxu0 0.0
        %478 = vmatprep.subr.mxu0 0.0
        %479 = vmatpush1.msra.mxu0 0.0
        %480 = vmatprep.subr.mxu0 0.0
        %481 = vmatpush1.msra.mxu0 0.0
        %482 = vmatprep.subr.mxu0 0.0
        %483 = vmatpush1.msra.mxu0 0.0
        %484 = vmatprep.subr.mxu0 0.0
        %485 = vmatpush1.msra.mxu0 0.0
        %486 = vmatprep.subr.mxu0 0.0
        %487 = vmatpush1.msra.mxu0 0.0
        %488 = vmatprep.subr.mxu0 0.0
        %489 = vmatpush1.msra.mxu0 0.0
        %490 = vmatprep.subr.mxu0 0.0
        %491 = vmatpush1.msra.mxu0 0.0
        %492 = vmatprep.subr.mxu0 0.0
        %493 = vmatpush1.msra.mxu0 0.0
        %494 = vmatprep.subr.mxu0 0.0
        %495 = vmatpush1.msra.mxu0 0.0
        %496 = vmatprep.subr.mxu0 0.0
        %497 = vmatpush1.msra.mxu0 0.0
        %498 = vmatprep.subr.mxu0 0.0
        %499 = vmatpush1.msra.mxu0 0.0
        %500 = vmatprep.subr.mxu0 0.0
        %501 = vmatpush1.msra.mxu0 0.0
        %502 = vmatprep.subr.mxu0 0.0
        %503 = vmatpush1.msra.mxu0 0.0
        %504 = vmatprep.subr.mxu0 0.0
        %505 = vmatpush1.msra.mxu0 0.0
        %506 = vmatprep.subr.mxu0 0.0
        %507 = vmatpush1.msra.mxu0 0.0
        %508 = vmatprep.subr.mxu0 0.0
        %509 = vmatpush1.msra.mxu0 0.0
        %510 = vmatprep.subr.mxu0 0.0
        %511 = vmatpush1.msra.mxu0 0.0
        %512 = vmatprep.subr.mxu0 0.0
        %513 = vmatpush1.msra.mxu0 0.0
        %514 = vmatprep.subr.mxu0 0.0
        %515 = vmatpush1.msra.mxu0 0.0
        %516 = vmatprep.mubr.f32.mxu0 0.0
        %517 = vmatmul.mubr.f32.gmra.mrb[0].mxu0 %v441
        %v518 = vpop.f32.mrb[0].mxu0
        %v519 = vadd.f32 %v434, %v518
        %v520 = vpop.f32.mrb[0].mxu0
        %v521 = vadd.f32 %v438, %v520
        %522 = vmatprep.mubr.f32.mxu0 0.0
        %523 = vmatmul.mubr.f32.gmra.mrb[0].mxu0 %v444
        %v524 = vpop.f32.mrb[0].mxu0
        %v525 = vadd.f32 %v434, %v524
        %v526 = vpop.f32.mrb[0].mxu0
        %v527 = vadd.f32 %v438, %v526
        %528 = vmatprep.mubr.f32.mxu0 0.0
        %529 = vmatmul.mubr.f32.gmra.mrb[0].mxu0 %v447
        %v530 = vpop.f32.mrb[0].mxu0
        %v531 = vadd.f32 %v434, %v530
        %v532 = vpop.f32.mrb[0].mxu0
        %v533 = vadd.f32 %v438, %v532
        %534 = vmatprep.mubr.f32.mxu0 0.0
        %535 = vmatmul.mubr.f32.gmra.mrb[0].mxu0 %v450
        %v536 = vpop.f32.mrb[0].mxu0
        %v537 = vadd.f32 %v434, %v536
        %v538 = vpop.f32.mrb[0].mxu0
        %v539 = vadd.f32 %v438, %v538
        %540 = vdwg.mxu0
        %545 = vrot.lane.b32.xlu0 %v519, 112
        %v546 = vpop.permute.xlu0 %545
        %547 = vrot.lane.b32.xlu0 %v525, 112
        %v548 = vpop.permute.xlu0 %547
        %549 = vrot.lane.b32.xlu0 %v531, 112
        %v550 = vpop.permute.xlu0 %549
        %551 = vrot.lane.b32.xlu0 %v537, 112
        %v552 = vpop.permute.xlu0 %551
        %557 = vrot.lane.b32.xlu0 %v519, 96
        %v558 = vpop.permute.xlu0 %557
        %559 = vrot.lane.b32.xlu0 %v525, 96
        %v560 = vpop.permute.xlu0 %559
        %561 = vrot.lane.b32.xlu0 %v531, 96
        %v562 = vpop.permute.xlu0 %561
        %563 = vrot.lane.b32.xlu0 %v537, 96
        %v564 = vpop.permute.xlu0 %563
        %569 = vrot.lane.b32.xlu0 %v519, 80
        %v570 = vpop.permute.xlu0 %569
        %571 = vrot.lane.b32.xlu0 %v525, 80
        %v572 = vpop.permute.xlu0 %571
        %573 = vrot.lane.b32.xlu0 %v531, 80
        %v574 = vpop.permute.xlu0 %573
        %575 = vrot.lane.b32.xlu0 %v537, 80
        %v576 = vpop.permute.xlu0 %575
        %v581 = vcombine.low %v519, %v558
        %v582 = vcombine.high %v519, %v558
        %v584 = vunpack.c.l.s4 1983009808
        %v585 = vunpack.c.0.s8 %v584
        %v586 = vlaneseq
        %v587 = vshrl.u32 %v586, 7
        %v588 = vsub.s32 %v585, %v587
        %v589 = vrot.slane %v581, %v588
        %v591 = vunpack.c.l.s4 1983009808
        %v592 = vunpack.c.0.s8 %v591
        %v593 = vlaneseq
        %v594 = vshrl.u32 %v593, 7
        %v595 = vsub.s32 %v592, %v594
        %v596 = vrot.slane %v582, %v595
        %v597 = vcombine.low %v546, %v570
        %v598 = vcombine.high %v546, %v570
        %v600 = vunpack.c.l.s4 1983009808
        %v601 = vunpack.c.0.s8 %v600
        %v602 = vlaneseq
        %v603 = vshrl.u32 %v602, 7
        %v604 = vsub.s32 %v601, %v603
        %v605 = vrot.slane %v597, %v604
        %v607 = vunpack.c.l.s4 1983009808
        %v608 = vunpack.c.0.s8 %v607
        %v609 = vlaneseq
        %v610 = vshrl.u32 %v609, 7
        %v611 = vsub.s32 %v608, %v610
        %v612 = vrot.slane %v598, %v611
        %v613 = vcombine.low %v589, %v605
        %v614 = vcombine.high %v589, %v605
        %v616 = vunpack.c.l.s4 1934713408
        %v617 = vunpack.c.0.s8 %v616
        %v618 = vlaneseq
        %v619 = vshrl.u32 %v618, 7
        %v620 = vsub.s32 %v617, %v619
        %v621 = vrot.slane %v613, %v620
        %v623 = vunpack.c.l.s4 1934713408
        %v624 = vunpack.c.0.s8 %v623
        %v625 = vlaneseq
        %v626 = vshrl.u32 %v625, 7
        %v627 = vsub.s32 %v624, %v626
        %v628 = vrot.slane %v614, %v627
        %v629 = vcombine.low %v596, %v612
        %v630 = vcombine.high %v596, %v612
        %v632 = vunpack.c.l.s4 1934713408
        %v633 = vunpack.c.0.s8 %v632
        %v634 = vlaneseq
        %v635 = vshrl.u32 %v634, 7
        %v636 = vsub.s32 %v633, %v635
        %v637 = vrot.slane %v629, %v636
        %v639 = vunpack.c.l.s4 1934713408
        %v640 = vunpack.c.0.s8 %v639
        %v641 = vlaneseq
        %v642 = vshrl.u32 %v641, 7
        %v643 = vsub.s32 %v640, %v642
        %v644 = vrot.slane %v630, %v643
        %v645 = vcombine.high %v621, 0.0
        %v646 = vcombine.high %v628, 0.0
        %v647 = vcombine.high %v637, 0.0
        %v648 = vcombine.high %v644, 0.0
        %v649 = vcombine.low %v525, %v560
        %v650 = vcombine.high %v525, %v560
        %v652 = vunpack.c.l.s4 1983009808
        %v653 = vunpack.c.0.s8 %v652
        %v654 = vlaneseq
        %v655 = vshrl.u32 %v654, 7
        %v656 = vsub.s32 %v653, %v655
        %v657 = vrot.slane %v649, %v656
        %v659 = vunpack.c.l.s4 1983009808
        %v660 = vunpack.c.0.s8 %v659
        %v661 = vlaneseq
        %v662 = vshrl.u32 %v661, 7
        %v663 = vsub.s32 %v660, %v662
        %v664 = vrot.slane %v650, %v663
        %v665 = vcombine.low %v548, %v572
        %v666 = vcombine.high %v548, %v572
        %v668 = vunpack.c.l.s4 1983009808
        %v669 = vunpack.c.0.s8 %v668
        %v670 = vlaneseq
        %v671 = vshrl.u32 %v670, 7
        %v672 = vsub.s32 %v669, %v671
        %v673 = vrot.slane %v665, %v672
        %v675 = vunpack.c.l.s4 1983009808
        %v676 = vunpack.c.0.s8 %v675
        %v677 = vlaneseq
        %v678 = vshrl.u32 %v677, 7
        %v679 = vsub.s32 %v676, %v678
        %v680 = vrot.slane %v666, %v679
        %v681 = vcombine.low %v657, %v673
        %v682 = vcombine.high %v657, %v673
        %v684 = vunpack.c.l.s4 1934713408
        %v685 = vunpack.c.0.s8 %v684
        %v686 = vlaneseq
        %v687 = vshrl.u32 %v686, 7
        %v688 = vsub.s32 %v685, %v687
        %v689 = vrot.slane %v681, %v688
        %v691 = vunpack.c.l.s4 1934713408
        %v692 = vunpack.c.0.s8 %v691
        %v693 = vlaneseq
        %v694 = vshrl.u32 %v693, 7
        %v695 = vsub.s32 %v692, %v694
        %v696 = vrot.slane %v682, %v695
        %v697 = vcombine.low %v664, %v680
        %v698 = vcombine.high %v664, %v680
        %v700 = vunpack.c.l.s4 1934713408
        %v701 = vunpack.c.0.s8 %v700
        %v702 = vlaneseq
        %v703 = vshrl.u32 %v702, 7
        %v704 = vsub.s32 %v701, %v703
        %v705 = vrot.slane %v697, %v704
        %v707 = vunpack.c.l.s4 1934713408
        %v708 = vunpack.c.0.s8 %v707
        %v709 = vlaneseq
        %v710 = vshrl.u32 %v709, 7
        %v711 = vsub.s32 %v708, %v710
        %v712 = vrot.slane %v698, %v711
        %v713 = vcombine.high %v689, 0.0
        %v714 = vcombine.high %v696, 0.0
        %v715 = vcombine.high %v705, 0.0
        %v716 = vcombine.high %v712, 0.0
        %v717 = vcombine.low %v531, %v562
        %v718 = vcombine.high %v531, %v562
        %v720 = vunpack.c.l.s4 1983009808
        %v721 = vunpack.c.0.s8 %v720
        %v722 = vlaneseq
        %v723 = vshrl.u32 %v722, 7
        %v724 = vsub.s32 %v721, %v723
        %v725 = vrot.slane %v717, %v724
        %v727 = vunpack.c.l.s4 1983009808
        %v728 = vunpack.c.0.s8 %v727
        %v729 = vlaneseq
        %v730 = vshrl.u32 %v729, 7
        %v731 = vsub.s32 %v728, %v730
        %v732 = vrot.slane %v718, %v731
        %v733 = vcombine.low %v550, %v574
        %v734 = vcombine.high %v550, %v574
        %v736 = vunpack.c.l.s4 1983009808
        %v737 = vunpack.c.0.s8 %v736
        %v738 = vlaneseq
        %v739 = vshrl.u32 %v738, 7
        %v740 = vsub.s32 %v737, %v739
        %v741 = vrot.slane %v733, %v740
        %v743 = vunpack.c.l.s4 1983009808
        %v744 = vunpack.c.0.s8 %v743
        %v745 = vlaneseq
        %v746 = vshrl.u32 %v745, 7
        %v747 = vsub.s32 %v744, %v746
        %v748 = vrot.slane %v734, %v747
        %v749 = vcombine.low %v725, %v741
        %v750 = vcombine.high %v725, %v741
        %v752 = vunpack.c.l.s4 1934713408
        %v753 = vunpack.c.0.s8 %v752
        %v754 = vlaneseq
        %v755 = vshrl.u32 %v754, 7
        %v756 = vsub.s32 %v753, %v755
        %v757 = vrot.slane %v749, %v756
        %v759 = vunpack.c.l.s4 1934713408
        %v760 = vunpack.c.0.s8 %v759
        %v761 = vlaneseq
        %v762 = vshrl.u32 %v761, 7
        %v763 = vsub.s32 %v760, %v762
        %v764 = vrot.slane %v750, %v763
        %v765 = vcombine.low %v732, %v748
        %v766 = vcombine.high %v732, %v748
        %v768 = vunpack.c.l.s4 1934713408
        %v769 = vunpack.c.0.s8 %v768
        %v770 = vlaneseq
        %v771 = vshrl.u32 %v770, 7
        %v772 = vsub.s32 %v769, %v771
        %v773 = vrot.slane %v765, %v772
        %v775 = vunpack.c.l.s4 1934713408
        %v776 = vunpack.c.0.s8 %v775
        %v777 = vlaneseq
        %v778 = vshrl.u32 %v777, 7
        %v779 = vsub.s32 %v776, %v778
        %v780 = vrot.slane %v766, %v779
        %v781 = vcombine.high %v757, 0.0
        %v782 = vcombine.high %v764, 0.0
        %v783 = vcombine.high %v773, 0.0
        %v784 = vcombine.high %v780, 0.0
        %v785 = vcombine.low %v537, %v564
        %v786 = vcombine.high %v537, %v564
        %v788 = vunpack.c.l.s4 1983009808
        %v789 = vunpack.c.0.s8 %v788
        %v790 = vlaneseq
        %v791 = vshrl.u32 %v790, 7
        %v792 = vsub.s32 %v789, %v791
        %v793 = vrot.slane %v785, %v792
        %v795 = vunpack.c.l.s4 1983009808
        %v796 = vunpack.c.0.s8 %v795
        %v797 = vlaneseq
        %v798 = vshrl.u32 %v797, 7
        %v799 = vsub.s32 %v796, %v798
        %v800 = vrot.slane %v786, %v799
        %v801 = vcombine.low %v552, %v576
        %v802 = vcombine.high %v552, %v576
        %v804 = vunpack.c.l.s4 1983009808
        %v805 = vunpack.c.0.s8 %v804
        %v806 = vlaneseq
        %v807 = vshrl.u32 %v806, 7
        %v808 = vsub.s32 %v805, %v807
        %v809 = vrot.slane %v801, %v808
        %v811 = vunpack.c.l.s4 1983009808
        %v812 = vunpack.c.0.s8 %v811
        %v813 = vlaneseq
        %v814 = vshrl.u32 %v813, 7
        %v815 = vsub.s32 %v812, %v814
        %v816 = vrot.slane %v802, %v815
        %v817 = vcombine.low %v793, %v809
        %v818 = vcombine.high %v793, %v809
        %v820 = vunpack.c.l.s4 1934713408
        %v821 = vunpack.c.0.s8 %v820
        %v822 = vlaneseq
        %v823 = vshrl.u32 %v822, 7
        %v824 = vsub.s32 %v821, %v823
        %v825 = vrot.slane %v817, %v824
        %v827 = vunpack.c.l.s4 1934713408
        %v828 = vunpack.c.0.s8 %v827
        %v829 = vlaneseq
        %v830 = vshrl.u32 %v829, 7
        %v831 = vsub.s32 %v828, %v830
        %v832 = vrot.slane %v818, %v831
        %v833 = vcombine.low %v800, %v816
        %v834 = vcombine.high %v800, %v816
        %v836 = vunpack.c.l.s4 1934713408
        %v837 = vunpack.c.0.s8 %v836
        %v838 = vlaneseq
        %v839 = vshrl.u32 %v838, 7
        %v840 = vsub.s32 %v837, %v839
        %v841 = vrot.slane %v833, %v840
        %v843 = vunpack.c.l.s4 1934713408
        %v844 = vunpack.c.0.s8 %v843
        %v845 = vlaneseq
        %v846 = vshrl.u32 %v845, 7
        %v847 = vsub.s32 %v844, %v846
        %v848 = vrot.slane %v834, %v847
        %v849 = vcombine.high %v825, 0.0
        %v850 = vcombine.high %v832, 0.0
        %v851 = vcombine.high %v841, 0.0
        %v852 = vcombine.high %v848, 0.0
        %v853 = vcombine.low %v621, %v628
        %v855 = vunpack.c.l.s4 1983009808
        %v856 = vunpack.c.0.s8 %v855
        %v857 = vlaneseq
        %v858 = vshrl.u32 %v857, 7
        %v859 = vsub.s32 %v856, %v858
        %v860 = vrot.slane %v853, %v859
        %v861 = vcombine.low %v645, %v646
        %v863 = vunpack.c.l.s4 1983009808
        %v864 = vunpack.c.0.s8 %v863
        %v865 = vlaneseq
        %v866 = vshrl.u32 %v865, 7
        %v867 = vsub.s32 %v864, %v866
        %v868 = vrot.slane %v861, %v867
        %v869 = vcombine.low %v637, %v644
        %v871 = vunpack.c.l.s4 1983009808
        %v872 = vunpack.c.0.s8 %v871
        %v873 = vlaneseq
        %v874 = vshrl.u32 %v873, 7
        %v875 = vsub.s32 %v872, %v874
        %v876 = vrot.slane %v869, %v875
        %v877 = vcombine.low %v647, %v648
        %v879 = vunpack.c.l.s4 1983009808
        %v880 = vunpack.c.0.s8 %v879
        %v881 = vlaneseq
        %v882 = vshrl.u32 %v881, 7
        %v883 = vsub.s32 %v880, %v882
        %v884 = vrot.slane %v877, %v883
        %v885 = vcombine.low %v860, %v868
        %v886 = vcombine.high %v860, %v868
        %v888 = vunpack.c.l.s4 1934713408
        %v889 = vunpack.c.0.s8 %v888
        %v890 = vlaneseq
        %v891 = vshrl.u32 %v890, 7
        %v892 = vsub.s32 %v889, %v891
        %v893 = vrot.slane %v885, %v892
        %v895 = vunpack.c.l.s4 1934713408
        %v896 = vunpack.c.0.s8 %v895
        %v897 = vlaneseq
        %v898 = vshrl.u32 %v897, 7
        %v899 = vsub.s32 %v896, %v898
        %v900 = vrot.slane %v886, %v899
        %v901 = vcombine.low %v876, %v884
        %v902 = vcombine.high %v876, %v884
        %v904 = vunpack.c.l.s4 1934713408
        %v905 = vunpack.c.0.s8 %v904
        %v906 = vlaneseq
        %v907 = vshrl.u32 %v906, 7
        %v908 = vsub.s32 %v905, %v907
        %v909 = vrot.slane %v901, %v908
        %v911 = vunpack.c.l.s4 1934713408
        %v912 = vunpack.c.0.s8 %v911
        %v913 = vlaneseq
        %v914 = vshrl.u32 %v913, 7
        %v915 = vsub.s32 %v912, %v914
        %v916 = vrot.slane %v902, %v915
        %v917 = vcombine.low %v893, %v909
        %v918 = vcombine.high %v893, %v909
        %v919 = vcombine.low %v900, %v916
        %v920 = vcombine.high %v900, %v916
        %v921 = vcombine.low %v689, %v696
        %v923 = vunpack.c.l.s4 1983009808
        %v924 = vunpack.c.0.s8 %v923
        %v925 = vlaneseq
        %v926 = vshrl.u32 %v925, 7
        %v927 = vsub.s32 %v924, %v926
        %v928 = vrot.slane %v921, %v927
        %v929 = vcombine.low %v713, %v714
        %v931 = vunpack.c.l.s4 1983009808
        %v932 = vunpack.c.0.s8 %v931
        %v933 = vlaneseq
        %v934 = vshrl.u32 %v933, 7
        %v935 = vsub.s32 %v932, %v934
        %v936 = vrot.slane %v929, %v935
        %v937 = vcombine.low %v705, %v712
        %v939 = vunpack.c.l.s4 1983009808
        %v940 = vunpack.c.0.s8 %v939
        %v941 = vlaneseq
        %v942 = vshrl.u32 %v941, 7
        %v943 = vsub.s32 %v940, %v942
        %v944 = vrot.slane %v937, %v943
        %v945 = vcombine.low %v715, %v716
        %v947 = vunpack.c.l.s4 1983009808
        %v948 = vunpack.c.0.s8 %v947
        %v949 = vlaneseq
        %v950 = vshrl.u32 %v949, 7
        %v951 = vsub.s32 %v948, %v950
        %v952 = vrot.slane %v945, %v951
        %v953 = vcombine.low %v928, %v936
        %v954 = vcombine.high %v928, %v936
        %v956 = vunpack.c.l.s4 1934713408
        %v957 = vunpack.c.0.s8 %v956
        %v958 = vlaneseq
        %v959 = vshrl.u32 %v958, 7
        %v960 = vsub.s32 %v957, %v959
        %v961 = vrot.slane %v953, %v960
        %v963 = vunpack.c.l.s4 1934713408
        %v964 = vunpack.c.0.s8 %v963
        %v965 = vlaneseq
        %v966 = vshrl.u32 %v965, 7
        %v967 = vsub.s32 %v964, %v966
        %v968 = vrot.slane %v954, %v967
        %v969 = vcombine.low %v944, %v952
        %v970 = vcombine.high %v944, %v952
        %v972 = vunpack.c.l.s4 1934713408
        %v973 = vunpack.c.0.s8 %v972
        %v974 = vlaneseq
        %v975 = vshrl.u32 %v974, 7
        %v976 = vsub.s32 %v973, %v975
        %v977 = vrot.slane %v969, %v976
        %v979 = vunpack.c.l.s4 1934713408
        %v980 = vunpack.c.0.s8 %v979
        %v981 = vlaneseq
        %v982 = vshrl.u32 %v981, 7
        %v983 = vsub.s32 %v980, %v982
        %v984 = vrot.slane %v970, %v983
        %v985 = vcombine.low %v961, %v977
        %v986 = vcombine.high %v961, %v977
        %v987 = vcombine.low %v968, %v984
        %v988 = vcombine.high %v968, %v984
        %v989 = vcombine.low %v757, %v764
        %v991 = vunpack.c.l.s4 1983009808
        %v992 = vunpack.c.0.s8 %v991
        %v993 = vlaneseq
        %v994 = vshrl.u32 %v993, 7
        %v995 = vsub.s32 %v992, %v994
        %v996 = vrot.slane %v989, %v995
        %v997 = vcombine.low %v781, %v782
        %v999 = vunpack.c.l.s4 1983009808
        %v1000 = vunpack.c.0.s8 %v999
        %v1001 = vlaneseq
        %v1002 = vshrl.u32 %v1001, 7
        %v1003 = vsub.s32 %v1000, %v1002
        %v1004 = vrot.slane %v997, %v1003
        %v1005 = vcombine.low %v773, %v780
        %v1007 = vunpack.c.l.s4 1983009808
        %v1008 = vunpack.c.0.s8 %v1007
        %v1009 = vlaneseq
        %v1010 = vshrl.u32 %v1009, 7
        %v1011 = vsub.s32 %v1008, %v1010
        %v1012 = vrot.slane %v1005, %v1011
        %v1013 = vcombine.low %v783, %v784
        %v1015 = vunpack.c.l.s4 1983009808
        %v1016 = vunpack.c.0.s8 %v1015
        %v1017 = vlaneseq
        %v1018 = vshrl.u32 %v1017, 7
        %v1019 = vsub.s32 %v1016, %v1018
        %v1020 = vrot.slane %v1013, %v1019
        %v1021 = vcombine.low %v996, %v1004
        %v1022 = vcombine.high %v996, %v1004
        %v1024 = vunpack.c.l.s4 1934713408
        %v1025 = vunpack.c.0.s8 %v1024
        %v1026 = vlaneseq
        %v1027 = vshrl.u32 %v1026, 7
        %v1028 = vsub.s32 %v1025, %v1027
        %v1029 = vrot.slane %v1021, %v1028
        %v1031 = vunpack.c.l.s4 1934713408
        %v1032 = vunpack.c.0.s8 %v1031
        %v1033 = vlaneseq
        %v1034 = vshrl.u32 %v1033, 7
        %v1035 = vsub.s32 %v1032, %v1034
        %v1036 = vrot.slane %v1022, %v1035
        %v1037 = vcombine.low %v1012, %v1020
        %v1038 = vcombine.high %v1012, %v1020
        %v1040 = vunpack.c.l.s4 1934713408
        %v1041 = vunpack.c.0.s8 %v1040
        %v1042 = vlaneseq
        %v1043 = vshrl.u32 %v1042, 7
        %v1044 = vsub.s32 %v1041, %v1043
        %v1045 = vrot.slane %v1037, %v1044
        %v1047 = vunpack.c.l.s4 1934713408
        %v1048 = vunpack.c.0.s8 %v1047
        %v1049 = vlaneseq
        %v1050 = vshrl.u32 %v1049, 7
        %v1051 = vsub.s32 %v1048, %v1050
        %v1052 = vrot.slane %v1038, %v1051
        %v1053 = vcombine.low %v1029, %v1045
        %v1054 = vcombine.high %v1029, %v1045
        %v1055 = vcombine.low %v1036, %v1052
        %v1056 = vcombine.high %v1036, %v1052
        %v1057 = vcombine.low %v825, %v832
        %v1059 = vunpack.c.l.s4 1983009808
        %v1060 = vunpack.c.0.s8 %v1059
        %v1061 = vlaneseq
        %v1062 = vshrl.u32 %v1061, 7
        %v1063 = vsub.s32 %v1060, %v1062
        %v1064 = vrot.slane %v1057, %v1063
        %v1065 = vcombine.low %v849, %v850
        %v1067 = vunpack.c.l.s4 1983009808
        %v1068 = vunpack.c.0.s8 %v1067
        %v1069 = vlaneseq
        %v1070 = vshrl.u32 %v1069, 7
        %v1071 = vsub.s32 %v1068, %v1070
        %v1072 = vrot.slane %v1065, %v1071
        %v1073 = vcombine.low %v841, %v848
        %v1075 = vunpack.c.l.s4 1983009808
        %v1076 = vunpack.c.0.s8 %v1075
        %v1077 = vlaneseq
        %v1078 = vshrl.u32 %v1077, 7
        %v1079 = vsub.s32 %v1076, %v1078
        %v1080 = vrot.slane %v1073, %v1079
        %v1081 = vcombine.low %v851, %v852
        %v1083 = vunpack.c.l.s4 1983009808
        %v1084 = vunpack.c.0.s8 %v1083
        %v1085 = vlaneseq
        %v1086 = vshrl.u32 %v1085, 7
        %v1087 = vsub.s32 %v1084, %v1086
        %v1088 = vrot.slane %v1081, %v1087
        %v1089 = vcombine.low %v1064, %v1072
        %v1090 = vcombine.high %v1064, %v1072
        %v1092 = vunpack.c.l.s4 1934713408
        %v1093 = vunpack.c.0.s8 %v1092
        %v1094 = vlaneseq
        %v1095 = vshrl.u32 %v1094, 7
        %v1096 = vsub.s32 %v1093, %v1095
        %v1097 = vrot.slane %v1089, %v1096
        %v1099 = vunpack.c.l.s4 1934713408
        %v1100 = vunpack.c.0.s8 %v1099
        %v1101 = vlaneseq
        %v1102 = vshrl.u32 %v1101, 7
        %v1103 = vsub.s32 %v1100, %v1102
        %v1104 = vrot.slane %v1090, %v1103
        %v1105 = vcombine.low %v1080, %v1088
        %v1106 = vcombine.high %v1080, %v1088
        %v1108 = vunpack.c.l.s4 1934713408
        %v1109 = vunpack.c.0.s8 %v1108
        %v1110 = vlaneseq
        %v1111 = vshrl.u32 %v1110, 7
        %v1112 = vsub.s32 %v1109, %v1111
        %v1113 = vrot.slane %v1105, %v1112
        %v1115 = vunpack.c.l.s4 1934713408
        %v1116 = vunpack.c.0.s8 %v1115
        %v1117 = vlaneseq
        %v1118 = vshrl.u32 %v1117, 7
        %v1119 = vsub.s32 %v1116, %v1118
        %v1120 = vrot.slane %v1106, %v1119
        %v1121 = vcombine.low %v1097, %v1113
        %v1122 = vcombine.high %v1097, %v1113
        %v1123 = vcombine.low %v1104, %v1120
        %v1124 = vcombine.high %v1104, %v1120
        %1125 = vrot.lane.b32.xlu0 %v519, 64
        %v1126 = vpop.permute.xlu0 %1125
        %1127 = vrot.lane.b32.xlu0 %v525, 64
        %v1128 = vpop.permute.xlu0 %1127
        %1129 = vrot.lane.b32.xlu0 %v531, 64
        %v1130 = vpop.permute.xlu0 %1129
        %1131 = vrot.lane.b32.xlu0 %v537, 64
        %v1132 = vpop.permute.xlu0 %1131
        %1133 = vrot.lane.b32.xlu0 %v546, 64
        %v1134 = vpop.permute.xlu0 %1133
        %1135 = vrot.lane.b32.xlu0 %v548, 64
        %v1136 = vpop.permute.xlu0 %1135
        %1137 = vrot.lane.b32.xlu0 %v550, 64
        %v1138 = vpop.permute.xlu0 %1137
        %1139 = vrot.lane.b32.xlu0 %v552, 64
        %v1140 = vpop.permute.xlu0 %1139
        %1141 = vrot.lane.b32.xlu0 %v558, 64
        %v1142 = vpop.permute.xlu0 %1141
        %1143 = vrot.lane.b32.xlu0 %v560, 64
        %v1144 = vpop.permute.xlu0 %1143
        %1145 = vrot.lane.b32.xlu0 %v562, 64
        %v1146 = vpop.permute.xlu0 %1145
        %1147 = vrot.lane.b32.xlu0 %v564, 64
        %v1148 = vpop.permute.xlu0 %1147
        %1149 = vrot.lane.b32.xlu0 %v570, 64
        %v1150 = vpop.permute.xlu0 %1149
        %1151 = vrot.lane.b32.xlu0 %v572, 64
        %v1152 = vpop.permute.xlu0 %1151
        %1153 = vrot.lane.b32.xlu0 %v574, 64
        %v1154 = vpop.permute.xlu0 %1153
        %1155 = vrot.lane.b32.xlu0 %v576, 64
        %v1156 = vpop.permute.xlu0 %1155
        %v1173 = vcombine.low %v1126, %v1142
        %v1174 = vcombine.high %v1126, %v1142
        %v1176 = vunpack.c.l.s4 1983009808
        %v1177 = vunpack.c.0.s8 %v1176
        %v1178 = vlaneseq
        %v1179 = vshrl.u32 %v1178, 7
        %v1180 = vsub.s32 %v1177, %v1179
        %v1181 = vrot.slane %v1173, %v1180
        %v1183 = vunpack.c.l.s4 1983009808
        %v1184 = vunpack.c.0.s8 %v1183
        %v1185 = vlaneseq
        %v1186 = vshrl.u32 %v1185, 7
        %v1187 = vsub.s32 %v1184, %v1186
        %v1188 = vrot.slane %v1174, %v1187
        %v1189 = vcombine.low %v1134, %v1150
        %v1190 = vcombine.high %v1134, %v1150
        %v1192 = vunpack.c.l.s4 1983009808
        %v1193 = vunpack.c.0.s8 %v1192
        %v1194 = vlaneseq
        %v1195 = vshrl.u32 %v1194, 7
        %v1196 = vsub.s32 %v1193, %v1195
        %v1197 = vrot.slane %v1189, %v1196
        %v1199 = vunpack.c.l.s4 1983009808
        %v1200 = vunpack.c.0.s8 %v1199
        %v1201 = vlaneseq
        %v1202 = vshrl.u32 %v1201, 7
        %v1203 = vsub.s32 %v1200, %v1202
        %v1204 = vrot.slane %v1190, %v1203
        %v1205 = vcombine.low %v1181, %v1197
        %v1206 = vcombine.high %v1181, %v1197
        %v1208 = vunpack.c.l.s4 1934713408
        %v1209 = vunpack.c.0.s8 %v1208
        %v1210 = vlaneseq
        %v1211 = vshrl.u32 %v1210, 7
        %v1212 = vsub.s32 %v1209, %v1211
        %v1213 = vrot.slane %v1205, %v1212
        %v1215 = vunpack.c.l.s4 1934713408
        %v1216 = vunpack.c.0.s8 %v1215
        %v1217 = vlaneseq
        %v1218 = vshrl.u32 %v1217, 7
        %v1219 = vsub.s32 %v1216, %v1218
        %v1220 = vrot.slane %v1206, %v1219
        %v1221 = vcombine.low %v1188, %v1204
        %v1222 = vcombine.high %v1188, %v1204
        %v1224 = vunpack.c.l.s4 1934713408
        %v1225 = vunpack.c.0.s8 %v1224
        %v1226 = vlaneseq
        %v1227 = vshrl.u32 %v1226, 7
        %v1228 = vsub.s32 %v1225, %v1227
        %v1229 = vrot.slane %v1221, %v1228
        %v1231 = vunpack.c.l.s4 1934713408
        %v1232 = vunpack.c.0.s8 %v1231
        %v1233 = vlaneseq
        %v1234 = vshrl.u32 %v1233, 7
        %v1235 = vsub.s32 %v1232, %v1234
        %v1236 = vrot.slane %v1222, %v1235
        %v1237 = vcombine.high %v1213, 0.0
        %v1238 = vcombine.high %v1220, 0.0
        %v1239 = vcombine.high %v1229, 0.0
        %v1240 = vcombine.high %v1236, 0.0
        %v1241 = vcombine.low %v1128, %v1144
        %v1242 = vcombine.high %v1128, %v1144
        %v1244 = vunpack.c.l.s4 1983009808
        %v1245 = vunpack.c.0.s8 %v1244
        %v1246 = vlaneseq
        %v1247 = vshrl.u32 %v1246, 7
        %v1248 = vsub.s32 %v1245, %v1247
        %v1249 = vrot.slane %v1241, %v1248
        %v1251 = vunpack.c.l.s4 1983009808
        %v1252 = vunpack.c.0.s8 %v1251
        %v1253 = vlaneseq
        %v1254 = vshrl.u32 %v1253, 7
        %v1255 = vsub.s32 %v1252, %v1254
        %v1256 = vrot.slane %v1242, %v1255
        %v1257 = vcombine.low %v1136, %v1152
        %v1258 = vcombine.high %v1136, %v1152
        %v1260 = vunpack.c.l.s4 1983009808
        %v1261 = vunpack.c.0.s8 %v1260
        %v1262 = vlaneseq
        %v1263 = vshrl.u32 %v1262, 7
        %v1264 = vsub.s32 %v1261, %v1263
        %v1265 = vrot.slane %v1257, %v1264
        %v1267 = vunpack.c.l.s4 1983009808
        %v1268 = vunpack.c.0.s8 %v1267
        %v1269 = vlaneseq
        %v1270 = vshrl.u32 %v1269, 7
        %v1271 = vsub.s32 %v1268, %v1270
        %v1272 = vrot.slane %v1258, %v1271
        %v1273 = vcombine.low %v1249, %v1265
        %v1274 = vcombine.high %v1249, %v1265
        %v1276 = vunpack.c.l.s4 1934713408
        %v1277 = vunpack.c.0.s8 %v1276
        %v1278 = vlaneseq
        %v1279 = vshrl.u32 %v1278, 7
        %v1280 = vsub.s32 %v1277, %v1279
        %v1281 = vrot.slane %v1273, %v1280
        %v1283 = vunpack.c.l.s4 1934713408
        %v1284 = vunpack.c.0.s8 %v1283
        %v1285 = vlaneseq
        %v1286 = vshrl.u32 %v1285, 7
        %v1287 = vsub.s32 %v1284, %v1286
        %v1288 = vrot.slane %v1274, %v1287
        %v1289 = vcombine.low %v1256, %v1272
        %v1290 = vcombine.high %v1256, %v1272
        %v1292 = vunpack.c.l.s4 1934713408
        %v1293 = vunpack.c.0.s8 %v1292
        %v1294 = vlaneseq
        %v1295 = vshrl.u32 %v1294, 7
        %v1296 = vsub.s32 %v1293, %v1295
        %v1297 = vrot.slane %v1289, %v1296
        %v1299 = vunpack.c.l.s4 1934713408
        %v1300 = vunpack.c.0.s8 %v1299
        %v1301 = vlaneseq
        %v1302 = vshrl.u32 %v1301, 7
        %v1303 = vsub.s32 %v1300, %v1302
        %v1304 = vrot.slane %v1290, %v1303
        %v1305 = vcombine.high %v1281, 0.0
        %v1306 = vcombine.high %v1288, 0.0
        %v1307 = vcombine.high %v1297, 0.0
        %v1308 = vcombine.high %v1304, 0.0
        %v1309 = vcombine.low %v1130, %v1146
        %v1310 = vcombine.high %v1130, %v1146
        %v1312 = vunpack.c.l.s4 1983009808
        %v1313 = vunpack.c.0.s8 %v1312
        %v1314 = vlaneseq
        %v1315 = vshrl.u32 %v1314, 7
        %v1316 = vsub.s32 %v1313, %v1315
        %v1317 = vrot.slane %v1309, %v1316
        %v1319 = vunpack.c.l.s4 1983009808
        %v1320 = vunpack.c.0.s8 %v1319
        %v1321 = vlaneseq
        %v1322 = vshrl.u32 %v1321, 7
        %v1323 = vsub.s32 %v1320, %v1322
        %v1324 = vrot.slane %v1310, %v1323
        %v1325 = vcombine.low %v1138, %v1154
        %v1326 = vcombine.high %v1138, %v1154
        %v1328 = vunpack.c.l.s4 1983009808
        %v1329 = vunpack.c.0.s8 %v1328
        %v1330 = vlaneseq
        %v1331 = vshrl.u32 %v1330, 7
        %v1332 = vsub.s32 %v1329, %v1331
        %v1333 = vrot.slane %v1325, %v1332
        %v1335 = vunpack.c.l.s4 1983009808
        %v1336 = vunpack.c.0.s8 %v1335
        %v1337 = vlaneseq
        %v1338 = vshrl.u32 %v1337, 7
        %v1339 = vsub.s32 %v1336, %v1338
        %v1340 = vrot.slane %v1326, %v1339
        %v1341 = vcombine.low %v1317, %v1333
        %v1342 = vcombine.high %v1317, %v1333
        %v1344 = vunpack.c.l.s4 1934713408
        %v1345 = vunpack.c.0.s8 %v1344
        %v1346 = vlaneseq
        %v1347 = vshrl.u32 %v1346, 7
        %v1348 = vsub.s32 %v1345, %v1347
        %v1349 = vrot.slane %v1341, %v1348
        %v1351 = vunpack.c.l.s4 1934713408
        %v1352 = vunpack.c.0.s8 %v1351
        %v1353 = vlaneseq
        %v1354 = vshrl.u32 %v1353, 7
        %v1355 = vsub.s32 %v1352, %v1354
        %v1356 = vrot.slane %v1342, %v1355
        %v1357 = vcombine.low %v1324, %v1340
        %v1358 = vcombine.high %v1324, %v1340
        %v1360 = vunpack.c.l.s4 1934713408
        %v1361 = vunpack.c.0.s8 %v1360
        %v1362 = vlaneseq
        %v1363 = vshrl.u32 %v1362, 7
        %v1364 = vsub.s32 %v1361, %v1363
        %v1365 = vrot.slane %v1357, %v1364
        %v1367 = vunpack.c.l.s4 1934713408
        %v1368 = vunpack.c.0.s8 %v1367
        %v1369 = vlaneseq
        %v1370 = vshrl.u32 %v1369, 7
        %v1371 = vsub.s32 %v1368, %v1370
        %v1372 = vrot.slane %v1358, %v1371
        %v1373 = vcombine.high %v1349, 0.0
        %v1374 = vcombine.high %v1356, 0.0
        %v1375 = vcombine.high %v1365, 0.0
        %v1376 = vcombine.high %v1372, 0.0
        %v1377 = vcombine.low %v1132, %v1148
        %v1378 = vcombine.high %v1132, %v1148
        %v1380 = vunpack.c.l.s4 1983009808
        %v1381 = vunpack.c.0.s8 %v1380
        %v1382 = vlaneseq
        %v1383 = vshrl.u32 %v1382, 7
        %v1384 = vsub.s32 %v1381, %v1383
        %v1385 = vrot.slane %v1377, %v1384
        %v1387 = vunpack.c.l.s4 1983009808
        %v1388 = vunpack.c.0.s8 %v1387
        %v1389 = vlaneseq
        %v1390 = vshrl.u32 %v1389, 7
        %v1391 = vsub.s32 %v1388, %v1390
        %v1392 = vrot.slane %v1378, %v1391
        %v1393 = vcombine.low %v1140, %v1156
        %v1394 = vcombine.high %v1140, %v1156
        %v1396 = vunpack.c.l.s4 1983009808
        %v1397 = vunpack.c.0.s8 %v1396
        %v1398 = vlaneseq
        %v1399 = vshrl.u32 %v1398, 7
        %v1400 = vsub.s32 %v1397, %v1399
        %v1401 = vrot.slane %v1393, %v1400
        %v1403 = vunpack.c.l.s4 1983009808
        %v1404 = vunpack.c.0.s8 %v1403
        %v1405 = vlaneseq
        %v1406 = vshrl.u32 %v1405, 7
        %v1407 = vsub.s32 %v1404, %v1406
        %v1408 = vrot.slane %v1394, %v1407
        %v1409 = vcombine.low %v1385, %v1401
        %v1410 = vcombine.high %v1385, %v1401
        %v1412 = vunpack.c.l.s4 1934713408
        %v1413 = vunpack.c.0.s8 %v1412
        %v1414 = vlaneseq
        %v1415 = vshrl.u32 %v1414, 7
        %v1416 = vsub.s32 %v1413, %v1415
        %v1417 = vrot.slane %v1409, %v1416
        %v1419 = vunpack.c.l.s4 1934713408
        %v1420 = vunpack.c.0.s8 %v1419
        %v1421 = vlaneseq
        %v1422 = vshrl.u32 %v1421, 7
        %v1423 = vsub.s32 %v1420, %v1422
        %v1424 = vrot.slane %v1410, %v1423
        %v1425 = vcombine.low %v1392, %v1408
        %v1426 = vcombine.high %v1392, %v1408
        %v1428 = vunpack.c.l.s4 1934713408
        %v1429 = vunpack.c.0.s8 %v1428
        %v1430 = vlaneseq
        %v1431 = vshrl.u32 %v1430, 7
        %v1432 = vsub.s32 %v1429, %v1431
        %v1433 = vrot.slane %v1425, %v1432
        %v1435 = vunpack.c.l.s4 1934713408
        %v1436 = vunpack.c.0.s8 %v1435
        %v1437 = vlaneseq
        %v1438 = vshrl.u32 %v1437, 7
        %v1439 = vsub.s32 %v1436, %v1438
        %v1440 = vrot.slane %v1426, %v1439
        %v1441 = vcombine.high %v1417, 0.0
        %v1442 = vcombine.high %v1424, 0.0
        %v1443 = vcombine.high %v1433, 0.0
        %v1444 = vcombine.high %v1440, 0.0
        %v1445 = vcombine.low %v1213, %v1220
        %v1447 = vunpack.c.l.s4 1983009808
        %v1448 = vunpack.c.0.s8 %v1447
        %v1449 = vlaneseq
        %v1450 = vshrl.u32 %v1449, 7
        %v1451 = vsub.s32 %v1448, %v1450
        %v1452 = vrot.slane %v1445, %v1451
        %v1453 = vcombine.low %v1237, %v1238
        %v1455 = vunpack.c.l.s4 1983009808
        %v1456 = vunpack.c.0.s8 %v1455
        %v1457 = vlaneseq
        %v1458 = vshrl.u32 %v1457, 7
        %v1459 = vsub.s32 %v1456, %v1458
        %v1460 = vrot.slane %v1453, %v1459
        %v1461 = vcombine.low %v1229, %v1236
        %v1463 = vunpack.c.l.s4 1983009808
        %v1464 = vunpack.c.0.s8 %v1463
        %v1465 = vlaneseq
        %v1466 = vshrl.u32 %v1465, 7
        %v1467 = vsub.s32 %v1464, %v1466
        %v1468 = vrot.slane %v1461, %v1467
        %v1469 = vcombine.low %v1239, %v1240
        %v1471 = vunpack.c.l.s4 1983009808
        %v1472 = vunpack.c.0.s8 %v1471
        %v1473 = vlaneseq
        %v1474 = vshrl.u32 %v1473, 7
        %v1475 = vsub.s32 %v1472, %v1474
        %v1476 = vrot.slane %v1469, %v1475
        %v1477 = vcombine.low %v1452, %v1460
        %v1478 = vcombine.high %v1452, %v1460
        %v1480 = vunpack.c.l.s4 1934713408
        %v1481 = vunpack.c.0.s8 %v1480
        %v1482 = vlaneseq
        %v1483 = vshrl.u32 %v1482, 7
        %v1484 = vsub.s32 %v1481, %v1483
        %v1485 = vrot.slane %v1477, %v1484
        %v1487 = vunpack.c.l.s4 1934713408
        %v1488 = vunpack.c.0.s8 %v1487
        %v1489 = vlaneseq
        %v1490 = vshrl.u32 %v1489, 7
        %v1491 = vsub.s32 %v1488, %v1490
        %v1492 = vrot.slane %v1478, %v1491
        %v1493 = vcombine.low %v1468, %v1476
        %v1494 = vcombine.high %v1468, %v1476
        %v1496 = vunpack.c.l.s4 1934713408
        %v1497 = vunpack.c.0.s8 %v1496
        %v1498 = vlaneseq
        %v1499 = vshrl.u32 %v1498, 7
        %v1500 = vsub.s32 %v1497, %v1499
        %v1501 = vrot.slane %v1493, %v1500
        %v1503 = vunpack.c.l.s4 1934713408
        %v1504 = vunpack.c.0.s8 %v1503
        %v1505 = vlaneseq
        %v1506 = vshrl.u32 %v1505, 7
        %v1507 = vsub.s32 %v1504, %v1506
        %v1508 = vrot.slane %v1494, %v1507
        %v1509 = vcombine.low %v1485, %v1501
        %v1510 = vcombine.high %v1485, %v1501
        %v1511 = vcombine.low %v1492, %v1508
        %v1512 = vcombine.high %v1492, %v1508
        %v1513 = vcombine.low %v1281, %v1288
        %v1515 = vunpack.c.l.s4 1983009808
        %v1516 = vunpack.c.0.s8 %v1515
        %v1517 = vlaneseq
        %v1518 = vshrl.u32 %v1517, 7
        %v1519 = vsub.s32 %v1516, %v1518
        %v1520 = vrot.slane %v1513, %v1519
        %v1521 = vcombine.low %v1305, %v1306
        %v1523 = vunpack.c.l.s4 1983009808
        %v1524 = vunpack.c.0.s8 %v1523
        %v1525 = vlaneseq
        %v1526 = vshrl.u32 %v1525, 7
        %v1527 = vsub.s32 %v1524, %v1526
        %v1528 = vrot.slane %v1521, %v1527
        %v1529 = vcombine.low %v1297, %v1304
        %v1531 = vunpack.c.l.s4 1983009808
        %v1532 = vunpack.c.0.s8 %v1531
        %v1533 = vlaneseq
        %v1534 = vshrl.u32 %v1533, 7
        %v1535 = vsub.s32 %v1532, %v1534
        %v1536 = vrot.slane %v1529, %v1535
        %v1537 = vcombine.low %v1307, %v1308
        %v1539 = vunpack.c.l.s4 1983009808
        %v1540 = vunpack.c.0.s8 %v1539
        %v1541 = vlaneseq
        %v1542 = vshrl.u32 %v1541, 7
        %v1543 = vsub.s32 %v1540, %v1542
        %v1544 = vrot.slane %v1537, %v1543
        %v1545 = vcombine.low %v1520, %v1528
        %v1546 = vcombine.high %v1520, %v1528
        %v1548 = vunpack.c.l.s4 1934713408
        %v1549 = vunpack.c.0.s8 %v1548
        %v1550 = vlaneseq
        %v1551 = vshrl.u32 %v1550, 7
        %v1552 = vsub.s32 %v1549, %v1551
        %v1553 = vrot.slane %v1545, %v1552
        %v1555 = vunpack.c.l.s4 1934713408
        %v1556 = vunpack.c.0.s8 %v1555
        %v1557 = vlaneseq
        %v1558 = vshrl.u32 %v1557, 7
        %v1559 = vsub.s32 %v1556, %v1558
        %v1560 = vrot.slane %v1546, %v1559
        %v1561 = vcombine.low %v1536, %v1544
        %v1562 = vcombine.high %v1536, %v1544
        %v1564 = vunpack.c.l.s4 1934713408
        %v1565 = vunpack.c.0.s8 %v1564
        %v1566 = vlaneseq
        %v1567 = vshrl.u32 %v1566, 7
        %v1568 = vsub.s32 %v1565, %v1567
        %v1569 = vrot.slane %v1561, %v1568
        %v1571 = vunpack.c.l.s4 1934713408
        %v1572 = vunpack.c.0.s8 %v1571
        %v1573 = vlaneseq
        %v1574 = vshrl.u32 %v1573, 7
        %v1575 = vsub.s32 %v1572, %v1574
        %v1576 = vrot.slane %v1562, %v1575
        %v1577 = vcombine.low %v1553, %v1569
        %v1578 = vcombine.high %v1553, %v1569
        %v1579 = vcombine.low %v1560, %v1576
        %v1580 = vcombine.high %v1560, %v1576
        %v1581 = vcombine.low %v1349, %v1356
        %v1583 = vunpack.c.l.s4 1983009808
        %v1584 = vunpack.c.0.s8 %v1583
        %v1585 = vlaneseq
        %v1586 = vshrl.u32 %v1585, 7
        %v1587 = vsub.s32 %v1584, %v1586
        %v1588 = vrot.slane %v1581, %v1587
        %v1589 = vcombine.low %v1373, %v1374
        %v1591 = vunpack.c.l.s4 1983009808
        %v1592 = vunpack.c.0.s8 %v1591
        %v1593 = vlaneseq
        %v1594 = vshrl.u32 %v1593, 7
        %v1595 = vsub.s32 %v1592, %v1594
        %v1596 = vrot.slane %v1589, %v1595
        %v1597 = vcombine.low %v1365, %v1372
        %v1599 = vunpack.c.l.s4 1983009808
        %v1600 = vunpack.c.0.s8 %v1599
        %v1601 = vlaneseq
        %v1602 = vshrl.u32 %v1601, 7
        %v1603 = vsub.s32 %v1600, %v1602
        %v1604 = vrot.slane %v1597, %v1603
        %v1605 = vcombine.low %v1375, %v1376
        %v1607 = vunpack.c.l.s4 1983009808
        %v1608 = vunpack.c.0.s8 %v1607
        %v1609 = vlaneseq
        %v1610 = vshrl.u32 %v1609, 7
        %v1611 = vsub.s32 %v1608, %v1610
        %v1612 = vrot.slane %v1605, %v1611
        %v1613 = vcombine.low %v1588, %v1596
        %v1614 = vcombine.high %v1588, %v1596
        %v1616 = vunpack.c.l.s4 1934713408
        %v1617 = vunpack.c.0.s8 %v1616
        %v1618 = vlaneseq
        %v1619 = vshrl.u32 %v1618, 7
        %v1620 = vsub.s32 %v1617, %v1619
        %v1621 = vrot.slane %v1613, %v1620
        %v1623 = vunpack.c.l.s4 1934713408
        %v1624 = vunpack.c.0.s8 %v1623
        %v1625 = vlaneseq
        %v1626 = vshrl.u32 %v1625, 7
        %v1627 = vsub.s32 %v1624, %v1626
        %v1628 = vrot.slane %v1614, %v1627
        %v1629 = vcombine.low %v1604, %v1612
        %v1630 = vcombine.high %v1604, %v1612
        %v1632 = vunpack.c.l.s4 1934713408
        %v1633 = vunpack.c.0.s8 %v1632
        %v1634 = vlaneseq
        %v1635 = vshrl.u32 %v1634, 7
        %v1636 = vsub.s32 %v1633, %v1635
        %v1637 = vrot.slane %v1629, %v1636
        %v1639 = vunpack.c.l.s4 1934713408
        %v1640 = vunpack.c.0.s8 %v1639
        %v1641 = vlaneseq
        %v1642 = vshrl.u32 %v1641, 7
        %v1643 = vsub.s32 %v1640, %v1642
        %v1644 = vrot.slane %v1630, %v1643
        %v1645 = vcombine.low %v1621, %v1637
        %v1646 = vcombine.high %v1621, %v1637
        %v1647 = vcombine.low %v1628, %v1644
        %v1648 = vcombine.high %v1628, %v1644
        %v1649 = vcombine.low %v1417, %v1424
        %v1651 = vunpack.c.l.s4 1983009808
        %v1652 = vunpack.c.0.s8 %v1651
        %v1653 = vlaneseq
        %v1654 = vshrl.u32 %v1653, 7
        %v1655 = vsub.s32 %v1652, %v1654
        %v1656 = vrot.slane %v1649, %v1655
        %v1657 = vcombine.low %v1441, %v1442
        %v1659 = vunpack.c.l.s4 1983009808
        %v1660 = vunpack.c.0.s8 %v1659
        %v1661 = vlaneseq
        %v1662 = vshrl.u32 %v1661, 7
        %v1663 = vsub.s32 %v1660, %v1662
        %v1664 = vrot.slane %v1657, %v1663
        %v1665 = vcombine.low %v1433, %v1440
        %v1667 = vunpack.c.l.s4 1983009808
        %v1668 = vunpack.c.0.s8 %v1667
        %v1669 = vlaneseq
        %v1670 = vshrl.u32 %v1669, 7
        %v1671 = vsub.s32 %v1668, %v1670
        %v1672 = vrot.slane %v1665, %v1671
        %v1673 = vcombine.low %v1443, %v1444
        %v1675 = vunpack.c.l.s4 1983009808
        %v1676 = vunpack.c.0.s8 %v1675
        %v1677 = vlaneseq
        %v1678 = vshrl.u32 %v1677, 7
        %v1679 = vsub.s32 %v1676, %v1678
        %v1680 = vrot.slane %v1673, %v1679
        %v1681 = vcombine.low %v1656, %v1664
        %v1682 = vcombine.high %v1656, %v1664
        %v1684 = vunpack.c.l.s4 1934713408
        %v1685 = vunpack.c.0.s8 %v1684
        %v1686 = vlaneseq
        %v1687 = vshrl.u32 %v1686, 7
        %v1688 = vsub.s32 %v1685, %v1687
        %v1689 = vrot.slane %v1681, %v1688
        %v1691 = vunpack.c.l.s4 1934713408
        %v1692 = vunpack.c.0.s8 %v1691
        %v1693 = vlaneseq
        %v1694 = vshrl.u32 %v1693, 7
        %v1695 = vsub.s32 %v1692, %v1694
        %v1696 = vrot.slane %v1682, %v1695
        %v1697 = vcombine.low %v1672, %v1680
        %v1698 = vcombine.high %v1672, %v1680
        %v1700 = vunpack.c.l.s4 1934713408
        %v1701 = vunpack.c.0.s8 %v1700
        %v1702 = vlaneseq
        %v1703 = vshrl.u32 %v1702, 7
        %v1704 = vsub.s32 %v1701, %v1703
        %v1705 = vrot.slane %v1697, %v1704
        %v1707 = vunpack.c.l.s4 1934713408
        %v1708 = vunpack.c.0.s8 %v1707
        %v1709 = vlaneseq
        %v1710 = vshrl.u32 %v1709, 7
        %v1711 = vsub.s32 %v1708, %v1710
        %v1712 = vrot.slane %v1698, %v1711
        %v1713 = vcombine.low %v1689, %v1705
        %v1714 = vcombine.high %v1689, %v1705
        %v1715 = vcombine.low %v1696, %v1712
        %v1716 = vcombine.high %v1696, %v1712
        %1721 = vrot.lane.b32.xlu0 %v521, 112
        %v1722 = vpop.permute.xlu0 %1721
        %1723 = vrot.lane.b32.xlu0 %v527, 112
        %v1724 = vpop.permute.xlu0 %1723
        %1725 = vrot.lane.b32.xlu0 %v533, 112
        %v1726 = vpop.permute.xlu0 %1725
        %1727 = vrot.lane.b32.xlu0 %v539, 112
        %v1728 = vpop.permute.xlu0 %1727
        %1733 = vrot.lane.b32.xlu0 %v521, 96
        %v1734 = vpop.permute.xlu0 %1733
        %1735 = vrot.lane.b32.xlu0 %v527, 96
        %v1736 = vpop.permute.xlu0 %1735
        %1737 = vrot.lane.b32.xlu0 %v533, 96
        %v1738 = vpop.permute.xlu0 %1737
        %1739 = vrot.lane.b32.xlu0 %v539, 96
        %v1740 = vpop.permute.xlu0 %1739
        %1745 = vrot.lane.b32.xlu0 %v521, 80
        %v1746 = vpop.permute.xlu0 %1745
        %1747 = vrot.lane.b32.xlu0 %v527, 80
        %v1748 = vpop.permute.xlu0 %1747
        %1749 = vrot.lane.b32.xlu0 %v533, 80
        %v1750 = vpop.permute.xlu0 %1749
        %1751 = vrot.lane.b32.xlu0 %v539, 80
        %v1752 = vpop.permute.xlu0 %1751
        %v1757 = vcombine.low %v521, %v1734
        %v1758 = vcombine.high %v521, %v1734
        %v1760 = vunpack.c.l.s4 1983009808
        %v1761 = vunpack.c.0.s8 %v1760
        %v1762 = vlaneseq
        %v1763 = vshrl.u32 %v1762, 7
        %v1764 = vsub.s32 %v1761, %v1763
        %v1765 = vrot.slane %v1757, %v1764
        %v1767 = vunpack.c.l.s4 1983009808
        %v1768 = vunpack.c.0.s8 %v1767
        %v1769 = vlaneseq
        %v1770 = vshrl.u32 %v1769, 7
        %v1771 = vsub.s32 %v1768, %v1770
        %v1772 = vrot.slane %v1758, %v1771
        %v1773 = vcombine.low %v1722, %v1746
        %v1774 = vcombine.high %v1722, %v1746
        %v1776 = vunpack.c.l.s4 1983009808
        %v1777 = vunpack.c.0.s8 %v1776
        %v1778 = vlaneseq
        %v1779 = vshrl.u32 %v1778, 7
        %v1780 = vsub.s32 %v1777, %v1779
        %v1781 = vrot.slane %v1773, %v1780
        %v1783 = vunpack.c.l.s4 1983009808
        %v1784 = vunpack.c.0.s8 %v1783
        %v1785 = vlaneseq
        %v1786 = vshrl.u32 %v1785, 7
        %v1787 = vsub.s32 %v1784, %v1786
        %v1788 = vrot.slane %v1774, %v1787
        %v1789 = vcombine.low %v1765, %v1781
        %v1790 = vcombine.high %v1765, %v1781
        %v1792 = vunpack.c.l.s4 1934713408
        %v1793 = vunpack.c.0.s8 %v1792
        %v1794 = vlaneseq
        %v1795 = vshrl.u32 %v1794, 7
        %v1796 = vsub.s32 %v1793, %v1795
        %v1797 = vrot.slane %v1789, %v1796
        %v1799 = vunpack.c.l.s4 1934713408
        %v1800 = vunpack.c.0.s8 %v1799
        %v1801 = vlaneseq
        %v1802 = vshrl.u32 %v1801, 7
        %v1803 = vsub.s32 %v1800, %v1802
        %v1804 = vrot.slane %v1790, %v1803
        %v1805 = vcombine.low %v1772, %v1788
        %v1806 = vcombine.high %v1772, %v1788
        %v1808 = vunpack.c.l.s4 1934713408
        %v1809 = vunpack.c.0.s8 %v1808
        %v1810 = vlaneseq
        %v1811 = vshrl.u32 %v1810, 7
        %v1812 = vsub.s32 %v1809, %v1811
        %v1813 = vrot.slane %v1805, %v1812
        %v1815 = vunpack.c.l.s4 1934713408
        %v1816 = vunpack.c.0.s8 %v1815
        %v1817 = vlaneseq
        %v1818 = vshrl.u32 %v1817, 7
        %v1819 = vsub.s32 %v1816, %v1818
        %v1820 = vrot.slane %v1806, %v1819
        %v1821 = vcombine.high %v1797, 0.0
        %v1822 = vcombine.high %v1804, 0.0
        %v1823 = vcombine.high %v1813, 0.0
        %v1824 = vcombine.high %v1820, 0.0
        %v1825 = vcombine.low %v527, %v1736
        %v1826 = vcombine.high %v527, %v1736
        %v1828 = vunpack.c.l.s4 1983009808
        %v1829 = vunpack.c.0.s8 %v1828
        %v1830 = vlaneseq
        %v1831 = vshrl.u32 %v1830, 7
        %v1832 = vsub.s32 %v1829, %v1831
        %v1833 = vrot.slane %v1825, %v1832
        %v1835 = vunpack.c.l.s4 1983009808
        %v1836 = vunpack.c.0.s8 %v1835
        %v1837 = vlaneseq
        %v1838 = vshrl.u32 %v1837, 7
        %v1839 = vsub.s32 %v1836, %v1838
        %v1840 = vrot.slane %v1826, %v1839
        %v1841 = vcombine.low %v1724, %v1748
        %v1842 = vcombine.high %v1724, %v1748
        %v1844 = vunpack.c.l.s4 1983009808
        %v1845 = vunpack.c.0.s8 %v1844
        %v1846 = vlaneseq
        %v1847 = vshrl.u32 %v1846, 7
        %v1848 = vsub.s32 %v1845, %v1847
        %v1849 = vrot.slane %v1841, %v1848
        %v1851 = vunpack.c.l.s4 1983009808
        %v1852 = vunpack.c.0.s8 %v1851
        %v1853 = vlaneseq
        %v1854 = vshrl.u32 %v1853, 7
        %v1855 = vsub.s32 %v1852, %v1854
        %v1856 = vrot.slane %v1842, %v1855
        %v1857 = vcombine.low %v1833, %v1849
        %v1858 = vcombine.high %v1833, %v1849
        %v1860 = vunpack.c.l.s4 1934713408
        %v1861 = vunpack.c.0.s8 %v1860
        %v1862 = vlaneseq
        %v1863 = vshrl.u32 %v1862, 7
        %v1864 = vsub.s32 %v1861, %v1863
        %v1865 = vrot.slane %v1857, %v1864
        %v1867 = vunpack.c.l.s4 1934713408
        %v1868 = vunpack.c.0.s8 %v1867
        %v1869 = vlaneseq
        %v1870 = vshrl.u32 %v1869, 7
        %v1871 = vsub.s32 %v1868, %v1870
        %v1872 = vrot.slane %v1858, %v1871
        %v1873 = vcombine.low %v1840, %v1856
        %v1874 = vcombine.high %v1840, %v1856
        %v1876 = vunpack.c.l.s4 1934713408
        %v1877 = vunpack.c.0.s8 %v1876
        %v1878 = vlaneseq
        %v1879 = vshrl.u32 %v1878, 7
        %v1880 = vsub.s32 %v1877, %v1879
        %v1881 = vrot.slane %v1873, %v1880
        %v1883 = vunpack.c.l.s4 1934713408
        %v1884 = vunpack.c.0.s8 %v1883
        %v1885 = vlaneseq
        %v1886 = vshrl.u32 %v1885, 7
        %v1887 = vsub.s32 %v1884, %v1886
        %v1888 = vrot.slane %v1874, %v1887
        %v1889 = vcombine.high %v1865, 0.0
        %v1890 = vcombine.high %v1872, 0.0
        %v1891 = vcombine.high %v1881, 0.0
        %v1892 = vcombine.high %v1888, 0.0
        %v1893 = vcombine.low %v533, %v1738
        %v1894 = vcombine.high %v533, %v1738
        %v1896 = vunpack.c.l.s4 1983009808
        %v1897 = vunpack.c.0.s8 %v1896
        %v1898 = vlaneseq
        %v1899 = vshrl.u32 %v1898, 7
        %v1900 = vsub.s32 %v1897, %v1899
        %v1901 = vrot.slane %v1893, %v1900
        %v1903 = vunpack.c.l.s4 1983009808
        %v1904 = vunpack.c.0.s8 %v1903
        %v1905 = vlaneseq
        %v1906 = vshrl.u32 %v1905, 7
        %v1907 = vsub.s32 %v1904, %v1906
        %v1908 = vrot.slane %v1894, %v1907
        %v1909 = vcombine.low %v1726, %v1750
        %v1910 = vcombine.high %v1726, %v1750
        %v1912 = vunpack.c.l.s4 1983009808
        %v1913 = vunpack.c.0.s8 %v1912
        %v1914 = vlaneseq
        %v1915 = vshrl.u32 %v1914, 7
        %v1916 = vsub.s32 %v1913, %v1915
        %v1917 = vrot.slane %v1909, %v1916
        %v1919 = vunpack.c.l.s4 1983009808
        %v1920 = vunpack.c.0.s8 %v1919
        %v1921 = vlaneseq
        %v1922 = vshrl.u32 %v1921, 7
        %v1923 = vsub.s32 %v1920, %v1922
        %v1924 = vrot.slane %v1910, %v1923
        %v1925 = vcombine.low %v1901, %v1917
        %v1926 = vcombine.high %v1901, %v1917
        %v1928 = vunpack.c.l.s4 1934713408
        %v1929 = vunpack.c.0.s8 %v1928
        %v1930 = vlaneseq
        %v1931 = vshrl.u32 %v1930, 7
        %v1932 = vsub.s32 %v1929, %v1931
        %v1933 = vrot.slane %v1925, %v1932
        %v1935 = vunpack.c.l.s4 1934713408
        %v1936 = vunpack.c.0.s8 %v1935
        %v1937 = vlaneseq
        %v1938 = vshrl.u32 %v1937, 7
        %v1939 = vsub.s32 %v1936, %v1938
        %v1940 = vrot.slane %v1926, %v1939
        %v1941 = vcombine.low %v1908, %v1924
        %v1942 = vcombine.high %v1908, %v1924
        %v1944 = vunpack.c.l.s4 1934713408
        %v1945 = vunpack.c.0.s8 %v1944
        %v1946 = vlaneseq
        %v1947 = vshrl.u32 %v1946, 7
        %v1948 = vsub.s32 %v1945, %v1947
        %v1949 = vrot.slane %v1941, %v1948
        %v1951 = vunpack.c.l.s4 1934713408
        %v1952 = vunpack.c.0.s8 %v1951
        %v1953 = vlaneseq
        %v1954 = vshrl.u32 %v1953, 7
        %v1955 = vsub.s32 %v1952, %v1954
        %v1956 = vrot.slane %v1942, %v1955
        %v1957 = vcombine.high %v1933, 0.0
        %v1958 = vcombine.high %v1940, 0.0
        %v1959 = vcombine.high %v1949, 0.0
        %v1960 = vcombine.high %v1956, 0.0
        %v1961 = vcombine.low %v539, %v1740
        %v1962 = vcombine.high %v539, %v1740
        %v1964 = vunpack.c.l.s4 1983009808
        %v1965 = vunpack.c.0.s8 %v1964
        %v1966 = vlaneseq
        %v1967 = vshrl.u32 %v1966, 7
        %v1968 = vsub.s32 %v1965, %v1967
        %v1969 = vrot.slane %v1961, %v1968
        %v1971 = vunpack.c.l.s4 1983009808
        %v1972 = vunpack.c.0.s8 %v1971
        %v1973 = vlaneseq
        %v1974 = vshrl.u32 %v1973, 7
        %v1975 = vsub.s32 %v1972, %v1974
        %v1976 = vrot.slane %v1962, %v1975
        %v1977 = vcombine.low %v1728, %v1752
        %v1978 = vcombine.high %v1728, %v1752
        %v1980 = vunpack.c.l.s4 1983009808
        %v1981 = vunpack.c.0.s8 %v1980
        %v1982 = vlaneseq
        %v1983 = vshrl.u32 %v1982, 7
        %v1984 = vsub.s32 %v1981, %v1983
        %v1985 = vrot.slane %v1977, %v1984
        %v1987 = vunpack.c.l.s4 1983009808
        %v1988 = vunpack.c.0.s8 %v1987
        %v1989 = vlaneseq
        %v1990 = vshrl.u32 %v1989, 7
        %v1991 = vsub.s32 %v1988, %v1990
        %v1992 = vrot.slane %v1978, %v1991
        %v1993 = vcombine.low %v1969, %v1985
        %v1994 = vcombine.high %v1969, %v1985
        %v1996 = vunpack.c.l.s4 1934713408
        %v1997 = vunpack.c.0.s8 %v1996
        %v1998 = vlaneseq
        %v1999 = vshrl.u32 %v1998, 7
        %v2000 = vsub.s32 %v1997, %v1999
        %v2001 = vrot.slane %v1993, %v2000
        %v2003 = vunpack.c.l.s4 1934713408
        %v2004 = vunpack.c.0.s8 %v2003
        %v2005 = vlaneseq
        %v2006 = vshrl.u32 %v2005, 7
        %v2007 = vsub.s32 %v2004, %v2006
        %v2008 = vrot.slane %v1994, %v2007
        %v2009 = vcombine.low %v1976, %v1992
        %v2010 = vcombine.high %v1976, %v1992
        %v2012 = vunpack.c.l.s4 1934713408
        %v2013 = vunpack.c.0.s8 %v2012
        %v2014 = vlaneseq
        %v2015 = vshrl.u32 %v2014, 7
        %v2016 = vsub.s32 %v2013, %v2015
        %v2017 = vrot.slane %v2009, %v2016
        %v2019 = vunpack.c.l.s4 1934713408
        %v2020 = vunpack.c.0.s8 %v2019
        %v2021 = vlaneseq
        %v2022 = vshrl.u32 %v2021, 7
        %v2023 = vsub.s32 %v2020, %v2022
        %v2024 = vrot.slane %v2010, %v2023
        %v2025 = vcombine.high %v2001, 0.0
        %v2026 = vcombine.high %v2008, 0.0
        %v2027 = vcombine.high %v2017, 0.0
        %v2028 = vcombine.high %v2024, 0.0
        %v2029 = vcombine.low %v1797, %v1804
        %v2031 = vunpack.c.l.s4 1983009808
        %v2032 = vunpack.c.0.s8 %v2031
        %v2033 = vlaneseq
        %v2034 = vshrl.u32 %v2033, 7
        %v2035 = vsub.s32 %v2032, %v2034
        %v2036 = vrot.slane %v2029, %v2035
        %v2037 = vcombine.low %v1821, %v1822
        %v2039 = vunpack.c.l.s4 1983009808
        %v2040 = vunpack.c.0.s8 %v2039
        %v2041 = vlaneseq
        %v2042 = vshrl.u32 %v2041, 7
        %v2043 = vsub.s32 %v2040, %v2042
        %v2044 = vrot.slane %v2037, %v2043
        %v2045 = vcombine.low %v1813, %v1820
        %v2047 = vunpack.c.l.s4 1983009808
        %v2048 = vunpack.c.0.s8 %v2047
        %v2049 = vlaneseq
        %v2050 = vshrl.u32 %v2049, 7
        %v2051 = vsub.s32 %v2048, %v2050
        %v2052 = vrot.slane %v2045, %v2051
        %v2053 = vcombine.low %v1823, %v1824
        %v2055 = vunpack.c.l.s4 1983009808
        %v2056 = vunpack.c.0.s8 %v2055
        %v2057 = vlaneseq
        %v2058 = vshrl.u32 %v2057, 7
        %v2059 = vsub.s32 %v2056, %v2058
        %v2060 = vrot.slane %v2053, %v2059
        %v2061 = vcombine.low %v2036, %v2044
        %v2062 = vcombine.high %v2036, %v2044
        %v2064 = vunpack.c.l.s4 1934713408
        %v2065 = vunpack.c.0.s8 %v2064
        %v2066 = vlaneseq
        %v2067 = vshrl.u32 %v2066, 7
        %v2068 = vsub.s32 %v2065, %v2067
        %v2069 = vrot.slane %v2061, %v2068
        %v2071 = vunpack.c.l.s4 1934713408
        %v2072 = vunpack.c.0.s8 %v2071
        %v2073 = vlaneseq
        %v2074 = vshrl.u32 %v2073, 7
        %v2075 = vsub.s32 %v2072, %v2074
        %v2076 = vrot.slane %v2062, %v2075
        %v2077 = vcombine.low %v2052, %v2060
        %v2078 = vcombine.high %v2052, %v2060
        %v2080 = vunpack.c.l.s4 1934713408
        %v2081 = vunpack.c.0.s8 %v2080
        %v2082 = vlaneseq
        %v2083 = vshrl.u32 %v2082, 7
        %v2084 = vsub.s32 %v2081, %v2083
        %v2085 = vrot.slane %v2077, %v2084
        %v2087 = vunpack.c.l.s4 1934713408
        %v2088 = vunpack.c.0.s8 %v2087
        %v2089 = vlaneseq
        %v2090 = vshrl.u32 %v2089, 7
        %v2091 = vsub.s32 %v2088, %v2090
        %v2092 = vrot.slane %v2078, %v2091
        %v2093 = vcombine.low %v2069, %v2085
        %v2094 = vcombine.high %v2069, %v2085
        %v2095 = vcombine.low %v2076, %v2092
        %v2096 = vcombine.high %v2076, %v2092
        %v2097 = vcombine.low %v1865, %v1872
        %v2099 = vunpack.c.l.s4 1983009808
        %v2100 = vunpack.c.0.s8 %v2099
        %v2101 = vlaneseq
        %v2102 = vshrl.u32 %v2101, 7
        %v2103 = vsub.s32 %v2100, %v2102
        %v2104 = vrot.slane %v2097, %v2103
        %v2105 = vcombine.low %v1889, %v1890
        %v2107 = vunpack.c.l.s4 1983009808
        %v2108 = vunpack.c.0.s8 %v2107
        %v2109 = vlaneseq
        %v2110 = vshrl.u32 %v2109, 7
        %v2111 = vsub.s32 %v2108, %v2110
        %v2112 = vrot.slane %v2105, %v2111
        %v2113 = vcombine.low %v1881, %v1888
        %v2115 = vunpack.c.l.s4 1983009808
        %v2116 = vunpack.c.0.s8 %v2115
        %v2117 = vlaneseq
        %v2118 = vshrl.u32 %v2117, 7
        %v2119 = vsub.s32 %v2116, %v2118
        %v2120 = vrot.slane %v2113, %v2119
        %v2121 = vcombine.low %v1891, %v1892
        %v2123 = vunpack.c.l.s4 1983009808
        %v2124 = vunpack.c.0.s8 %v2123
        %v2125 = vlaneseq
        %v2126 = vshrl.u32 %v2125, 7
        %v2127 = vsub.s32 %v2124, %v2126
        %v2128 = vrot.slane %v2121, %v2127
        %v2129 = vcombine.low %v2104, %v2112
        %v2130 = vcombine.high %v2104, %v2112
        %v2132 = vunpack.c.l.s4 1934713408
        %v2133 = vunpack.c.0.s8 %v2132
        %v2134 = vlaneseq
        %v2135 = vshrl.u32 %v2134, 7
        %v2136 = vsub.s32 %v2133, %v2135
        %v2137 = vrot.slane %v2129, %v2136
        %v2139 = vunpack.c.l.s4 1934713408
        %v2140 = vunpack.c.0.s8 %v2139
        %v2141 = vlaneseq
        %v2142 = vshrl.u32 %v2141, 7
        %v2143 = vsub.s32 %v2140, %v2142
        %v2144 = vrot.slane %v2130, %v2143
        %v2145 = vcombine.low %v2120, %v2128
        %v2146 = vcombine.high %v2120, %v2128
        %v2148 = vunpack.c.l.s4 1934713408
        %v2149 = vunpack.c.0.s8 %v2148
        %v2150 = vlaneseq
        %v2151 = vshrl.u32 %v2150, 7
        %v2152 = vsub.s32 %v2149, %v2151
        %v2153 = vrot.slane %v2145, %v2152
        %v2155 = vunpack.c.l.s4 1934713408
        %v2156 = vunpack.c.0.s8 %v2155
        %v2157 = vlaneseq
        %v2158 = vshrl.u32 %v2157, 7
        %v2159 = vsub.s32 %v2156, %v2158
        %v2160 = vrot.slane %v2146, %v2159
        %v2161 = vcombine.low %v2137, %v2153
        %v2162 = vcombine.high %v2137, %v2153
        %v2163 = vcombine.low %v2144, %v2160
        %v2164 = vcombine.high %v2144, %v2160
        %v2165 = vcombine.low %v1933, %v1940
        %v2167 = vunpack.c.l.s4 1983009808
        %v2168 = vunpack.c.0.s8 %v2167
        %v2169 = vlaneseq
        %v2170 = vshrl.u32 %v2169, 7
        %v2171 = vsub.s32 %v2168, %v2170
        %v2172 = vrot.slane %v2165, %v2171
        %v2173 = vcombine.low %v1957, %v1958
        %v2175 = vunpack.c.l.s4 1983009808
        %v2176 = vunpack.c.0.s8 %v2175
        %v2177 = vlaneseq
        %v2178 = vshrl.u32 %v2177, 7
        %v2179 = vsub.s32 %v2176, %v2178
        %v2180 = vrot.slane %v2173, %v2179
        %v2181 = vcombine.low %v1949, %v1956
        %v2183 = vunpack.c.l.s4 1983009808
        %v2184 = vunpack.c.0.s8 %v2183
        %v2185 = vlaneseq
        %v2186 = vshrl.u32 %v2185, 7
        %v2187 = vsub.s32 %v2184, %v2186
        %v2188 = vrot.slane %v2181, %v2187
        %v2189 = vcombine.low %v1959, %v1960
        %v2191 = vunpack.c.l.s4 1983009808
        %v2192 = vunpack.c.0.s8 %v2191
        %v2193 = vlaneseq
        %v2194 = vshrl.u32 %v2193, 7
        %v2195 = vsub.s32 %v2192, %v2194
        %v2196 = vrot.slane %v2189, %v2195
        %v2197 = vcombine.low %v2172, %v2180
        %v2198 = vcombine.high %v2172, %v2180
        %v2200 = vunpack.c.l.s4 1934713408
        %v2201 = vunpack.c.0.s8 %v2200
        %v2202 = vlaneseq
        %v2203 = vshrl.u32 %v2202, 7
        %v2204 = vsub.s32 %v2201, %v2203
        %v2205 = vrot.slane %v2197, %v2204
        %v2207 = vunpack.c.l.s4 1934713408
        %v2208 = vunpack.c.0.s8 %v2207
        %v2209 = vlaneseq
        %v2210 = vshrl.u32 %v2209, 7
        %v2211 = vsub.s32 %v2208, %v2210
        %v2212 = vrot.slane %v2198, %v2211
        %v2213 = vcombine.low %v2188, %v2196
        %v2214 = vcombine.high %v2188, %v2196
        %v2216 = vunpack.c.l.s4 1934713408
        %v2217 = vunpack.c.0.s8 %v2216
        %v2218 = vlaneseq
        %v2219 = vshrl.u32 %v2218, 7
        %v2220 = vsub.s32 %v2217, %v2219
        %v2221 = vrot.slane %v2213, %v2220
        %v2223 = vunpack.c.l.s4 1934713408
        %v2224 = vunpack.c.0.s8 %v2223
        %v2225 = vlaneseq
        %v2226 = vshrl.u32 %v2225, 7
        %v2227 = vsub.s32 %v2224, %v2226
        %v2228 = vrot.slane %v2214, %v2227
        %v2229 = vcombine.low %v2205, %v2221
        %v2230 = vcombine.high %v2205, %v2221
        %v2231 = vcombine.low %v2212, %v2228
        %v2232 = vcombine.high %v2212, %v2228
        %v2233 = vcombine.low %v2001, %v2008
        %v2235 = vunpack.c.l.s4 1983009808
        %v2236 = vunpack.c.0.s8 %v2235
        %v2237 = vlaneseq
        %v2238 = vshrl.u32 %v2237, 7
        %v2239 = vsub.s32 %v2236, %v2238
        %v2240 = vrot.slane %v2233, %v2239
        %v2241 = vcombine.low %v2025, %v2026
        %v2243 = vunpack.c.l.s4 1983009808
        %v2244 = vunpack.c.0.s8 %v2243
        %v2245 = vlaneseq
        %v2246 = vshrl.u32 %v2245, 7
        %v2247 = vsub.s32 %v2244, %v2246
        %v2248 = vrot.slane %v2241, %v2247
        %v2249 = vcombine.low %v2017, %v2024
        %v2251 = vunpack.c.l.s4 1983009808
        %v2252 = vunpack.c.0.s8 %v2251
        %v2253 = vlaneseq
        %v2254 = vshrl.u32 %v2253, 7
        %v2255 = vsub.s32 %v2252, %v2254
        %v2256 = vrot.slane %v2249, %v2255
        %v2257 = vcombine.low %v2027, %v2028
        %v2259 = vunpack.c.l.s4 1983009808
        %v2260 = vunpack.c.0.s8 %v2259
        %v2261 = vlaneseq
        %v2262 = vshrl.u32 %v2261, 7
        %v2263 = vsub.s32 %v2260, %v2262
        %v2264 = vrot.slane %v2257, %v2263
        %v2265 = vcombine.low %v2240, %v2248
        %v2266 = vcombine.high %v2240, %v2248
        %v2268 = vunpack.c.l.s4 1934713408
        %v2269 = vunpack.c.0.s8 %v2268
        %v2270 = vlaneseq
        %v2271 = vshrl.u32 %v2270, 7
        %v2272 = vsub.s32 %v2269, %v2271
        %v2273 = vrot.slane %v2265, %v2272
        %v2275 = vunpack.c.l.s4 1934713408
        %v2276 = vunpack.c.0.s8 %v2275
        %v2277 = vlaneseq
        %v2278 = vshrl.u32 %v2277, 7
        %v2279 = vsub.s32 %v2276, %v2278
        %v2280 = vrot.slane %v2266, %v2279
        %v2281 = vcombine.low %v2256, %v2264
        %v2282 = vcombine.high %v2256, %v2264
        %v2284 = vunpack.c.l.s4 1934713408
        %v2285 = vunpack.c.0.s8 %v2284
        %v2286 = vlaneseq
        %v2287 = vshrl.u32 %v2286, 7
        %v2288 = vsub.s32 %v2285, %v2287
        %v2289 = vrot.slane %v2281, %v2288
        %v2291 = vunpack.c.l.s4 1934713408
        %v2292 = vunpack.c.0.s8 %v2291
        %v2293 = vlaneseq
        %v2294 = vshrl.u32 %v2293, 7
        %v2295 = vsub.s32 %v2292, %v2294
        %v2296 = vrot.slane %v2282, %v2295
        %v2297 = vcombine.low %v2273, %v2289
        %v2298 = vcombine.high %v2273, %v2289
        %v2299 = vcombine.low %v2280, %v2296
        %v2300 = vcombine.high %v2280, %v2296
        %vm2301 = vcmask 130048
        %v2303 = vsel %vm2301, %v917, 0
        %v2306 = vsel %vm2301, %v985, 0
        %v2309 = vsel %vm2301, %v1509, 0
        %v2312 = vsel %vm2301, %v1577, 0
        %2314 = vmatprep.subr.mxu0 0.0
        %2315 = vmatpush1.xpose.msra.mxu0 %v2309
        %2316 = vmatprep.subr.mxu0 0.0
        %2317 = vmatpush1.xpose.msra.mxu0 %v2312
        %2318 = vmatprep.subr.mxu0 0.0
        %2319 = vmatpush1.xpose.msra.mxu0 0.0
        %2320 = vmatprep.subr.mxu0 0.0
        %2321 = vmatpush1.xpose.msra.mxu0 0.0
        %2322 = vmatprep.subr.mxu0 0.0
        %2323 = vmatpush1.xpose.msra.mxu0 0.0
        %2324 = vmatprep.subr.mxu0 0.0
        %2325 = vmatpush1.xpose.msra.mxu0 0.0
        %2326 = vmatprep.subr.mxu0 0.0
        %2327 = vmatpush1.xpose.msra.mxu0 0.0
        %2328 = vmatprep.subr.mxu0 0.0
        %2329 = vmatpush1.xpose.msra.mxu0 0.0
        %2330 = vmatprep.subr.mxu0 0.0
        %2331 = vmatpush1.xpose.msra.mxu0 0.0
        %2332 = vmatprep.subr.mxu0 0.0
        %2333 = vmatpush1.xpose.msra.mxu0 0.0
        %2334 = vmatprep.subr.mxu0 0.0
        %2335 = vmatpush1.xpose.msra.mxu0 0.0
        %2336 = vmatprep.subr.mxu0 0.0
        %2337 = vmatpush1.xpose.msra.mxu0 0.0
        %2338 = vmatprep.subr.mxu0 0.0
        %2339 = vmatpush1.xpose.msra.mxu0 0.0
        %2340 = vmatprep.subr.mxu0 0.0
        %2341 = vmatpush1.xpose.msra.mxu0 0.0
        %2342 = vmatprep.subr.mxu0 0.0
        %2343 = vmatpush1.xpose.msra.mxu0 0.0
        %2344 = vmatprep.subr.mxu0 0.0
        %2345 = vmatpush1.xpose.msra.mxu0 0.0
        %2346 = vmatprep.subr.mxu0 0.0
        %2347 = vmatpush1.xpose.msra.mxu0 0.0
        %2348 = vmatprep.subr.mxu0 0.0
        %2349 = vmatpush1.xpose.msra.mxu0 0.0
        %2350 = vmatprep.subr.mxu0 0.0
        %2351 = vmatpush1.xpose.msra.mxu0 0.0
        %2352 = vmatprep.subr.mxu0 0.0
        %2353 = vmatpush1.xpose.msra.mxu0 0.0
        %2354 = vmatprep.subr.mxu0 0.0
        %2355 = vmatpush1.xpose.msra.mxu0 0.0
        %2356 = vmatprep.subr.mxu0 0.0
        %2357 = vmatpush1.xpose.msra.mxu0 0.0
        %2358 = vmatprep.subr.mxu0 0.0
        %2359 = vmatpush1.xpose.msra.mxu0 0.0
        %2360 = vmatprep.subr.mxu0 0.0
        %2361 = vmatpush1.xpose.msra.mxu0 0.0
        %2362 = vmatprep.subr.mxu0 0.0
        %2363 = vmatpush1.xpose.msra.mxu0 0.0
        %2364 = vmatprep.subr.mxu0 0.0
        %2365 = vmatpush1.xpose.msra.mxu0 0.0
        %2366 = vmatprep.subr.mxu0 0.0
        %2367 = vmatpush1.xpose.msra.mxu0 0.0
        %2368 = vmatprep.subr.mxu0 0.0
        %2369 = vmatpush1.xpose.msra.mxu0 0.0
        %2370 = vmatprep.subr.mxu0 0.0
        %2371 = vmatpush1.xpose.msra.mxu0 0.0
        %2372 = vmatprep.subr.mxu0 0.0
        %2373 = vmatpush1.xpose.msra.mxu0 0.0
        %2374 = vmatprep.subr.mxu0 0.0
        %2375 = vmatpush1.xpose.msra.mxu0 0.0
        %2376 = vmatprep.subr.mxu0 0.0
        %2377 = vmatpush1.xpose.msra.mxu0 0.0
        %2378 = vmatprep.mubr.f32.mxu0 0.0
        %2379 = vmatmul.mubr.f32.gmra.mrb[0].mxu0 %v2303
        %v2380 = vpop.f32.mrb[0].mxu0
        %v2381 = vadd.f32 0.0, %v2380
        %v2382 = vpop.f32.mrb[0].mxu0
        %2383 = vmatprep.mubr.f32.mxu0 0.0
        %2384 = vmatmul.mubr.f32.gmra.mrb[0].mxu0 %v2306
        %v2385 = vpop.f32.mrb[0].mxu0
        %v2386 = vadd.f32 0.0, %v2385
        %v2387 = vpop.f32.mrb[0].mxu0
        %2388 = vdwg.mxu0
        %v2390 = vsel %vm2301, %v1053, 0
        %v2393 = vsel %vm2301, %v1121, 0
        %v2396 = vsel %vm2301, %v1645, 0
        %v2399 = vsel %vm2301, %v1713, 0
        %2401 = vmatprep.subr.mxu0 0.0
        %2402 = vmatpush1.xpose.msra.mxu0 %v2396
        %2403 = vmatprep.subr.mxu0 0.0
        %2404 = vmatpush1.xpose.msra.mxu0 %v2399
        %2405 = vmatprep.subr.mxu0 0.0
        %2406 = vmatpush1.xpose.msra.mxu0 0.0
        %2407 = vmatprep.subr.mxu0 0.0
        %2408 = vmatpush1.xpose.msra.mxu0 0.0
        %2409 = vmatprep.subr.mxu0 0.0
        %2410 = vmatpush1.xpose.msra.mxu0 0.0
        %2411 = vmatprep.subr.mxu0 0.0
        %2412 = vmatpush1.xpose.msra.mxu0 0.0
        %2413 = vmatprep.subr.mxu0 0.0
        %2414 = vmatpush1.xpose.msra.mxu0 0.0
        %2415 = vmatprep.subr.mxu0 0.0
        %2416 = vmatpush1.xpose.msra.mxu0 0.0
        %2417 = vmatprep.subr.mxu0 0.0
        %2418 = vmatpush1.xpose.msra.mxu0 0.0
        %2419 = vmatprep.subr.mxu0 0.0
        %2420 = vmatpush1.xpose.msra.mxu0 0.0
        %2421 = vmatprep.subr.mxu0 0.0
        %2422 = vmatpush1.xpose.msra.mxu0 0.0
        %2423 = vmatprep.subr.mxu0 0.0
        %2424 = vmatpush1.xpose.msra.mxu0 0.0
        %2425 = vmatprep.subr.mxu0 0.0
        %2426 = vmatpush1.xpose.msra.mxu0 0.0
        %2427 = vmatprep.subr.mxu0 0.0
        %2428 = vmatpush1.xpose.msra.mxu0 0.0
        %2429 = vmatprep.subr.mxu0 0.0
        %2430 = vmatpush1.xpose.msra.mxu0 0.0
        %2431 = vmatprep.subr.mxu0 0.0
        %2432 = vmatpush1.xpose.msra.mxu0 0.0
        %2433 = vmatprep.subr.mxu0 0.0
        %2434 = vmatpush1.xpose.msra.mxu0 0.0
        %2435 = vmatprep.subr.mxu0 0.0
        %2436 = vmatpush1.xpose.msra.mxu0 0.0
        %2437 = vmatprep.subr.mxu0 0.0
        %2438 = vmatpush1.xpose.msra.mxu0 0.0
        %2439 = vmatprep.subr.mxu0 0.0
        %2440 = vmatpush1.xpose.msra.mxu0 0.0
        %2441 = vmatprep.subr.mxu0 0.0
        %2442 = vmatpush1.xpose.msra.mxu0 0.0
        %2443 = vmatprep.subr.mxu0 0.0
        %2444 = vmatpush1.xpose.msra.mxu0 0.0
        %2445 = vmatprep.subr.mxu0 0.0
        %2446 = vmatpush1.xpose.msra.mxu0 0.0
        %2447 = vmatprep.subr.mxu0 0.0
        %2448 = vmatpush1.xpose.msra.mxu0 0.0
        %2449 = vmatprep.subr.mxu0 0.0
        %2450 = vmatpush1.xpose.msra.mxu0 0.0
        %2451 = vmatprep.subr.mxu0 0.0
        %2452 = vmatpush1.xpose.msra.mxu0 0.0
        %2453 = vmatprep.subr.mxu0 0.0
        %2454 = vmatpush1.xpose.msra.mxu0 0.0
        %2455 = vmatprep.subr.mxu0 0.0
        %2456 = vmatpush1.xpose.msra.mxu0 0.0
        %2457 = vmatprep.subr.mxu0 0.0
        %2458 = vmatpush1.xpose.msra.mxu0 0.0
        %2459 = vmatprep.subr.mxu0 0.0
        %2460 = vmatpush1.xpose.msra.mxu0 0.0
        %2461 = vmatprep.subr.mxu0 0.0
        %2462 = vmatpush1.xpose.msra.mxu0 0.0
        %2463 = vmatprep.subr.mxu0 0.0
        %2464 = vmatpush1.xpose.msra.mxu0 0.0
        %2465 = vmatprep.mubr.f32.mxu0 0.0
        %2466 = vmatmul.mubr.f32.gmra.mrb[0].mxu0 %v2390
        %v2467 = vpop.f32.mrb[0].mxu0
        %v2468 = vadd.f32 0.0, %v2467
        %v2469 = vpop.f32.mrb[0].mxu0
        %2470 = vmatprep.mubr.f32.mxu0 0.0
        %2471 = vmatmul.mubr.f32.gmra.mrb[0].mxu0 %v2393
        %v2472 = vpop.f32.mrb[0].mxu0
        %v2473 = vadd.f32 0.0, %v2472
        %v2474 = vpop.f32.mrb[0].mxu0
        %2475 = vdwg.mxu0
        %v2477 = vsel %vm2301, %v918, 0
        %v2480 = vsel %vm2301, %v986, 0
        %v2483 = vsel %vm2301, %v1510, 0
        %v2486 = vsel %vm2301, %v1578, 0
        %2488 = vmatprep.subr.mxu0 0.0
        %2489 = vmatpush1.xpose.msra.mxu0 %v2483
        %2490 = vmatprep.subr.mxu0 0.0
        %2491 = vmatpush1.xpose.msra.mxu0 %v2486
        %2492 = vmatprep.subr.mxu0 0.0
        %2493 = vmatpush1.xpose.msra.mxu0 0.0
        %2494 = vmatprep.subr.mxu0 0.0
        %2495 = vmatpush1.xpose.msra.mxu0 0.0
        %2496 = vmatprep.subr.mxu0 0.0
        %2497 = vmatpush1.xpose.msra.mxu0 0.0
        %2498 = vmatprep.subr.mxu0 0.0
        %2499 = vmatpush1.xpose.msra.mxu0 0.0
        %2500 = vmatprep.subr.mxu0 0.0
        %2501 = vmatpush1.xpose.msra.mxu0 0.0
        %2502 = vmatprep.subr.mxu0 0.0
        %2503 = vmatpush1.xpose.msra.mxu0 0.0
        %2504 = vmatprep.subr.mxu0 0.0
        %2505 = vmatpush1.xpose.msra.mxu0 0.0
        %2506 = vmatprep.subr.mxu0 0.0
        %2507 = vmatpush1.xpose.msra.mxu0 0.0
        %2508 = vmatprep.subr.mxu0 0.0
        %2509 = vmatpush1.xpose.msra.mxu0 0.0
        %2510 = vmatprep.subr.mxu0 0.0
        %2511 = vmatpush1.xpose.msra.mxu0 0.0
        %2512 = vmatprep.subr.mxu0 0.0
        %2513 = vmatpush1.xpose.msra.mxu0 0.0
        %2514 = vmatprep.subr.mxu0 0.0
        %2515 = vmatpush1.xpose.msra.mxu0 0.0
        %2516 = vmatprep.subr.mxu0 0.0
        %2517 = vmatpush1.xpose.msra.mxu0 0.0
        %2518 = vmatprep.subr.mxu0 0.0
        %2519 = vmatpush1.xpose.msra.mxu0 0.0
        %2520 = vmatprep.subr.mxu0 0.0
        %2521 = vmatpush1.xpose.msra.mxu0 0.0
        %2522 = vmatprep.subr.mxu0 0.0
        %2523 = vmatpush1.xpose.msra.mxu0 0.0
        %2524 = vmatprep.subr.mxu0 0.0
        %2525 = vmatpush1.xpose.msra.mxu0 0.0
        %2526 = vmatprep.subr.mxu0 0.0
        %2527 = vmatpush1.xpose.msra.mxu0 0.0
        %2528 = vmatprep.subr.mxu0 0.0
        %2529 = vmatpush1.xpose.msra.mxu0 0.0
        %2530 = vmatprep.subr.mxu0 0.0
        %2531 = vmatpush1.xpose.msra.mxu0 0.0
        %2532 = vmatprep.subr.mxu0 0.0
        %2533 = vmatpush1.xpose.msra.mxu0 0.0
        %2534 = vmatprep.subr.mxu0 0.0
        %2535 = vmatpush1.xpose.msra.mxu0 0.0
        %2536 = vmatprep.subr.mxu0 0.0
        %2537 = vmatpush1.xpose.msra.mxu0 0.0
        %2538 = vmatprep.subr.mxu0 0.0
        %2539 = vmatpush1.xpose.msra.mxu0 0.0
        %2540 = vmatprep.subr.mxu0 0.0
        %2541 = vmatpush1.xpose.msra.mxu0 0.0
        %2542 = vmatprep.subr.mxu0 0.0
        %2543 = vmatpush1.xpose.msra.mxu0 0.0
        %2544 = vmatprep.subr.mxu0 0.0
        %2545 = vmatpush1.xpose.msra.mxu0 0.0
        %2546 = vmatprep.subr.mxu0 0.0
        %2547 = vmatpush1.xpose.msra.mxu0 0.0
        %2548 = vmatprep.subr.mxu0 0.0
        %2549 = vmatpush1.xpose.msra.mxu0 0.0
        %2550 = vmatprep.subr.mxu0 0.0
        %2551 = vmatpush1.xpose.msra.mxu0 0.0
        %2552 = vmatprep.mubr.f32.mxu0 0.0
        %2553 = vmatmul.mubr.f32.gmra.mrb[0].mxu0 %v2477
        %v2554 = vpop.f32.mrb[0].mxu0
        %v2555 = vadd.f32 0.0, %v2554
        %v2556 = vpop.f32.mrb[0].mxu0
        %2557 = vmatprep.mubr.f32.mxu0 0.0
        %2558 = vmatmul.mubr.f32.gmra.mrb[0].mxu0 %v2480
        %v2559 = vpop.f32.mrb[0].mxu0
        %v2560 = vadd.f32 0.0, %v2559
        %v2561 = vpop.f32.mrb[0].mxu0
        %2562 = vdwg.mxu0
        %v2564 = vsel %vm2301, %v1054, 0
        %v2567 = vsel %vm2301, %v1122, 0
        %v2570 = vsel %vm2301, %v1646, 0
        %v2573 = vsel %vm2301, %v1714, 0
        %2575 = vmatprep.subr.mxu0 0.0
        %2576 = vmatpush1.xpose.msra.mxu0 %v2570
        %2577 = vmatprep.subr.mxu0 0.0
        %2578 = vmatpush1.xpose.msra.mxu0 %v2573
        %2579 = vmatprep.subr.mxu0 0.0
        %2580 = vmatpush1.xpose.msra.mxu0 0.0
        %2581 = vmatprep.subr.mxu0 0.0
        %2582 = vmatpush1.xpose.msra.mxu0 0.0
        %2583 = vmatprep.subr.mxu0 0.0
        %2584 = vmatpush1.xpose.msra.mxu0 0.0
        %2585 = vmatprep.subr.mxu0 0.0
        %2586 = vmatpush1.xpose.msra.mxu0 0.0
        %2587 = vmatprep.subr.mxu0 0.0
        %2588 = vmatpush1.xpose.msra.mxu0 0.0
        %2589 = vmatprep.subr.mxu0 0.0
        %2590 = vmatpush1.xpose.msra.mxu0 0.0
        %2591 = vmatprep.subr.mxu0 0.0
        %2592 = vmatpush1.xpose.msra.mxu0 0.0
        %2593 = vmatprep.subr.mxu0 0.0
        %2594 = vmatpush1.xpose.msra.mxu0 0.0
        %2595 = vmatprep.subr.mxu0 0.0
        %2596 = vmatpush1.xpose.msra.mxu0 0.0
        %2597 = vmatprep.subr.mxu0 0.0
        %2598 = vmatpush1.xpose.msra.mxu0 0.0
        %2599 = vmatprep.subr.mxu0 0.0
        %2600 = vmatpush1.xpose.msra.mxu0 0.0
        %2601 = vmatprep.subr.mxu0 0.0
        %2602 = vmatpush1.xpose.msra.mxu0 0.0
        %2603 = vmatprep.subr.mxu0 0.0
        %2604 = vmatpush1.xpose.msra.mxu0 0.0
        %2605 = vmatprep.subr.mxu0 0.0
        %2606 = vmatpush1.xpose.msra.mxu0 0.0
        %2607 = vmatprep.subr.mxu0 0.0
        %2608 = vmatpush1.xpose.msra.mxu0 0.0
        %2609 = vmatprep.subr.mxu0 0.0
        %2610 = vmatpush1.xpose.msra.mxu0 0.0
        %2611 = vmatprep.subr.mxu0 0.0
        %2612 = vmatpush1.xpose.msra.mxu0 0.0
        %2613 = vmatprep.subr.mxu0 0.0
        %2614 = vmatpush1.xpose.msra.mxu0 0.0
        %2615 = vmatprep.subr.mxu0 0.0
        %2616 = vmatpush1.xpose.msra.mxu0 0.0
        %2617 = vmatprep.subr.mxu0 0.0
        %2618 = vmatpush1.xpose.msra.mxu0 0.0
        %2619 = vmatprep.subr.mxu0 0.0
        %2620 = vmatpush1.xpose.msra.mxu0 0.0
        %2621 = vmatprep.subr.mxu0 0.0
        %2622 = vmatpush1.xpose.msra.mxu0 0.0
        %2623 = vmatprep.subr.mxu0 0.0
        %2624 = vmatpush1.xpose.msra.mxu0 0.0
        %2625 = vmatprep.subr.mxu0 0.0
        %2626 = vmatpush1.xpose.msra.mxu0 0.0
        %2627 = vmatprep.subr.mxu0 0.0
        %2628 = vmatpush1.xpose.msra.mxu0 0.0
        %2629 = vmatprep.subr.mxu0 0.0
        %2630 = vmatpush1.xpose.msra.mxu0 0.0
        %2631 = vmatprep.subr.mxu0 0.0
        %2632 = vmatpush1.xpose.msra.mxu0 0.0
        %2633 = vmatprep.subr.mxu0 0.0
        %2634 = vmatpush1.xpose.msra.mxu0 0.0
        %2635 = vmatprep.subr.mxu0 0.0
        %2636 = vmatpush1.xpose.msra.mxu0 0.0
        %2637 = vmatprep.subr.mxu0 0.0
        %2638 = vmatpush1.xpose.msra.mxu0 0.0
        %2639 = vmatprep.mubr.f32.mxu0 0.0
        %2640 = vmatmul.mubr.f32.gmra.mrb[0].mxu0 %v2564
        %v2641 = vpop.f32.mrb[0].mxu0
        %v2642 = vadd.f32 0.0, %v2641
        %v2643 = vpop.f32.mrb[0].mxu0
        %2644 = vmatprep.mubr.f32.mxu0 0.0
        %2645 = vmatmul.mubr.f32.gmra.mrb[0].mxu0 %v2567
        %v2646 = vpop.f32.mrb[0].mxu0
        %v2647 = vadd.f32 0.0, %v2646
        %v2648 = vpop.f32.mrb[0].mxu0
        %2649 = vdwg.mxu0
        %v2651 = vsel %vm2301, %v919, 0
        %v2654 = vsel %vm2301, %v987, 0
        %v2657 = vsel %vm2301, %v1511, 0
        %v2660 = vsel %vm2301, %v1579, 0
        %2662 = vmatprep.subr.mxu0 0.0
        %2663 = vmatpush1.xpose.msra.mxu0 %v2657
        %2664 = vmatprep.subr.mxu0 0.0
        %2665 = vmatpush1.xpose.msra.mxu0 %v2660
        %2666 = vmatprep.subr.mxu0 0.0
        %2667 = vmatpush1.xpose.msra.mxu0 0.0
        %2668 = vmatprep.subr.mxu0 0.0
        %2669 = vmatpush1.xpose.msra.mxu0 0.0
        %2670 = vmatprep.subr.mxu0 0.0
        %2671 = vmatpush1.xpose.msra.mxu0 0.0
        %2672 = vmatprep.subr.mxu0 0.0
        %2673 = vmatpush1.xpose.msra.mxu0 0.0
        %2674 = vmatprep.subr.mxu0 0.0
        %2675 = vmatpush1.xpose.msra.mxu0 0.0
        %2676 = vmatprep.subr.mxu0 0.0
        %2677 = vmatpush1.xpose.msra.mxu0 0.0
        %2678 = vmatprep.subr.mxu0 0.0
        %2679 = vmatpush1.xpose.msra.mxu0 0.0
        %2680 = vmatprep.subr.mxu0 0.0
        %2681 = vmatpush1.xpose.msra.mxu0 0.0
        %2682 = vmatprep.subr.mxu0 0.0
        %2683 = vmatpush1.xpose.msra.mxu0 0.0
        %2684 = vmatprep.subr.mxu0 0.0
        %2685 = vmatpush1.xpose.msra.mxu0 0.0
        %2686 = vmatprep.subr.mxu0 0.0
        %2687 = vmatpush1.xpose.msra.mxu0 0.0
        %2688 = vmatprep.subr.mxu0 0.0
        %2689 = vmatpush1.xpose.msra.mxu0 0.0
        %2690 = vmatprep.subr.mxu0 0.0
        %2691 = vmatpush1.xpose.msra.mxu0 0.0
        %2692 = vmatprep.subr.mxu0 0.0
        %2693 = vmatpush1.xpose.msra.mxu0 0.0
        %2694 = vmatprep.subr.mxu0 0.0
        %2695 = vmatpush1.xpose.msra.mxu0 0.0
        %2696 = vmatprep.subr.mxu0 0.0
        %2697 = vmatpush1.xpose.msra.mxu0 0.0
        %2698 = vmatprep.subr.mxu0 0.0
        %2699 = vmatpush1.xpose.msra.mxu0 0.0
        %2700 = vmatprep.subr.mxu0 0.0
        %2701 = vmatpush1.xpose.msra.mxu0 0.0
        %2702 = vmatprep.subr.mxu0 0.0
        %2703 = vmatpush1.xpose.msra.mxu0 0.0
        %2704 = vmatprep.subr.mxu0 0.0
        %2705 = vmatpush1.xpose.msra.mxu0 0.0
        %2706 = vmatprep.subr.mxu0 0.0
        %2707 = vmatpush1.xpose.msra.mxu0 0.0
        %2708 = vmatprep.subr.mxu0 0.0
        %2709 = vmatpush1.xpose.msra.mxu0 0.0
        %2710 = vmatprep.subr.mxu0 0.0
        %2711 = vmatpush1.xpose.msra.mxu0 0.0
        %2712 = vmatprep.subr.mxu0 0.0
        %2713 = vmatpush1.xpose.msra.mxu0 0.0
        %2714 = vmatprep.subr.mxu0 0.0
        %2715 = vmatpush1.xpose.msra.mxu0 0.0
        %2716 = vmatprep.subr.mxu0 0.0
        %2717 = vmatpush1.xpose.msra.mxu0 0.0
        %2718 = vmatprep.subr.mxu0 0.0
        %2719 = vmatpush1.xpose.msra.mxu0 0.0
        %2720 = vmatprep.subr.mxu0 0.0
        %2721 = vmatpush1.xpose.msra.mxu0 0.0
        %2722 = vmatprep.subr.mxu0 0.0
        %2723 = vmatpush1.xpose.msra.mxu0 0.0
        %2724 = vmatprep.subr.mxu0 0.0
        %2725 = vmatpush1.xpose.msra.mxu0 0.0
        %2726 = vmatprep.mubr.f32.mxu0 0.0
        %2727 = vmatmul.mubr.f32.gmra.mrb[0].mxu0 %v2651
        %v2728 = vpop.f32.mrb[0].mxu0
        %v2729 = vadd.f32 0.0, %v2728
        %v2730 = vpop.f32.mrb[0].mxu0
        %2731 = vmatprep.mubr.f32.mxu0 0.0
        %2732 = vmatmul.mubr.f32.gmra.mrb[0].mxu0 %v2654
        %v2733 = vpop.f32.mrb[0].mxu0
        %v2734 = vadd.f32 0.0, %v2733
        %v2735 = vpop.f32.mrb[0].mxu0
        %2736 = vdwg.mxu0
        %v2738 = vsel %vm2301, %v1055, 0
        %v2741 = vsel %vm2301, %v1123, 0
        %v2744 = vsel %vm2301, %v1647, 0
        %v2747 = vsel %vm2301, %v1715, 0
        %2749 = vmatprep.subr.mxu0 0.0
        %2750 = vmatpush1.xpose.msra.mxu0 %v2744
        %2751 = vmatprep.subr.mxu0 0.0
        %2752 = vmatpush1.xpose.msra.mxu0 %v2747
        %2753 = vmatprep.subr.mxu0 0.0
        %2754 = vmatpush1.xpose.msra.mxu0 0.0
        %2755 = vmatprep.subr.mxu0 0.0
        %2756 = vmatpush1.xpose.msra.mxu0 0.0
        %2757 = vmatprep.subr.mxu0 0.0
        %2758 = vmatpush1.xpose.msra.mxu0 0.0
        %2759 = vmatprep.subr.mxu0 0.0
        %2760 = vmatpush1.xpose.msra.mxu0 0.0
        %2761 = vmatprep.subr.mxu0 0.0
        %2762 = vmatpush1.xpose.msra.mxu0 0.0
        %2763 = vmatprep.subr.mxu0 0.0
        %2764 = vmatpush1.xpose.msra.mxu0 0.0
        %2765 = vmatprep.subr.mxu0 0.0
        %2766 = vmatpush1.xpose.msra.mxu0 0.0
        %2767 = vmatprep.subr.mxu0 0.0
        %2768 = vmatpush1.xpose.msra.mxu0 0.0
        %2769 = vmatprep.subr.mxu0 0.0
        %2770 = vmatpush1.xpose.msra.mxu0 0.0
        %2771 = vmatprep.subr.mxu0 0.0
        %2772 = vmatpush1.xpose.msra.mxu0 0.0
        %2773 = vmatprep.subr.mxu0 0.0
        %2774 = vmatpush1.xpose.msra.mxu0 0.0
        %2775 = vmatprep.subr.mxu0 0.0
        %2776 = vmatpush1.xpose.msra.mxu0 0.0
        %2777 = vmatprep.subr.mxu0 0.0
        %2778 = vmatpush1.xpose.msra.mxu0 0.0
        %2779 = vmatprep.subr.mxu0 0.0
        %2780 = vmatpush1.xpose.msra.mxu0 0.0
        %2781 = vmatprep.subr.mxu0 0.0
        %2782 = vmatpush1.xpose.msra.mxu0 0.0
        %2783 = vmatprep.subr.mxu0 0.0
        %2784 = vmatpush1.xpose.msra.mxu0 0.0
        %2785 = vmatprep.subr.mxu0 0.0
        %2786 = vmatpush1.xpose.msra.mxu0 0.0
        %2787 = vmatprep.subr.mxu0 0.0
        %2788 = vmatpush1.xpose.msra.mxu0 0.0
        %2789 = vmatprep.subr.mxu0 0.0
        %2790 = vmatpush1.xpose.msra.mxu0 0.0
        %2791 = vmatprep.subr.mxu0 0.0
        %2792 = vmatpush1.xpose.msra.mxu0 0.0
        %2793 = vmatprep.subr.mxu0 0.0
        %2794 = vmatpush1.xpose.msra.mxu0 0.0
        %2795 = vmatprep.subr.mxu0 0.0
        %2796 = vmatpush1.xpose.msra.mxu0 0.0
        %2797 = vmatprep.subr.mxu0 0.0
        %2798 = vmatpush1.xpose.msra.mxu0 0.0
        %2799 = vmatprep.subr.mxu0 0.0
        %2800 = vmatpush1.xpose.msra.mxu0 0.0
        %2801 = vmatprep.subr.mxu0 0.0
        %2802 = vmatpush1.xpose.msra.mxu0 0.0
        %2803 = vmatprep.subr.mxu0 0.0
        %2804 = vmatpush1.xpose.msra.mxu0 0.0
        %2805 = vmatprep.subr.mxu0 0.0
        %2806 = vmatpush1.xpose.msra.mxu0 0.0
        %2807 = vmatprep.subr.mxu0 0.0
        %2808 = vmatpush1.xpose.msra.mxu0 0.0
        %2809 = vmatprep.subr.mxu0 0.0
        %2810 = vmatpush1.xpose.msra.mxu0 0.0
        %2811 = vmatprep.subr.mxu0 0.0
        %2812 = vmatpush1.xpose.msra.mxu0 0.0
        %2813 = vmatprep.mubr.f32.mxu0 0.0
        %2814 = vmatmul.mubr.f32.gmra.mrb[0].mxu0 %v2738
        %v2815 = vpop.f32.mrb[0].mxu0
        %v2816 = vadd.f32 0.0, %v2815
        %v2817 = vpop.f32.mrb[0].mxu0
        %2818 = vmatprep.mubr.f32.mxu0 0.0
        %2819 = vmatmul.mubr.f32.gmra.mrb[0].mxu0 %v2741
        %v2820 = vpop.f32.mrb[0].mxu0
        %v2821 = vadd.f32 0.0, %v2820
        %v2822 = vpop.f32.mrb[0].mxu0
        %2823 = vdwg.mxu0
        %v2825 = vsel %vm2301, %v920, 0
        %v2828 = vsel %vm2301, %v988, 0
        %v2831 = vsel %vm2301, %v1512, 0
        %v2834 = vsel %vm2301, %v1580, 0
        %2836 = vmatprep.subr.mxu0 0.0
        %2837 = vmatpush1.xpose.msra.mxu0 %v2831
        %2838 = vmatprep.subr.mxu0 0.0
        %2839 = vmatpush1.xpose.msra.mxu0 %v2834
        %2840 = vmatprep.subr.mxu0 0.0
        %2841 = vmatpush1.xpose.msra.mxu0 0.0
        %2842 = vmatprep.subr.mxu0 0.0
        %2843 = vmatpush1.xpose.msra.mxu0 0.0
        %2844 = vmatprep.subr.mxu0 0.0
        %2845 = vmatpush1.xpose.msra.mxu0 0.0
        %2846 = vmatprep.subr.mxu0 0.0
        %2847 = vmatpush1.xpose.msra.mxu0 0.0
        %2848 = vmatprep.subr.mxu0 0.0
        %2849 = vmatpush1.xpose.msra.mxu0 0.0
        %2850 = vmatprep.subr.mxu0 0.0
        %2851 = vmatpush1.xpose.msra.mxu0 0.0
        %2852 = vmatprep.subr.mxu0 0.0
        %2853 = vmatpush1.xpose.msra.mxu0 0.0
        %2854 = vmatprep.subr.mxu0 0.0
        %2855 = vmatpush1.xpose.msra.mxu0 0.0
        %2856 = vmatprep.subr.mxu0 0.0
        %2857 = vmatpush1.xpose.msra.mxu0 0.0
        %2858 = vmatprep.subr.mxu0 0.0
        %2859 = vmatpush1.xpose.msra.mxu0 0.0
        %2860 = vmatprep.subr.mxu0 0.0
        %2861 = vmatpush1.xpose.msra.mxu0 0.0
        %2862 = vmatprep.subr.mxu0 0.0
        %2863 = vmatpush1.xpose.msra.mxu0 0.0
        %2864 = vmatprep.subr.mxu0 0.0
        %2865 = vmatpush1.xpose.msra.mxu0 0.0
        %2866 = vmatprep.subr.mxu0 0.0
        %2867 = vmatpush1.xpose.msra.mxu0 0.0
        %2868 = vmatprep.subr.mxu0 0.0
        %2869 = vmatpush1.xpose.msra.mxu0 0.0
        %2870 = vmatprep.subr.mxu0 0.0
        %2871 = vmatpush1.xpose.msra.mxu0 0.0
        %2872 = vmatprep.subr.mxu0 0.0
        %2873 = vmatpush1.xpose.msra.mxu0 0.0
        %2874 = vmatprep.subr.mxu0 0.0
        %2875 = vmatpush1.xpose.msra.mxu0 0.0
        %2876 = vmatprep.subr.mxu0 0.0
        %2877 = vmatpush1.xpose.msra.mxu0 0.0
        %2878 = vmatprep.subr.mxu0 0.0
        %2879 = vmatpush1.xpose.msra.mxu0 0.0
        %2880 = vmatprep.subr.mxu0 0.0
        %2881 = vmatpush1.xpose.msra.mxu0 0.0
        %2882 = vmatprep.subr.mxu0 0.0
        %2883 = vmatpush1.xpose.msra.mxu0 0.0
        %2884 = vmatprep.subr.mxu0 0.0
        %2885 = vmatpush1.xpose.msra.mxu0 0.0
        %2886 = vmatprep.subr.mxu0 0.0
        %2887 = vmatpush1.xpose.msra.mxu0 0.0
        %2888 = vmatprep.subr.mxu0 0.0
        %2889 = vmatpush1.xpose.msra.mxu0 0.0
        %2890 = vmatprep.subr.mxu0 0.0
        %2891 = vmatpush1.xpose.msra.mxu0 0.0
        %2892 = vmatprep.subr.mxu0 0.0
        %2893 = vmatpush1.xpose.msra.mxu0 0.0
        %2894 = vmatprep.subr.mxu0 0.0
        %2895 = vmatpush1.xpose.msra.mxu0 0.0
        %2896 = vmatprep.subr.mxu0 0.0
        %2897 = vmatpush1.xpose.msra.mxu0 0.0
        %2898 = vmatprep.subr.mxu0 0.0
        %2899 = vmatpush1.xpose.msra.mxu0 0.0
        %2900 = vmatprep.mubr.f32.mxu0 0.0
        %2901 = vmatmul.mubr.f32.gmra.mrb[0].mxu0 %v2825
        %v2902 = vpop.f32.mrb[0].mxu0
        %v2903 = vadd.f32 0.0, %v2902
        %v2904 = vpop.f32.mrb[0].mxu0
        %2905 = vmatprep.mubr.f32.mxu0 0.0
        %2906 = vmatmul.mubr.f32.gmra.mrb[0].mxu0 %v2828
        %v2907 = vpop.f32.mrb[0].mxu0
        %v2908 = vadd.f32 0.0, %v2907
        %v2909 = vpop.f32.mrb[0].mxu0
        %2910 = vdwg.mxu0
        %v2912 = vsel %vm2301, %v1056, 0
        %v2915 = vsel %vm2301, %v1124, 0
        %v2918 = vsel %vm2301, %v1648, 0
        %v2921 = vsel %vm2301, %v1716, 0
        %2923 = vmatprep.subr.mxu0 0.0
        %2924 = vmatpush1.xpose.msra.mxu0 %v2918
        %2925 = vmatprep.subr.mxu0 0.0
        %2926 = vmatpush1.xpose.msra.mxu0 %v2921
        %2927 = vmatprep.subr.mxu0 0.0
        %2928 = vmatpush1.xpose.msra.mxu0 0.0
        %2929 = vmatprep.subr.mxu0 0.0
        %2930 = vmatpush1.xpose.msra.mxu0 0.0
        %2931 = vmatprep.subr.mxu0 0.0
        %2932 = vmatpush1.xpose.msra.mxu0 0.0
        %2933 = vmatprep.subr.mxu0 0.0
        %2934 = vmatpush1.xpose.msra.mxu0 0.0
        %2935 = vmatprep.subr.mxu0 0.0
        %2936 = vmatpush1.xpose.msra.mxu0 0.0
        %2937 = vmatprep.subr.mxu0 0.0
        %2938 = vmatpush1.xpose.msra.mxu0 0.0
        %2939 = vmatprep.subr.mxu0 0.0
        %2940 = vmatpush1.xpose.msra.mxu0 0.0
        %2941 = vmatprep.subr.mxu0 0.0
        %2942 = vmatpush1.xpose.msra.mxu0 0.0
        %2943 = vmatprep.subr.mxu0 0.0
        %2944 = vmatpush1.xpose.msra.mxu0 0.0
        %2945 = vmatprep.subr.mxu0 0.0
        %2946 = vmatpush1.xpose.msra.mxu0 0.0
        %2947 = vmatprep.subr.mxu0 0.0
        %2948 = vmatpush1.xpose.msra.mxu0 0.0
        %2949 = vmatprep.subr.mxu0 0.0
        %2950 = vmatpush1.xpose.msra.mxu0 0.0
        %2951 = vmatprep.subr.mxu0 0.0
        %2952 = vmatpush1.xpose.msra.mxu0 0.0
        %2953 = vmatprep.subr.mxu0 0.0
        %2954 = vmatpush1.xpose.msra.mxu0 0.0
        %2955 = vmatprep.subr.mxu0 0.0
        %2956 = vmatpush1.xpose.msra.mxu0 0.0
        %2957 = vmatprep.subr.mxu0 0.0
        %2958 = vmatpush1.xpose.msra.mxu0 0.0
        %2959 = vmatprep.subr.mxu0 0.0
        %2960 = vmatpush1.xpose.msra.mxu0 0.0
        %2961 = vmatprep.subr.mxu0 0.0
        %2962 = vmatpush1.xpose.msra.mxu0 0.0
        %2963 = vmatprep.subr.mxu0 0.0
        %2964 = vmatpush1.xpose.msra.mxu0 0.0
        %2965 = vmatprep.subr.mxu0 0.0
        %2966 = vmatpush1.xpose.msra.mxu0 0.0
        %2967 = vmatprep.subr.mxu0 0.0
        %2968 = vmatpush1.xpose.msra.mxu0 0.0
        %2969 = vmatprep.subr.mxu0 0.0
        %2970 = vmatpush1.xpose.msra.mxu0 0.0
        %2971 = vmatprep.subr.mxu0 0.0
        %2972 = vmatpush1.xpose.msra.mxu0 0.0
        %2973 = vmatprep.subr.mxu0 0.0
        %2974 = vmatpush1.xpose.msra.mxu0 0.0
        %2975 = vmatprep.subr.mxu0 0.0
        %2976 = vmatpush1.xpose.msra.mxu0 0.0
        %2977 = vmatprep.subr.mxu0 0.0
        %2978 = vmatpush1.xpose.msra.mxu0 0.0
        %2979 = vmatprep.subr.mxu0 0.0
        %2980 = vmatpush1.xpose.msra.mxu0 0.0
        %2981 = vmatprep.subr.mxu0 0.0
        %2982 = vmatpush1.xpose.msra.mxu0 0.0
        %2983 = vmatprep.subr.mxu0 0.0
        %2984 = vmatpush1.xpose.msra.mxu0 0.0
        %2985 = vmatprep.subr.mxu0 0.0
        %2986 = vmatpush1.xpose.msra.mxu0 0.0
        %2987 = vmatprep.mubr.f32.mxu0 0.0
        %2988 = vmatmul.mubr.f32.gmra.mrb[0].mxu0 %v2912
        %v2989 = vpop.f32.mrb[0].mxu0
        %v2990 = vadd.f32 0.0, %v2989
        %v2991 = vpop.f32.mrb[0].mxu0
        %2992 = vmatprep.mubr.f32.mxu0 0.0
        %2993 = vmatmul.mubr.f32.gmra.mrb[0].mxu0 %v2915
        %v2994 = vpop.f32.mrb[0].mxu0
        %v2995 = vadd.f32 0.0, %v2994
        %v2996 = vpop.f32.mrb[0].mxu0
        %2997 = vdwg.mxu0
        %v2998 = vsel %vm2301, %v2381, -inf
        %2999 = vmax.xlane.f32.xlu0 %v2998
        %v3000 = vpop.xlane.xlu0 %2999
        %v3001 = vsel %vm2301, %v2386, -inf
        %3002 = vmax.xlane.f32.xlu0 %v3001
        %v3003 = vpop.xlane.xlu0 %3002
        %v3004 = vsel %vm2301, %v2468, -inf
        %3005 = vmax.xlane.f32.xlu0 %v3004
        %v3006 = vpop.xlane.xlu0 %3005
        %v3007 = vsel %vm2301, %v2473, -inf
        %3008 = vmax.xlane.f32.xlu0 %v3007
        %v3009 = vpop.xlane.xlu0 %3008
        %v3010 = vsel %vm2301, %v2555, -inf
        %3011 = vmax.xlane.f32.xlu0 %v3010
        %v3012 = vpop.xlane.xlu0 %3011
        %v3013 = vsel %vm2301, %v2560, -inf
        %3014 = vmax.xlane.f32.xlu0 %v3013
        %v3015 = vpop.xlane.xlu0 %3014
        %v3016 = vsel %vm2301, %v2642, -inf
        %3017 = vmax.xlane.f32.xlu0 %v3016
        %v3018 = vpop.xlane.xlu0 %3017
        %v3019 = vsel %vm2301, %v2647, -inf
        %3020 = vmax.xlane.f32.xlu0 %v3019
        %v3021 = vpop.xlane.xlu0 %3020
        %v3022 = vsel %vm2301, %v2729, -inf
        %3023 = vmax.xlane.f32.xlu0 %v3022
        %v3024 = vpop.xlane.xlu0 %3023
        %v3025 = vsel %vm2301, %v2734, -inf
        %3026 = vmax.xlane.f32.xlu0 %v3025
        %v3027 = vpop.xlane.xlu0 %3026
        %v3028 = vsel %vm2301, %v2816, -inf
        %3029 = vmax.xlane.f32.xlu0 %v3028
        %v3030 = vpop.xlane.xlu0 %3029
        %v3031 = vsel %vm2301, %v2821, -inf
        %3032 = vmax.xlane.f32.xlu0 %v3031
        %v3033 = vpop.xlane.xlu0 %3032
        %v3034 = vsel %vm2301, %v2903, -inf
        %3035 = vmax.xlane.f32.xlu0 %v3034
        %v3036 = vpop.xlane.xlu0 %3035
        %v3037 = vsel %vm2301, %v2908, -inf
        %3038 = vmax.xlane.f32.xlu0 %v3037
        %v3039 = vpop.xlane.xlu0 %3038
        %v3040 = vsel %vm2301, %v2990, -inf
        %3041 = vmax.xlane.f32.xlu0 %v3040
        %v3042 = vpop.xlane.xlu0 %3041
        %v3043 = vsel %vm2301, %v2995, -inf
        %3044 = vmax.xlane.f32.xlu0 %v3043
        %v3045 = vpop.xlane.xlu0 %3044
        %v3046 = vsub.f32 %v2381, %v3000
        %v3047 = vsub.f32 %v2386, %v3003
        %v3048 = vsub.f32 %v2468, %v3006
        %v3049 = vsub.f32 %v2473, %v3009
        %v3050 = vsub.f32 %v2555, %v3012
        %v3051 = vsub.f32 %v2560, %v3015
        %v3052 = vsub.f32 %v2642, %v3018
        %v3053 = vsub.f32 %v2647, %v3021
        %v3054 = vsub.f32 %v2729, %v3024
        %v3055 = vsub.f32 %v2734, %v3027
        %v3056 = vsub.f32 %v2816, %v3030
        %v3057 = vsub.f32 %v2821, %v3033
        %v3058 = vsub.f32 %v2903, %v3036
        %v3059 = vsub.f32 %v2908, %v3039
        %v3060 = vsub.f32 %v2990, %v3042
        %v3061 = vsub.f32 %v2995, %v3045
        %v3062 = vmul.f32 %v3046, 1.442695
        %v3063 = vpow.pop %v3062
        %v3064 = vmul.f32 %v3047, 1.442695
        %v3065 = vpow.pop %v3064
        %v3066 = vmul.f32 %v3048, 1.442695
        %v3067 = vpow.pop %v3066
        %v3068 = vmul.f32 %v3049, 1.442695
        %v3069 = vpow.pop %v3068
        %v3070 = vmul.f32 %v3050, 1.442695
        %v3071 = vpow.pop %v3070
        %v3072 = vmul.f32 %v3051, 1.442695
        %v3073 = vpow.pop %v3072
        %v3074 = vmul.f32 %v3052, 1.442695
        %v3075 = vpow.pop %v3074
        %v3076 = vmul.f32 %v3053, 1.442695
        %v3077 = vpow.pop %v3076
        %v3078 = vmul.f32 %v3054, 1.442695
        %v3079 = vpow.pop %v3078
        %v3080 = vmul.f32 %v3055, 1.442695
        %v3081 = vpow.pop %v3080
        %v3082 = vmul.f32 %v3056, 1.442695
        %v3083 = vpow.pop %v3082
        %v3084 = vmul.f32 %v3057, 1.442695
        %v3085 = vpow.pop %v3084
        %v3086 = vmul.f32 %v3058, 1.442695
        %v3087 = vpow.pop %v3086
        %v3088 = vmul.f32 %v3059, 1.442695
        %v3089 = vpow.pop %v3088
        %v3090 = vmul.f32 %v3060, 1.442695
        %v3091 = vpow.pop %v3090
        %v3092 = vmul.f32 %v3061, 1.442695
        %v3093 = vpow.pop %v3092
        %v3094 = vsel %vm2301, %v3063, 0.0
        %3095 = vadd.xlane.f32.xlu0 %v3094
        %v3096 = vpop.xlane.xlu0 %3095
        %v3097 = vsel %vm2301, %v3065, 0.0
        %3098 = vadd.xlane.f32.xlu0 %v3097
        %v3099 = vpop.xlane.xlu0 %3098
        %v3100 = vsel %vm2301, %v3067, 0.0
        %3101 = vadd.xlane.f32.xlu0 %v3100
        %v3102 = vpop.xlane.xlu0 %3101
        %v3103 = vsel %vm2301, %v3069, 0.0
        %3104 = vadd.xlane.f32.xlu0 %v3103
        %v3105 = vpop.xlane.xlu0 %3104
        %v3106 = vsel %vm2301, %v3071, 0.0
        %3107 = vadd.xlane.f32.xlu0 %v3106
        %v3108 = vpop.xlane.xlu0 %3107
        %v3109 = vsel %vm2301, %v3073, 0.0
        %3110 = vadd.xlane.f32.xlu0 %v3109
        %v3111 = vpop.xlane.xlu0 %3110
        %v3112 = vsel %vm2301, %v3075, 0.0
        %3113 = vadd.xlane.f32.xlu0 %v3112
        %v3114 = vpop.xlane.xlu0 %3113
        %v3115 = vsel %vm2301, %v3077, 0.0
        %3116 = vadd.xlane.f32.xlu0 %v3115
        %v3117 = vpop.xlane.xlu0 %3116
        %v3118 = vsel %vm2301, %v3079, 0.0
        %3119 = vadd.xlane.f32.xlu0 %v3118
        %v3120 = vpop.xlane.xlu0 %3119
        %v3121 = vsel %vm2301, %v3081, 0.0
        %3122 = vadd.xlane.f32.xlu0 %v3121
        %v3123 = vpop.xlane.xlu0 %3122
        %v3124 = vsel %vm2301, %v3083, 0.0
        %3125 = vadd.xlane.f32.xlu0 %v3124
        %v3126 = vpop.xlane.xlu0 %3125
        %v3127 = vsel %vm2301, %v3085, 0.0
        %3128 = vadd.xlane.f32.xlu0 %v3127
        %v3129 = vpop.xlane.xlu0 %3128
        %v3130 = vsel %vm2301, %v3087, 0.0
        %3131 = vadd.xlane.f32.xlu0 %v3130
        %v3132 = vpop.xlane.xlu0 %3131
        %v3133 = vsel %vm2301, %v3089, 0.0
        %3134 = vadd.xlane.f32.xlu0 %v3133
        %v3135 = vpop.xlane.xlu0 %3134
        %v3136 = vsel %vm2301, %v3091, 0.0
        %3137 = vadd.xlane.f32.xlu0 %v3136
        %v3138 = vpop.xlane.xlu0 %3137
        %v3139 = vsel %vm2301, %v3093, 0.0
        %3140 = vadd.xlane.f32.xlu0 %v3139
        %v3141 = vpop.xlane.xlu0 %3140
        %v3142 = vrcp.pop %v3096
        %v3143 = vrcp.pop %v3099
        %v3144 = vrcp.pop %v3102
        %v3145 = vrcp.pop %v3105
        %v3146 = vrcp.pop %v3108
        %v3147 = vrcp.pop %v3111
        %v3148 = vrcp.pop %v3114
        %v3149 = vrcp.pop %v3117
        %v3150 = vrcp.pop %v3120
        %v3151 = vrcp.pop %v3123
        %v3152 = vrcp.pop %v3126
        %v3153 = vrcp.pop %v3129
        %v3154 = vrcp.pop %v3132
        %v3155 = vrcp.pop %v3135
        %v3156 = vrcp.pop %v3138
        %v3157 = vrcp.pop %v3141
        %v3158 = vmul.f32 %v3096, %v3142
        %v3159 = vmul.f32 %v3099, %v3143
        %v3160 = vmul.f32 %v3102, %v3144
        %v3161 = vmul.f32 %v3105, %v3145
        %v3162 = vmul.f32 %v3108, %v3146
        %v3163 = vmul.f32 %v3111, %v3147
        %v3164 = vmul.f32 %v3114, %v3148
        %v3165 = vmul.f32 %v3117, %v3149
        %v3166 = vmul.f32 %v3120, %v3150
        %v3167 = vmul.f32 %v3123, %v3151
        %v3168 = vmul.f32 %v3126, %v3152
        %v3169 = vmul.f32 %v3129, %v3153
        %v3170 = vmul.f32 %v3132, %v3154
        %v3171 = vmul.f32 %v3135, %v3155
        %v3172 = vmul.f32 %v3138, %v3156
        %v3173 = vmul.f32 %v3141, %v3157
        %v3174 = vsub.f32 2.0, %v3158
        %v3175 = vsub.f32 2.0, %v3159
        %v3176 = vsub.f32 2.0, %v3160
        %v3177 = vsub.f32 2.0, %v3161
        %v3178 = vsub.f32 2.0, %v3162
        %v3179 = vsub.f32 2.0, %v3163
        %v3180 = vsub.f32 2.0, %v3164
        %v3181 = vsub.f32 2.0, %v3165
        %v3182 = vsub.f32 2.0, %v3166
        %v3183 = vsub.f32 2.0, %v3167
        %v3184 = vsub.f32 2.0, %v3168
        %v3185 = vsub.f32 2.0, %v3169
        %v3186 = vsub.f32 2.0, %v3170
        %v3187 = vsub.f32 2.0, %v3171
        %v3188 = vsub.f32 2.0, %v3172
        %v3189 = vsub.f32 2.0, %v3173
        %v3190 = vmul.f32 %v3142, %v3174
        %v3191 = vmul.f32 %v3143, %v3175
        %v3192 = vmul.f32 %v3144, %v3176
        %v3193 = vmul.f32 %v3145, %v3177
        %v3194 = vmul.f32 %v3146, %v3178
        %v3195 = vmul.f32 %v3147, %v3179
        %v3196 = vmul.f32 %v3148, %v3180
        %v3197 = vmul.f32 %v3149, %v3181
        %v3198 = vmul.f32 %v3150, %v3182
        %v3199 = vmul.f32 %v3151, %v3183
        %v3200 = vmul.f32 %v3152, %v3184
        %v3201 = vmul.f32 %v3153, %v3185
        %v3202 = vmul.f32 %v3154, %v3186
        %v3203 = vmul.f32 %v3155, %v3187
        %v3204 = vmul.f32 %v3156, %v3188
        %v3205 = vmul.f32 %v3157, %v3189
        %v3206 = vmul.f32 %v3063, %v3190
        %v3207 = vmul.f32 %v3065, %v3191
        %v3208 = vmul.f32 %v3067, %v3192
        %v3209 = vmul.f32 %v3069, %v3193
        %v3210 = vmul.f32 %v3071, %v3194
        %v3211 = vmul.f32 %v3073, %v3195
        %v3212 = vmul.f32 %v3075, %v3196
        %v3213 = vmul.f32 %v3077, %v3197
        %v3214 = vmul.f32 %v3079, %v3198
        %v3215 = vmul.f32 %v3081, %v3199
        %v3216 = vmul.f32 %v3083, %v3200
        %v3217 = vmul.f32 %v3085, %v3201
        %v3218 = vmul.f32 %v3087, %v3202
        %v3219 = vmul.f32 %v3089, %v3203
        %v3220 = vmul.f32 %v3091, %v3204
        %v3221 = vmul.f32 %v3093, %v3205
        %v3223 = vsel %vm2301, %v3206, 0
        %v3226 = vsel %vm2301, %v3207, 0
        %3228 = vmatprep.subr.mxu0 0.0
        %3229 = vmatpush1.msra.mxu0 %v2093
        %3230 = vmatprep.subr.mxu0 0.0
        %3231 = vmatpush1.msra.mxu0 %v2161
        %3232 = vmatprep.subr.mxu0 0.0
        %3233 = vmatpush1.msra.mxu0 0.0
        %3234 = vmatprep.subr.mxu0 0.0
        %3235 = vmatpush1.msra.mxu0 0.0
        %3236 = vmatprep.subr.mxu0 0.0
        %3237 = vmatpush1.msra.mxu0 0.0
        %3238 = vmatprep.subr.mxu0 0.0
        %3239 = vmatpush1.msra.mxu0 0.0
        %3240 = vmatprep.subr.mxu0 0.0
        %3241 = vmatpush1.msra.mxu0 0.0
        %3242 = vmatprep.subr.mxu0 0.0
        %3243 = vmatpush1.msra.mxu0 0.0
        %3244 = vmatprep.subr.mxu0 0.0
        %3245 = vmatpush1.msra.mxu0 0.0
        %3246 = vmatprep.subr.mxu0 0.0
        %3247 = vmatpush1.msra.mxu0 0.0
        %3248 = vmatprep.subr.mxu0 0.0
        %3249 = vmatpush1.msra.mxu0 0.0
        %3250 = vmatprep.subr.mxu0 0.0
        %3251 = vmatpush1.msra.mxu0 0.0
        %3252 = vmatprep.subr.mxu0 0.0
        %3253 = vmatpush1.msra.mxu0 0.0
        %3254 = vmatprep.subr.mxu0 0.0
        %3255 = vmatpush1.msra.mxu0 0.0
        %3256 = vmatprep.subr.mxu0 0.0
        %3257 = vmatpush1.msra.mxu0 0.0
        %3258 = vmatprep.subr.mxu0 0.0
        %3259 = vmatpush1.msra.mxu0 0.0
        %3260 = vmatprep.subr.mxu0 0.0
        %3261 = vmatpush1.msra.mxu0 0.0
        %3262 = vmatprep.subr.mxu0 0.0
        %3263 = vmatpush1.msra.mxu0 0.0
        %3264 = vmatprep.subr.mxu0 0.0
        %3265 = vmatpush1.msra.mxu0 0.0
        %3266 = vmatprep.subr.mxu0 0.0
        %3267 = vmatpush1.msra.mxu0 0.0
        %3268 = vmatprep.subr.mxu0 0.0
        %3269 = vmatpush1.msra.mxu0 0.0
        %3270 = vmatprep.subr.mxu0 0.0
        %3271 = vmatpush1.msra.mxu0 0.0
        %3272 = vmatprep.subr.mxu0 0.0
        %3273 = vmatpush1.msra.mxu0 0.0
        %3274 = vmatprep.subr.mxu0 0.0
        %3275 = vmatpush1.msra.mxu0 0.0
        %3276 = vmatprep.subr.mxu0 0.0
        %3277 = vmatpush1.msra.mxu0 0.0
        %3278 = vmatprep.subr.mxu0 0.0
        %3279 = vmatpush1.msra.mxu0 0.0
        %3280 = vmatprep.subr.mxu0 0.0
        %3281 = vmatpush1.msra.mxu0 0.0
        %3282 = vmatprep.subr.mxu0 0.0
        %3283 = vmatpush1.msra.mxu0 0.0
        %3284 = vmatprep.subr.mxu0 0.0
        %3285 = vmatpush1.msra.mxu0 0.0
        %3286 = vmatprep.subr.mxu0 0.0
        %3287 = vmatpush1.msra.mxu0 0.0
        %3288 = vmatprep.subr.mxu0 0.0
        %3289 = vmatpush1.msra.mxu0 0.0
        %3290 = vmatprep.subr.mxu0 0.0
        %3291 = vmatpush1.msra.mxu0 0.0
        %3292 = vmatprep.mubr.f32.mxu0 0.0
        %3293 = vmatmul.mubr.f32.gmra.mrb[0].mxu0 %v3223
        %v3294 = vpop.f32.mrb[0].mxu0
        %v3295 = vadd.f32 0.0, %v3294
        %v3296 = vpop.f32.mrb[0].mxu0
        %3297 = vmatprep.mubr.f32.mxu0 0.0
        %3298 = vmatmul.mubr.f32.gmra.mrb[0].mxu0 %v3226
        %v3299 = vpop.f32.mrb[0].mxu0
        %v3300 = vadd.f32 0.0, %v3299
        %v3301 = vpop.f32.mrb[0].mxu0
        %3302 = vdwg.mxu0
        %v3304 = vsel %vm2301, %v3208, 0
        %v3307 = vsel %vm2301, %v3209, 0
        %3309 = vmatprep.subr.mxu0 0.0
        %3310 = vmatpush1.msra.mxu0 %v2229
        %3311 = vmatprep.subr.mxu0 0.0
        %3312 = vmatpush1.msra.mxu0 %v2297
        %3313 = vmatprep.subr.mxu0 0.0
        %3314 = vmatpush1.msra.mxu0 0.0
        %3315 = vmatprep.subr.mxu0 0.0
        %3316 = vmatpush1.msra.mxu0 0.0
        %3317 = vmatprep.subr.mxu0 0.0
        %3318 = vmatpush1.msra.mxu0 0.0
        %3319 = vmatprep.subr.mxu0 0.0
        %3320 = vmatpush1.msra.mxu0 0.0
        %3321 = vmatprep.subr.mxu0 0.0
        %3322 = vmatpush1.msra.mxu0 0.0
        %3323 = vmatprep.subr.mxu0 0.0
        %3324 = vmatpush1.msra.mxu0 0.0
        %3325 = vmatprep.subr.mxu0 0.0
        %3326 = vmatpush1.msra.mxu0 0.0
        %3327 = vmatprep.subr.mxu0 0.0
        %3328 = vmatpush1.msra.mxu0 0.0
        %3329 = vmatprep.subr.mxu0 0.0
        %3330 = vmatpush1.msra.mxu0 0.0
        %3331 = vmatprep.subr.mxu0 0.0
        %3332 = vmatpush1.msra.mxu0 0.0
        %3333 = vmatprep.subr.mxu0 0.0
        %3334 = vmatpush1.msra.mxu0 0.0
        %3335 = vmatprep.subr.mxu0 0.0
        %3336 = vmatpush1.msra.mxu0 0.0
        %3337 = vmatprep.subr.mxu0 0.0
        %3338 = vmatpush1.msra.mxu0 0.0
        %3339 = vmatprep.subr.mxu0 0.0
        %3340 = vmatpush1.msra.mxu0 0.0
        %3341 = vmatprep.subr.mxu0 0.0
        %3342 = vmatpush1.msra.mxu0 0.0
        %3343 = vmatprep.subr.mxu0 0.0
        %3344 = vmatpush1.msra.mxu0 0.0
        %3345 = vmatprep.subr.mxu0 0.0
        %3346 = vmatpush1.msra.mxu0 0.0
        %3347 = vmatprep.subr.mxu0 0.0
        %3348 = vmatpush1.msra.mxu0 0.0
        %3349 = vmatprep.subr.mxu0 0.0
        %3350 = vmatpush1.msra.mxu0 0.0
        %3351 = vmatprep.subr.mxu0 0.0
        %3352 = vmatpush1.msra.mxu0 0.0
        %3353 = vmatprep.subr.mxu0 0.0
        %3354 = vmatpush1.msra.mxu0 0.0
        %3355 = vmatprep.subr.mxu0 0.0
        %3356 = vmatpush1.msra.mxu0 0.0
        %3357 = vmatprep.subr.mxu0 0.0
        %3358 = vmatpush1.msra.mxu0 0.0
        %3359 = vmatprep.subr.mxu0 0.0
        %3360 = vmatpush1.msra.mxu0 0.0
        %3361 = vmatprep.subr.mxu0 0.0
        %3362 = vmatpush1.msra.mxu0 0.0
        %3363 = vmatprep.subr.mxu0 0.0
        %3364 = vmatpush1.msra.mxu0 0.0
        %3365 = vmatprep.subr.mxu0 0.0
        %3366 = vmatpush1.msra.mxu0 0.0
        %3367 = vmatprep.subr.mxu0 0.0
        %3368 = vmatpush1.msra.mxu0 0.0
        %3369 = vmatprep.subr.mxu0 0.0
        %3370 = vmatpush1.msra.mxu0 0.0
        %3371 = vmatprep.subr.mxu0 0.0
        %3372 = vmatpush1.msra.mxu0 0.0
        %3373 = vmatprep.mubr.f32.mxu0 0.0
        %3374 = vmatmul.mubr.f32.gmra.mrb[0].mxu0 %v3304
        %v3375 = vpop.f32.mrb[0].mxu0
        %v3376 = vadd.f32 0.0, %v3375
        %v3377 = vpop.f32.mrb[0].mxu0
        %3378 = vmatprep.mubr.f32.mxu0 0.0
        %3379 = vmatmul.mubr.f32.gmra.mrb[0].mxu0 %v3307
        %v3380 = vpop.f32.mrb[0].mxu0
        %v3381 = vadd.f32 0.0, %v3380
        %v3382 = vpop.f32.mrb[0].mxu0
        %3383 = vdwg.mxu0
        %v3385 = vsel %vm2301, %v3210, 0
        %v3388 = vsel %vm2301, %v3211, 0
        %3390 = vmatprep.subr.mxu0 0.0
        %3391 = vmatpush1.msra.mxu0 %v2094
        %3392 = vmatprep.subr.mxu0 0.0
        %3393 = vmatpush1.msra.mxu0 %v2162
        %3394 = vmatprep.subr.mxu0 0.0
        %3395 = vmatpush1.msra.mxu0 0.0
        %3396 = vmatprep.subr.mxu0 0.0
        %3397 = vmatpush1.msra.mxu0 0.0
        %3398 = vmatprep.subr.mxu0 0.0
        %3399 = vmatpush1.msra.mxu0 0.0
        %3400 = vmatprep.subr.mxu0 0.0
        %3401 = vmatpush1.msra.mxu0 0.0
        %3402 = vmatprep.subr.mxu0 0.0
        %3403 = vmatpush1.msra.mxu0 0.0
        %3404 = vmatprep.subr.mxu0 0.0
        %3405 = vmatpush1.msra.mxu0 0.0
        %3406 = vmatprep.subr.mxu0 0.0
        %3407 = vmatpush1.msra.mxu0 0.0
        %3408 = vmatprep.subr.mxu0 0.0
        %3409 = vmatpush1.msra.mxu0 0.0
        %3410 = vmatprep.subr.mxu0 0.0
        %3411 = vmatpush1.msra.mxu0 0.0
        %3412 = vmatprep.subr.mxu0 0.0
        %3413 = vmatpush1.msra.mxu0 0.0
        %3414 = vmatprep.subr.mxu0 0.0
        %3415 = vmatpush1.msra.mxu0 0.0
        %3416 = vmatprep.subr.mxu0 0.0
        %3417 = vmatpush1.msra.mxu0 0.0
        %3418 = vmatprep.subr.mxu0 0.0
        %3419 = vmatpush1.msra.mxu0 0.0
        %3420 = vmatprep.subr.mxu0 0.0
        %3421 = vmatpush1.msra.mxu0 0.0
        %3422 = vmatprep.subr.mxu0 0.0
        %3423 = vmatpush1.msra.mxu0 0.0
        %3424 = vmatprep.subr.mxu0 0.0
        %3425 = vmatpush1.msra.mxu0 0.0
        %3426 = vmatprep.subr.mxu0 0.0
        %3427 = vmatpush1.msra.mxu0 0.0
        %3428 = vmatprep.subr.mxu0 0.0
        %3429 = vmatpush1.msra.mxu0 0.0
        %3430 = vmatprep.subr.mxu0 0.0
        %3431 = vmatpush1.msra.mxu0 0.0
        %3432 = vmatprep.subr.mxu0 0.0
        %3433 = vmatpush1.msra.mxu0 0.0
        %3434 = vmatprep.subr.mxu0 0.0
        %3435 = vmatpush1.msra.mxu0 0.0
        %3436 = vmatprep.subr.mxu0 0.0
        %3437 = vmatpush1.msra.mxu0 0.0
        %3438 = vmatprep.subr.mxu0 0.0
        %3439 = vmatpush1.msra.mxu0 0.0
        %3440 = vmatprep.subr.mxu0 0.0
        %3441 = vmatpush1.msra.mxu0 0.0
        %3442 = vmatprep.subr.mxu0 0.0
        %3443 = vmatpush1.msra.mxu0 0.0
        %3444 = vmatprep.subr.mxu0 0.0
        %3445 = vmatpush1.msra.mxu0 0.0
        %3446 = vmatprep.subr.mxu0 0.0
        %3447 = vmatpush1.msra.mxu0 0.0
        %3448 = vmatprep.subr.mxu0 0.0
        %3449 = vmatpush1.msra.mxu0 0.0
        %3450 = vmatprep.subr.mxu0 0.0
        %3451 = vmatpush1.msra.mxu0 0.0
        %3452 = vmatprep.subr.mxu0 0.0
        %3453 = vmatpush1.msra.mxu0 0.0
        %3454 = vmatprep.mubr.f32.mxu0 0.0
        %3455 = vmatmul.mubr.f32.gmra.mrb[0].mxu0 %v3385
        %v3456 = vpop.f32.mrb[0].mxu0
        %v3457 = vadd.f32 0.0, %v3456
        %v3458 = vpop.f32.mrb[0].mxu0
        %3459 = vmatprep.mubr.f32.mxu0 0.0
        %3460 = vmatmul.mubr.f32.gmra.mrb[0].mxu0 %v3388
        %v3461 = vpop.f32.mrb[0].mxu0
        %v3462 = vadd.f32 0.0, %v3461
        %v3463 = vpop.f32.mrb[0].mxu0
        %3464 = vdwg.mxu0
        %v3466 = vsel %vm2301, %v3212, 0
        %v3469 = vsel %vm2301, %v3213, 0
        %3471 = vmatprep.subr.mxu0 0.0
        %3472 = vmatpush1.msra.mxu0 %v2230
        %3473 = vmatprep.subr.mxu0 0.0
        %3474 = vmatpush1.msra.mxu0 %v2298
        %3475 = vmatprep.subr.mxu0 0.0
        %3476 = vmatpush1.msra.mxu0 0.0
        %3477 = vmatprep.subr.mxu0 0.0
        %3478 = vmatpush1.msra.mxu0 0.0
        %3479 = vmatprep.subr.mxu0 0.0
        %3480 = vmatpush1.msra.mxu0 0.0
        %3481 = vmatprep.subr.mxu0 0.0
        %3482 = vmatpush1.msra.mxu0 0.0
        %3483 = vmatprep.subr.mxu0 0.0
        %3484 = vmatpush1.msra.mxu0 0.0
        %3485 = vmatprep.subr.mxu0 0.0
        %3486 = vmatpush1.msra.mxu0 0.0
        %3487 = vmatprep.subr.mxu0 0.0
        %3488 = vmatpush1.msra.mxu0 0.0
        %3489 = vmatprep.subr.mxu0 0.0
        %3490 = vmatpush1.msra.mxu0 0.0
        %3491 = vmatprep.subr.mxu0 0.0
        %3492 = vmatpush1.msra.mxu0 0.0
        %3493 = vmatprep.subr.mxu0 0.0
        %3494 = vmatpush1.msra.mxu0 0.0
        %3495 = vmatprep.subr.mxu0 0.0
        %3496 = vmatpush1.msra.mxu0 0.0
        %3497 = vmatprep.subr.mxu0 0.0
        %3498 = vmatpush1.msra.mxu0 0.0
        %3499 = vmatprep.subr.mxu0 0.0
        %3500 = vmatpush1.msra.mxu0 0.0
        %3501 = vmatprep.subr.mxu0 0.0
        %3502 = vmatpush1.msra.mxu0 0.0
        %3503 = vmatprep.subr.mxu0 0.0
        %3504 = vmatpush1.msra.mxu0 0.0
        %3505 = vmatprep.subr.mxu0 0.0
        %3506 = vmatpush1.msra.mxu0 0.0
        %3507 = vmatprep.subr.mxu0 0.0
        %3508 = vmatpush1.msra.mxu0 0.0
        %3509 = vmatprep.subr.mxu0 0.0
        %3510 = vmatpush1.msra.mxu0 0.0
        %3511 = vmatprep.subr.mxu0 0.0
        %3512 = vmatpush1.msra.mxu0 0.0
        %3513 = vmatprep.subr.mxu0 0.0
        %3514 = vmatpush1.msra.mxu0 0.0
        %3515 = vmatprep.subr.mxu0 0.0
        %3516 = vmatpush1.msra.mxu0 0.0
        %3517 = vmatprep.subr.mxu0 0.0
        %3518 = vmatpush1.msra.mxu0 0.0
        %3519 = vmatprep.subr.mxu0 0.0
        %3520 = vmatpush1.msra.mxu0 0.0
        %3521 = vmatprep.subr.mxu0 0.0
        %3522 = vmatpush1.msra.mxu0 0.0
        %3523 = vmatprep.subr.mxu0 0.0
        %3524 = vmatpush1.msra.mxu0 0.0
        %3525 = vmatprep.subr.mxu0 0.0
        %3526 = vmatpush1.msra.mxu0 0.0
        %3527 = vmatprep.subr.mxu0 0.0
        %3528 = vmatpush1.msra.mxu0 0.0
        %3529 = vmatprep.subr.mxu0 0.0
        %3530 = vmatpush1.msra.mxu0 0.0
        %3531 = vmatprep.subr.mxu0 0.0
        %3532 = vmatpush1.msra.mxu0 0.0
        %3533 = vmatprep.subr.mxu0 0.0
        %3534 = vmatpush1.msra.mxu0 0.0
        %3535 = vmatprep.mubr.f32.mxu0 0.0
        %3536 = vmatmul.mubr.f32.gmra.mrb[0].mxu0 %v3466
        %v3537 = vpop.f32.mrb[0].mxu0
        %v3538 = vadd.f32 0.0, %v3537
        %v3539 = vpop.f32.mrb[0].mxu0
        %3540 = vmatprep.mubr.f32.mxu0 0.0
        %3541 = vmatmul.mubr.f32.gmra.mrb[0].mxu0 %v3469
        %v3542 = vpop.f32.mrb[0].mxu0
        %v3543 = vadd.f32 0.0, %v3542
        %v3544 = vpop.f32.mrb[0].mxu0
        %3545 = vdwg.mxu0
        %v3547 = vsel %vm2301, %v3214, 0
        %v3550 = vsel %vm2301, %v3215, 0
        %3552 = vmatprep.subr.mxu0 0.0
        %3553 = vmatpush1.msra.mxu0 %v2095
        %3554 = vmatprep.subr.mxu0 0.0
        %3555 = vmatpush1.msra.mxu0 %v2163
        %3556 = vmatprep.subr.mxu0 0.0
        %3557 = vmatpush1.msra.mxu0 0.0
        %3558 = vmatprep.subr.mxu0 0.0
        %3559 = vmatpush1.msra.mxu0 0.0
        %3560 = vmatprep.subr.mxu0 0.0
        %3561 = vmatpush1.msra.mxu0 0.0
        %3562 = vmatprep.subr.mxu0 0.0
        %3563 = vmatpush1.msra.mxu0 0.0
        %3564 = vmatprep.subr.mxu0 0.0
        %3565 = vmatpush1.msra.mxu0 0.0
        %3566 = vmatprep.subr.mxu0 0.0
        %3567 = vmatpush1.msra.mxu0 0.0
        %3568 = vmatprep.subr.mxu0 0.0
        %3569 = vmatpush1.msra.mxu0 0.0
        %3570 = vmatprep.subr.mxu0 0.0
        %3571 = vmatpush1.msra.mxu0 0.0
        %3572 = vmatprep.subr.mxu0 0.0
        %3573 = vmatpush1.msra.mxu0 0.0
        %3574 = vmatprep.subr.mxu0 0.0
        %3575 = vmatpush1.msra.mxu0 0.0
        %3576 = vmatprep.subr.mxu0 0.0
        %3577 = vmatpush1.msra.mxu0 0.0
        %3578 = vmatprep.subr.mxu0 0.0
        %3579 = vmatpush1.msra.mxu0 0.0
        %3580 = vmatprep.subr.mxu0 0.0
        %3581 = vmatpush1.msra.mxu0 0.0
        %3582 = vmatprep.subr.mxu0 0.0
        %3583 = vmatpush1.msra.mxu0 0.0
        %3584 = vmatprep.subr.mxu0 0.0
        %3585 = vmatpush1.msra.mxu0 0.0
        %3586 = vmatprep.subr.mxu0 0.0
        %3587 = vmatpush1.msra.mxu0 0.0
        %3588 = vmatprep.subr.mxu0 0.0
        %3589 = vmatpush1.msra.mxu0 0.0
        %3590 = vmatprep.subr.mxu0 0.0
        %3591 = vmatpush1.msra.mxu0 0.0
        %3592 = vmatprep.subr.mxu0 0.0
        %3593 = vmatpush1.msra.mxu0 0.0
        %3594 = vmatprep.subr.mxu0 0.0
        %3595 = vmatpush1.msra.mxu0 0.0
        %3596 = vmatprep.subr.mxu0 0.0
        %3597 = vmatpush1.msra.mxu0 0.0
        %3598 = vmatprep.subr.mxu0 0.0
        %3599 = vmatpush1.msra.mxu0 0.0
        %3600 = vmatprep.subr.mxu0 0.0
        %3601 = vmatpush1.msra.mxu0 0.0
        %3602 = vmatprep.subr.mxu0 0.0
        %3603 = vmatpush1.msra.mxu0 0.0
        %3604 = vmatprep.subr.mxu0 0.0
        %3605 = vmatpush1.msra.mxu0 0.0
        %3606 = vmatprep.subr.mxu0 0.0
        %3607 = vmatpush1.msra.mxu0 0.0
        %3608 = vmatprep.subr.mxu0 0.0
        %3609 = vmatpush1.msra.mxu0 0.0
        %3610 = vmatprep.subr.mxu0 0.0
        %3611 = vmatpush1.msra.mxu0 0.0
        %3612 = vmatprep.subr.mxu0 0.0
        %3613 = vmatpush1.msra.mxu0 0.0
        %3614 = vmatprep.subr.mxu0 0.0
        %3615 = vmatpush1.msra.mxu0 0.0
        %3616 = vmatprep.mubr.f32.mxu0 0.0
        %3617 = vmatmul.mubr.f32.gmra.mrb[0].mxu0 %v3547
        %v3618 = vpop.f32.mrb[0].mxu0
        %v3619 = vadd.f32 0.0, %v3618
        %v3620 = vpop.f32.mrb[0].mxu0
        %3621 = vmatprep.mubr.f32.mxu0 0.0
        %3622 = vmatmul.mubr.f32.gmra.mrb[0].mxu0 %v3550
        %v3623 = vpop.f32.mrb[0].mxu0
        %v3624 = vadd.f32 0.0, %v3623
        %v3625 = vpop.f32.mrb[0].mxu0
        %3626 = vdwg.mxu0
        %v3628 = vsel %vm2301, %v3216, 0
        %v3631 = vsel %vm2301, %v3217, 0
        %3633 = vmatprep.subr.mxu0 0.0
        %3634 = vmatpush1.msra.mxu0 %v2231
        %3635 = vmatprep.subr.mxu0 0.0
        %3636 = vmatpush1.msra.mxu0 %v2299
        %3637 = vmatprep.subr.mxu0 0.0
        %3638 = vmatpush1.msra.mxu0 0.0
        %3639 = vmatprep.subr.mxu0 0.0
        %3640 = vmatpush1.msra.mxu0 0.0
        %3641 = vmatprep.subr.mxu0 0.0
        %3642 = vmatpush1.msra.mxu0 0.0
        %3643 = vmatprep.subr.mxu0 0.0
        %3644 = vmatpush1.msra.mxu0 0.0
        %3645 = vmatprep.subr.mxu0 0.0
        %3646 = vmatpush1.msra.mxu0 0.0
        %3647 = vmatprep.subr.mxu0 0.0
        %3648 = vmatpush1.msra.mxu0 0.0
        %3649 = vmatprep.subr.mxu0 0.0
        %3650 = vmatpush1.msra.mxu0 0.0
        %3651 = vmatprep.subr.mxu0 0.0
        %3652 = vmatpush1.msra.mxu0 0.0
        %3653 = vmatprep.subr.mxu0 0.0
        %3654 = vmatpush1.msra.mxu0 0.0
        %3655 = vmatprep.subr.mxu0 0.0
        %3656 = vmatpush1.msra.mxu0 0.0
        %3657 = vmatprep.subr.mxu0 0.0
        %3658 = vmatpush1.msra.mxu0 0.0
        %3659 = vmatprep.subr.mxu0 0.0
        %3660 = vmatpush1.msra.mxu0 0.0
        %3661 = vmatprep.subr.mxu0 0.0
        %3662 = vmatpush1.msra.mxu0 0.0
        %3663 = vmatprep.subr.mxu0 0.0
        %3664 = vmatpush1.msra.mxu0 0.0
        %3665 = vmatprep.subr.mxu0 0.0
        %3666 = vmatpush1.msra.mxu0 0.0
        %3667 = vmatprep.subr.mxu0 0.0
        %3668 = vmatpush1.msra.mxu0 0.0
        %3669 = vmatprep.subr.mxu0 0.0
        %3670 = vmatpush1.msra.mxu0 0.0
        %3671 = vmatprep.subr.mxu0 0.0
        %3672 = vmatpush1.msra.mxu0 0.0
        %3673 = vmatprep.subr.mxu0 0.0
        %3674 = vmatpush1.msra.mxu0 0.0
        %3675 = vmatprep.subr.mxu0 0.0
        %3676 = vmatpush1.msra.mxu0 0.0
        %3677 = vmatprep.subr.mxu0 0.0
        %3678 = vmatpush1.msra.mxu0 0.0
        %3679 = vmatprep.subr.mxu0 0.0
        %3680 = vmatpush1.msra.mxu0 0.0
        %3681 = vmatprep.subr.mxu0 0.0
        %3682 = vmatpush1.msra.mxu0 0.0
        %3683 = vmatprep.subr.mxu0 0.0
        %3684 = vmatpush1.msra.mxu0 0.0
        %3685 = vmatprep.subr.mxu0 0.0
        %3686 = vmatpush1.msra.mxu0 0.0
        %3687 = vmatprep.subr.mxu0 0.0
        %3688 = vmatpush1.msra.mxu0 0.0
        %3689 = vmatprep.subr.mxu0 0.0
        %3690 = vmatpush1.msra.mxu0 0.0
        %3691 = vmatprep.subr.mxu0 0.0
        %3692 = vmatpush1.msra.mxu0 0.0
        %3693 = vmatprep.subr.mxu0 0.0
        %3694 = vmatpush1.msra.mxu0 0.0
        %3695 = vmatprep.subr.mxu0 0.0
        %3696 = vmatpush1.msra.mxu0 0.0
        %3697 = vmatprep.mubr.f32.mxu0 0.0
        %3698 = vmatmul.mubr.f32.gmra.mrb[0].mxu0 %v3628
        %v3699 = vpop.f32.mrb[0].mxu0
        %v3700 = vadd.f32 0.0, %v3699
        %v3701 = vpop.f32.mrb[0].mxu0
        %3702 = vmatprep.mubr.f32.mxu0 0.0
        %3703 = vmatmul.mubr.f32.gmra.mrb[0].mxu0 %v3631
        %v3704 = vpop.f32.mrb[0].mxu0
        %v3705 = vadd.f32 0.0, %v3704
        %v3706 = vpop.f32.mrb[0].mxu0
        %3707 = vdwg.mxu0
        %v3709 = vsel %vm2301, %v3218, 0
        %v3712 = vsel %vm2301, %v3219, 0
        %3714 = vmatprep.subr.mxu0 0.0
        %3715 = vmatpush1.msra.mxu0 %v2096
        %3716 = vmatprep.subr.mxu0 0.0
        %3717 = vmatpush1.msra.mxu0 %v2164
        %3718 = vmatprep.subr.mxu0 0.0
        %3719 = vmatpush1.msra.mxu0 0.0
        %3720 = vmatprep.subr.mxu0 0.0
        %3721 = vmatpush1.msra.mxu0 0.0
        %3722 = vmatprep.subr.mxu0 0.0
        %3723 = vmatpush1.msra.mxu0 0.0
        %3724 = vmatprep.subr.mxu0 0.0
        %3725 = vmatpush1.msra.mxu0 0.0
        %3726 = vmatprep.subr.mxu0 0.0
        %3727 = vmatpush1.msra.mxu0 0.0
        %3728 = vmatprep.subr.mxu0 0.0
        %3729 = vmatpush1.msra.mxu0 0.0
        %3730 = vmatprep.subr.mxu0 0.0
        %3731 = vmatpush1.msra.mxu0 0.0
        %3732 = vmatprep.subr.mxu0 0.0
        %3733 = vmatpush1.msra.mxu0 0.0
        %3734 = vmatprep.subr.mxu0 0.0
        %3735 = vmatpush1.msra.mxu0 0.0
        %3736 = vmatprep.subr.mxu0 0.0
        %3737 = vmatpush1.msra.mxu0 0.0
        %3738 = vmatprep.subr.mxu0 0.0
        %3739 = vmatpush1.msra.mxu0 0.0
        %3740 = vmatprep.subr.mxu0 0.0
        %3741 = vmatpush1.msra.mxu0 0.0
        %3742 = vmatprep.subr.mxu0 0.0
        %3743 = vmatpush1.msra.mxu0 0.0
        %3744 = vmatprep.subr.mxu0 0.0
        %3745 = vmatpush1.msra.mxu0 0.0
        %3746 = vmatprep.subr.mxu0 0.0
        %3747 = vmatpush1.msra.mxu0 0.0
        %3748 = vmatprep.subr.mxu0 0.0
        %3749 = vmatpush1.msra.mxu0 0.0
        %3750 = vmatprep.subr.mxu0 0.0
        %3751 = vmatpush1.msra.mxu0 0.0
        %3752 = vmatprep.subr.mxu0 0.0
        %3753 = vmatpush1.msra.mxu0 0.0
        %3754 = vmatprep.subr.mxu0 0.0
        %3755 = vmatpush1.msra.mxu0 0.0
        %3756 = vmatprep.subr.mxu0 0.0
        %3757 = vmatpush1.msra.mxu0 0.0
        %3758 = vmatprep.subr.mxu0 0.0
        %3759 = vmatpush1.msra.mxu0 0.0
        %3760 = vmatprep.subr.mxu0 0.0
        %3761 = vmatpush1.msra.mxu0 0.0
        %3762 = vmatprep.subr.mxu0 0.0
        %3763 = vmatpush1.msra.mxu0 0.0
        %3764 = vmatprep.subr.mxu0 0.0
        %3765 = vmatpush1.msra.mxu0 0.0
        %3766 = vmatprep.subr.mxu0 0.0
        %3767 = vmatpush1.msra.mxu0 0.0
        %3768 = vmatprep.subr.mxu0 0.0
        %3769 = vmatpush1.msra.mxu0 0.0
        %3770 = vmatprep.subr.mxu0 0.0
        %3771 = vmatpush1.msra.mxu0 0.0
        %3772 = vmatprep.subr.mxu0 0.0
        %3773 = vmatpush1.msra.mxu0 0.0
        %3774 = vmatprep.subr.mxu0 0.0
        %3775 = vmatpush1.msra.mxu0 0.0
        %3776 = vmatprep.subr.mxu0 0.0
        %3777 = vmatpush1.msra.mxu0 0.0
        %3778 = vmatprep.mubr.f32.mxu0 0.0
        %3779 = vmatmul.mubr.f32.gmra.mrb[0].mxu0 %v3709
        %v3780 = vpop.f32.mrb[0].mxu0
        %v3781 = vadd.f32 0.0, %v3780
        %v3782 = vpop.f32.mrb[0].mxu0
        %3783 = vmatprep.mubr.f32.mxu0 0.0
        %3784 = vmatmul.mubr.f32.gmra.mrb[0].mxu0 %v3712
        %v3785 = vpop.f32.mrb[0].mxu0
        %v3786 = vadd.f32 0.0, %v3785
        %v3787 = vpop.f32.mrb[0].mxu0
        %3788 = vdwg.mxu0
        %v3790 = vsel %vm2301, %v3220, 0
        %v3793 = vsel %vm2301, %v3221, 0
        %3795 = vmatprep.subr.mxu0 0.0
        %3796 = vmatpush1.msra.mxu0 %v2232
        %3797 = vmatprep.subr.mxu0 0.0
        %3798 = vmatpush1.msra.mxu0 %v2300
        %3799 = vmatprep.subr.mxu0 0.0
        %3800 = vmatpush1.msra.mxu0 0.0
        %3801 = vmatprep.subr.mxu0 0.0
        %3802 = vmatpush1.msra.mxu0 0.0
        %3803 = vmatprep.subr.mxu0 0.0
        %3804 = vmatpush1.msra.mxu0 0.0
        %3805 = vmatprep.subr.mxu0 0.0
        %3806 = vmatpush1.msra.mxu0 0.0
        %3807 = vmatprep.subr.mxu0 0.0
        %3808 = vmatpush1.msra.mxu0 0.0
        %3809 = vmatprep.subr.mxu0 0.0
        %3810 = vmatpush1.msra.mxu0 0.0
        %3811 = vmatprep.subr.mxu0 0.0
        %3812 = vmatpush1.msra.mxu0 0.0
        %3813 = vmatprep.subr.mxu0 0.0
        %3814 = vmatpush1.msra.mxu0 0.0
        %3815 = vmatprep.subr.mxu0 0.0
        %3816 = vmatpush1.msra.mxu0 0.0
        %3817 = vmatprep.subr.mxu0 0.0
        %3818 = vmatpush1.msra.mxu0 0.0
        %3819 = vmatprep.subr.mxu0 0.0
        %3820 = vmatpush1.msra.mxu0 0.0
        %3821 = vmatprep.subr.mxu0 0.0
        %3822 = vmatpush1.msra.mxu0 0.0
        %3823 = vmatprep.subr.mxu0 0.0
        %3824 = vmatpush1.msra.mxu0 0.0
        %3825 = vmatprep.subr.mxu0 0.0
        %3826 = vmatpush1.msra.mxu0 0.0
        %3827 = vmatprep.subr.mxu0 0.0
        %3828 = vmatpush1.msra.mxu0 0.0
        %3829 = vmatprep.subr.mxu0 0.0
        %3830 = vmatpush1.msra.mxu0 0.0
        %3831 = vmatprep.subr.mxu0 0.0
        %3832 = vmatpush1.msra.mxu0 0.0
        %3833 = vmatprep.subr.mxu0 0.0
        %3834 = vmatpush1.msra.mxu0 0.0
        %3835 = vmatprep.subr.mxu0 0.0
        %3836 = vmatpush1.msra.mxu0 0.0
        %3837 = vmatprep.subr.mxu0 0.0
        %3838 = vmatpush1.msra.mxu0 0.0
        %3839 = vmatprep.subr.mxu0 0.0
        %3840 = vmatpush1.msra.mxu0 0.0
        %3841 = vmatprep.subr.mxu0 0.0
        %3842 = vmatpush1.msra.mxu0 0.0
        %3843 = vmatprep.subr.mxu0 0.0
        %3844 = vmatpush1.msra.mxu0 0.0
        %3845 = vmatprep.subr.mxu0 0.0
        %3846 = vmatpush1.msra.mxu0 0.0
        %3847 = vmatprep.subr.mxu0 0.0
        %3848 = vmatpush1.msra.mxu0 0.0
        %3849 = vmatprep.subr.mxu0 0.0
        %3850 = vmatpush1.msra.mxu0 0.0
        %3851 = vmatprep.subr.mxu0 0.0
        %3852 = vmatpush1.msra.mxu0 0.0
        %3853 = vmatprep.subr.mxu0 0.0
        %3854 = vmatpush1.msra.mxu0 0.0
        %3855 = vmatprep.subr.mxu0 0.0
        %3856 = vmatpush1.msra.mxu0 0.0
        %3857 = vmatprep.subr.mxu0 0.0
        %3858 = vmatpush1.msra.mxu0 0.0
        %3859 = vmatprep.mubr.f32.mxu0 0.0
        %3860 = vmatmul.mubr.f32.gmra.mrb[0].mxu0 %v3790
        %v3861 = vpop.f32.mrb[0].mxu0
        %v3862 = vadd.f32 0.0, %v3861
        %v3863 = vpop.f32.mrb[0].mxu0
        %3864 = vmatprep.mubr.f32.mxu0 0.0
        %3865 = vmatmul.mubr.f32.gmra.mrb[0].mxu0 %v3793
        %v3866 = vpop.f32.mrb[0].mxu0
        %v3867 = vadd.f32 0.0, %v3866
        %v3868 = vpop.f32.mrb[0].mxu0
        %3869 = vdwg.mxu0
        %v3870 = vcombine.low %v3295, %v3619
        %v3871 = vcombine.high %v3295, %v3619
        %v3873 = vunpack.c.l.s4 1983009808
        %v3874 = vunpack.c.0.s8 %v3873
        %v3875 = vlaneseq
        %v3876 = vshrl.u32 %v3875, 7
        %v3877 = vsub.s32 %v3874, %v3876
        %v3878 = vrot.slane %v3870, %v3877
        %v3880 = vunpack.c.l.s4 1983009808
        %v3881 = vunpack.c.0.s8 %v3880
        %v3882 = vlaneseq
        %v3883 = vshrl.u32 %v3882, 7
        %v3884 = vsub.s32 %v3881, %v3883
        %v3885 = vrot.slane %v3871, %v3884
        %v3886 = vcombine.low %v3457, %v3781
        %v3887 = vcombine.high %v3457, %v3781
        %v3889 = vunpack.c.l.s4 1983009808
        %v3890 = vunpack.c.0.s8 %v3889
        %v3891 = vlaneseq
        %v3892 = vshrl.u32 %v3891, 7
        %v3893 = vsub.s32 %v3890, %v3892
        %v3894 = vrot.slane %v3886, %v3893
        %v3896 = vunpack.c.l.s4 1983009808
        %v3897 = vunpack.c.0.s8 %v3896
        %v3898 = vlaneseq
        %v3899 = vshrl.u32 %v3898, 7
        %v3900 = vsub.s32 %v3897, %v3899
        %v3901 = vrot.slane %v3887, %v3900
        %v3902 = vcombine.low %v3878, %v3894
        %v3903 = vcombine.high %v3878, %v3894
        %v3905 = vunpack.c.l.s4 1934713408
        %v3906 = vunpack.c.0.s8 %v3905
        %v3907 = vlaneseq
        %v3908 = vshrl.u32 %v3907, 7
        %v3909 = vsub.s32 %v3906, %v3908
        %v3910 = vrot.slane %v3902, %v3909
        %v3912 = vunpack.c.l.s4 1934713408
        %v3913 = vunpack.c.0.s8 %v3912
        %v3914 = vlaneseq
        %v3915 = vshrl.u32 %v3914, 7
        %v3916 = vsub.s32 %v3913, %v3915
        %v3917 = vrot.slane %v3903, %v3916
        %v3918 = vcombine.low %v3885, %v3901
        %v3919 = vcombine.high %v3885, %v3901
        %v3921 = vunpack.c.l.s4 1934713408
        %v3922 = vunpack.c.0.s8 %v3921
        %v3923 = vlaneseq
        %v3924 = vshrl.u32 %v3923, 7
        %v3925 = vsub.s32 %v3922, %v3924
        %v3926 = vrot.slane %v3918, %v3925
        %v3928 = vunpack.c.l.s4 1934713408
        %v3929 = vunpack.c.0.s8 %v3928
        %v3930 = vlaneseq
        %v3931 = vshrl.u32 %v3930, 7
        %v3932 = vsub.s32 %v3929, %v3931
        %v3933 = vrot.slane %v3919, %v3932
        %v3934 = vcombine.high %v3910, 0.0
        %v3935 = vcombine.high %v3917, 0.0
        %v3936 = vcombine.high %v3926, 0.0
        %v3937 = vcombine.high %v3933, 0.0
        %v3938 = vcombine.low %v3300, %v3624
        %v3939 = vcombine.high %v3300, %v3624
        %v3941 = vunpack.c.l.s4 1983009808
        %v3942 = vunpack.c.0.s8 %v3941
        %v3943 = vlaneseq
        %v3944 = vshrl.u32 %v3943, 7
        %v3945 = vsub.s32 %v3942, %v3944
        %v3946 = vrot.slane %v3938, %v3945
        %v3948 = vunpack.c.l.s4 1983009808
        %v3949 = vunpack.c.0.s8 %v3948
        %v3950 = vlaneseq
        %v3951 = vshrl.u32 %v3950, 7
        %v3952 = vsub.s32 %v3949, %v3951
        %v3953 = vrot.slane %v3939, %v3952
        %v3954 = vcombine.low %v3462, %v3786
        %v3955 = vcombine.high %v3462, %v3786
        %v3957 = vunpack.c.l.s4 1983009808
        %v3958 = vunpack.c.0.s8 %v3957
        %v3959 = vlaneseq
        %v3960 = vshrl.u32 %v3959, 7
        %v3961 = vsub.s32 %v3958, %v3960
        %v3962 = vrot.slane %v3954, %v3961
        %v3964 = vunpack.c.l.s4 1983009808
        %v3965 = vunpack.c.0.s8 %v3964
        %v3966 = vlaneseq
        %v3967 = vshrl.u32 %v3966, 7
        %v3968 = vsub.s32 %v3965, %v3967
        %v3969 = vrot.slane %v3955, %v3968
        %v3970 = vcombine.low %v3946, %v3962
        %v3971 = vcombine.high %v3946, %v3962
        %v3973 = vunpack.c.l.s4 1934713408
        %v3974 = vunpack.c.0.s8 %v3973
        %v3975 = vlaneseq
        %v3976 = vshrl.u32 %v3975, 7
        %v3977 = vsub.s32 %v3974, %v3976
        %v3978 = vrot.slane %v3970, %v3977
        %v3980 = vunpack.c.l.s4 1934713408
        %v3981 = vunpack.c.0.s8 %v3980
        %v3982 = vlaneseq
        %v3983 = vshrl.u32 %v3982, 7
        %v3984 = vsub.s32 %v3981, %v3983
        %v3985 = vrot.slane %v3971, %v3984
        %v3986 = vcombine.low %v3953, %v3969
        %v3987 = vcombine.high %v3953, %v3969
        %v3989 = vunpack.c.l.s4 1934713408
        %v3990 = vunpack.c.0.s8 %v3989
        %v3991 = vlaneseq
        %v3992 = vshrl.u32 %v3991, 7
        %v3993 = vsub.s32 %v3990, %v3992
        %v3994 = vrot.slane %v3986, %v3993
        %v3996 = vunpack.c.l.s4 1934713408
        %v3997 = vunpack.c.0.s8 %v3996
        %v3998 = vlaneseq
        %v3999 = vshrl.u32 %v3998, 7
        %v4000 = vsub.s32 %v3997, %v3999
        %v4001 = vrot.slane %v3987, %v4000
        %v4002 = vcombine.high %v3978, 0.0
        %v4003 = vcombine.high %v3985, 0.0
        %v4004 = vcombine.high %v3994, 0.0
        %v4005 = vcombine.high %v4001, 0.0
        %v4006 = vcombine.low %v3376, %v3700
        %v4007 = vcombine.high %v3376, %v3700
        %v4009 = vunpack.c.l.s4 1983009808
        %v4010 = vunpack.c.0.s8 %v4009
        %v4011 = vlaneseq
        %v4012 = vshrl.u32 %v4011, 7
        %v4013 = vsub.s32 %v4010, %v4012
        %v4014 = vrot.slane %v4006, %v4013
        %v4016 = vunpack.c.l.s4 1983009808
        %v4017 = vunpack.c.0.s8 %v4016
        %v4018 = vlaneseq
        %v4019 = vshrl.u32 %v4018, 7
        %v4020 = vsub.s32 %v4017, %v4019
        %v4021 = vrot.slane %v4007, %v4020
        %v4022 = vcombine.low %v3538, %v3862
        %v4023 = vcombine.high %v3538, %v3862
        %v4025 = vunpack.c.l.s4 1983009808
        %v4026 = vunpack.c.0.s8 %v4025
        %v4027 = vlaneseq
        %v4028 = vshrl.u32 %v4027, 7
        %v4029 = vsub.s32 %v4026, %v4028
        %v4030 = vrot.slane %v4022, %v4029
        %v4032 = vunpack.c.l.s4 1983009808
        %v4033 = vunpack.c.0.s8 %v4032
        %v4034 = vlaneseq
        %v4035 = vshrl.u32 %v4034, 7
        %v4036 = vsub.s32 %v4033, %v4035
        %v4037 = vrot.slane %v4023, %v4036
        %v4038 = vcombine.low %v4014, %v4030
        %v4039 = vcombine.high %v4014, %v4030
        %v4041 = vunpack.c.l.s4 1934713408
        %v4042 = vunpack.c.0.s8 %v4041
        %v4043 = vlaneseq
        %v4044 = vshrl.u32 %v4043, 7
        %v4045 = vsub.s32 %v4042, %v4044
        %v4046 = vrot.slane %v4038, %v4045
        %v4048 = vunpack.c.l.s4 1934713408
        %v4049 = vunpack.c.0.s8 %v4048
        %v4050 = vlaneseq
        %v4051 = vshrl.u32 %v4050, 7
        %v4052 = vsub.s32 %v4049, %v4051
        %v4053 = vrot.slane %v4039, %v4052
        %v4054 = vcombine.low %v4021, %v4037
        %v4055 = vcombine.high %v4021, %v4037
        %v4057 = vunpack.c.l.s4 1934713408
        %v4058 = vunpack.c.0.s8 %v4057
        %v4059 = vlaneseq
        %v4060 = vshrl.u32 %v4059, 7
        %v4061 = vsub.s32 %v4058, %v4060
        %v4062 = vrot.slane %v4054, %v4061
        %v4064 = vunpack.c.l.s4 1934713408
        %v4065 = vunpack.c.0.s8 %v4064
        %v4066 = vlaneseq
        %v4067 = vshrl.u32 %v4066, 7
        %v4068 = vsub.s32 %v4065, %v4067
        %v4069 = vrot.slane %v4055, %v4068
        %v4070 = vcombine.high %v4046, 0.0
        %v4071 = vcombine.high %v4053, 0.0
        %v4072 = vcombine.high %v4062, 0.0
        %v4073 = vcombine.high %v4069, 0.0
        %v4074 = vcombine.low %v3381, %v3705
        %v4075 = vcombine.high %v3381, %v3705
        %v4077 = vunpack.c.l.s4 1983009808
        %v4078 = vunpack.c.0.s8 %v4077
        %v4079 = vlaneseq
        %v4080 = vshrl.u32 %v4079, 7
        %v4081 = vsub.s32 %v4078, %v4080
        %v4082 = vrot.slane %v4074, %v4081
        %v4084 = vunpack.c.l.s4 1983009808
        %v4085 = vunpack.c.0.s8 %v4084
        %v4086 = vlaneseq
        %v4087 = vshrl.u32 %v4086, 7
        %v4088 = vsub.s32 %v4085, %v4087
        %v4089 = vrot.slane %v4075, %v4088
        %v4090 = vcombine.low %v3543, %v3867
        %v4091 = vcombine.high %v3543, %v3867
        %v4093 = vunpack.c.l.s4 1983009808
        %v4094 = vunpack.c.0.s8 %v4093
        %v4095 = vlaneseq
        %v4096 = vshrl.u32 %v4095, 7
        %v4097 = vsub.s32 %v4094, %v4096
        %v4098 = vrot.slane %v4090, %v4097
        %v4100 = vunpack.c.l.s4 1983009808
        %v4101 = vunpack.c.0.s8 %v4100
        %v4102 = vlaneseq
        %v4103 = vshrl.u32 %v4102, 7
        %v4104 = vsub.s32 %v4101, %v4103
        %v4105 = vrot.slane %v4091, %v4104
        %v4106 = vcombine.low %v4082, %v4098
        %v4107 = vcombine.high %v4082, %v4098
        %v4109 = vunpack.c.l.s4 1934713408
        %v4110 = vunpack.c.0.s8 %v4109
        %v4111 = vlaneseq
        %v4112 = vshrl.u32 %v4111, 7
        %v4113 = vsub.s32 %v4110, %v4112
        %v4114 = vrot.slane %v4106, %v4113
        %v4116 = vunpack.c.l.s4 1934713408
        %v4117 = vunpack.c.0.s8 %v4116
        %v4118 = vlaneseq
        %v4119 = vshrl.u32 %v4118, 7
        %v4120 = vsub.s32 %v4117, %v4119
        %v4121 = vrot.slane %v4107, %v4120
        %v4122 = vcombine.low %v4089, %v4105
        %v4123 = vcombine.high %v4089, %v4105
        %v4125 = vunpack.c.l.s4 1934713408
        %v4126 = vunpack.c.0.s8 %v4125
        %v4127 = vlaneseq
        %v4128 = vshrl.u32 %v4127, 7
        %v4129 = vsub.s32 %v4126, %v4128
        %v4130 = vrot.slane %v4122, %v4129
        %v4132 = vunpack.c.l.s4 1934713408
        %v4133 = vunpack.c.0.s8 %v4132
        %v4134 = vlaneseq
        %v4135 = vshrl.u32 %v4134, 7
        %v4136 = vsub.s32 %v4133, %v4135
        %v4137 = vrot.slane %v4123, %v4136
        %v4138 = vcombine.high %v4114, 0.0
        %v4139 = vcombine.high %v4121, 0.0
        %v4140 = vcombine.high %v4130, 0.0
        %v4141 = vcombine.high %v4137, 0.0
        %v4142 = vcombine.low %v3910, %v3917
        %v4144 = vunpack.c.l.s4 1983009808
        %v4145 = vunpack.c.0.s8 %v4144
        %v4146 = vlaneseq
        %v4147 = vshrl.u32 %v4146, 7
        %v4148 = vsub.s32 %v4145, %v4147
        %v4149 = vrot.slane %v4142, %v4148
        %v4150 = vcombine.low %v3934, %v3935
        %v4152 = vunpack.c.l.s4 1983009808
        %v4153 = vunpack.c.0.s8 %v4152
        %v4154 = vlaneseq
        %v4155 = vshrl.u32 %v4154, 7
        %v4156 = vsub.s32 %v4153, %v4155
        %v4157 = vrot.slane %v4150, %v4156
        %v4158 = vcombine.low %v3926, %v3933
        %v4160 = vunpack.c.l.s4 1983009808
        %v4161 = vunpack.c.0.s8 %v4160
        %v4162 = vlaneseq
        %v4163 = vshrl.u32 %v4162, 7
        %v4164 = vsub.s32 %v4161, %v4163
        %v4165 = vrot.slane %v4158, %v4164
        %v4166 = vcombine.low %v3936, %v3937
        %v4168 = vunpack.c.l.s4 1983009808
        %v4169 = vunpack.c.0.s8 %v4168
        %v4170 = vlaneseq
        %v4171 = vshrl.u32 %v4170, 7
        %v4172 = vsub.s32 %v4169, %v4171
        %v4173 = vrot.slane %v4166, %v4172
        %v4174 = vcombine.low %v4149, %v4157
        %v4175 = vcombine.high %v4149, %v4157
        %v4177 = vunpack.c.l.s4 1934713408
        %v4178 = vunpack.c.0.s8 %v4177
        %v4179 = vlaneseq
        %v4180 = vshrl.u32 %v4179, 7
        %v4181 = vsub.s32 %v4178, %v4180
        %v4182 = vrot.slane %v4174, %v4181
        %v4184 = vunpack.c.l.s4 1934713408
        %v4185 = vunpack.c.0.s8 %v4184
        %v4186 = vlaneseq
        %v4187 = vshrl.u32 %v4186, 7
        %v4188 = vsub.s32 %v4185, %v4187
        %v4189 = vrot.slane %v4175, %v4188
        %v4190 = vcombine.low %v4165, %v4173
        %v4191 = vcombine.high %v4165, %v4173
        %v4193 = vunpack.c.l.s4 1934713408
        %v4194 = vunpack.c.0.s8 %v4193
        %v4195 = vlaneseq
        %v4196 = vshrl.u32 %v4195, 7
        %v4197 = vsub.s32 %v4194, %v4196
        %v4198 = vrot.slane %v4190, %v4197
        %v4200 = vunpack.c.l.s4 1934713408
        %v4201 = vunpack.c.0.s8 %v4200
        %v4202 = vlaneseq
        %v4203 = vshrl.u32 %v4202, 7
        %v4204 = vsub.s32 %v4201, %v4203
        %v4205 = vrot.slane %v4191, %v4204
        %v4206 = vcombine.low %v4182, %v4198
        %v4207 = vcombine.high %v4182, %v4198
        %v4208 = vcombine.low %v4189, %v4205
        %v4209 = vcombine.high %v4189, %v4205
        %v4210 = vcombine.low %v3978, %v3985
        %v4212 = vunpack.c.l.s4 1983009808
        %v4213 = vunpack.c.0.s8 %v4212
        %v4214 = vlaneseq
        %v4215 = vshrl.u32 %v4214, 7
        %v4216 = vsub.s32 %v4213, %v4215
        %v4217 = vrot.slane %v4210, %v4216
        %v4218 = vcombine.low %v4002, %v4003
        %v4220 = vunpack.c.l.s4 1983009808
        %v4221 = vunpack.c.0.s8 %v4220
        %v4222 = vlaneseq
        %v4223 = vshrl.u32 %v4222, 7
        %v4224 = vsub.s32 %v4221, %v4223
        %v4225 = vrot.slane %v4218, %v4224
        %v4226 = vcombine.low %v3994, %v4001
        %v4228 = vunpack.c.l.s4 1983009808
        %v4229 = vunpack.c.0.s8 %v4228
        %v4230 = vlaneseq
        %v4231 = vshrl.u32 %v4230, 7
        %v4232 = vsub.s32 %v4229, %v4231
        %v4233 = vrot.slane %v4226, %v4232
        %v4234 = vcombine.low %v4004, %v4005
        %v4236 = vunpack.c.l.s4 1983009808
        %v4237 = vunpack.c.0.s8 %v4236
        %v4238 = vlaneseq
        %v4239 = vshrl.u32 %v4238, 7
        %v4240 = vsub.s32 %v4237, %v4239
        %v4241 = vrot.slane %v4234, %v4240
        %v4242 = vcombine.low %v4217, %v4225
        %v4243 = vcombine.high %v4217, %v4225
        %v4245 = vunpack.c.l.s4 1934713408
        %v4246 = vunpack.c.0.s8 %v4245
        %v4247 = vlaneseq
        %v4248 = vshrl.u32 %v4247, 7
        %v4249 = vsub.s32 %v4246, %v4248
        %v4250 = vrot.slane %v4242, %v4249
        %v4252 = vunpack.c.l.s4 1934713408
        %v4253 = vunpack.c.0.s8 %v4252
        %v4254 = vlaneseq
        %v4255 = vshrl.u32 %v4254, 7
        %v4256 = vsub.s32 %v4253, %v4255
        %v4257 = vrot.slane %v4243, %v4256
        %v4258 = vcombine.low %v4233, %v4241
        %v4259 = vcombine.high %v4233, %v4241
        %v4261 = vunpack.c.l.s4 1934713408
        %v4262 = vunpack.c.0.s8 %v4261
        %v4263 = vlaneseq
        %v4264 = vshrl.u32 %v4263, 7
        %v4265 = vsub.s32 %v4262, %v4264
        %v4266 = vrot.slane %v4258, %v4265
        %v4268 = vunpack.c.l.s4 1934713408
        %v4269 = vunpack.c.0.s8 %v4268
        %v4270 = vlaneseq
        %v4271 = vshrl.u32 %v4270, 7
        %v4272 = vsub.s32 %v4269, %v4271
        %v4273 = vrot.slane %v4259, %v4272
        %v4274 = vcombine.low %v4250, %v4266
        %v4275 = vcombine.high %v4250, %v4266
        %v4276 = vcombine.low %v4257, %v4273
        %v4277 = vcombine.high %v4257, %v4273
        %v4278 = vcombine.low %v4046, %v4053
        %v4280 = vunpack.c.l.s4 1983009808
        %v4281 = vunpack.c.0.s8 %v4280
        %v4282 = vlaneseq
        %v4283 = vshrl.u32 %v4282, 7
        %v4284 = vsub.s32 %v4281, %v4283
        %v4285 = vrot.slane %v4278, %v4284
        %v4286 = vcombine.low %v4070, %v4071
        %v4288 = vunpack.c.l.s4 1983009808
        %v4289 = vunpack.c.0.s8 %v4288
        %v4290 = vlaneseq
        %v4291 = vshrl.u32 %v4290, 7
        %v4292 = vsub.s32 %v4289, %v4291
        %v4293 = vrot.slane %v4286, %v4292
        %v4294 = vcombine.low %v4062, %v4069
        %v4296 = vunpack.c.l.s4 1983009808
        %v4297 = vunpack.c.0.s8 %v4296
        %v4298 = vlaneseq
        %v4299 = vshrl.u32 %v4298, 7
        %v4300 = vsub.s32 %v4297, %v4299
        %v4301 = vrot.slane %v4294, %v4300
        %v4302 = vcombine.low %v4072, %v4073
        %v4304 = vunpack.c.l.s4 1983009808
        %v4305 = vunpack.c.0.s8 %v4304
        %v4306 = vlaneseq
        %v4307 = vshrl.u32 %v4306, 7
        %v4308 = vsub.s32 %v4305, %v4307
        %v4309 = vrot.slane %v4302, %v4308
        %v4310 = vcombine.low %v4285, %v4293
        %v4311 = vcombine.high %v4285, %v4293
        %v4313 = vunpack.c.l.s4 1934713408
        %v4314 = vunpack.c.0.s8 %v4313
        %v4315 = vlaneseq
        %v4316 = vshrl.u32 %v4315, 7
        %v4317 = vsub.s32 %v4314, %v4316
        %v4318 = vrot.slane %v4310, %v4317
        %v4320 = vunpack.c.l.s4 1934713408
        %v4321 = vunpack.c.0.s8 %v4320
        %v4322 = vlaneseq
        %v4323 = vshrl.u32 %v4322, 7
        %v4324 = vsub.s32 %v4321, %v4323
        %v4325 = vrot.slane %v4311, %v4324
        %v4326 = vcombine.low %v4301, %v4309
        %v4327 = vcombine.high %v4301, %v4309
        %v4329 = vunpack.c.l.s4 1934713408
        %v4330 = vunpack.c.0.s8 %v4329
        %v4331 = vlaneseq
        %v4332 = vshrl.u32 %v4331, 7
        %v4333 = vsub.s32 %v4330, %v4332
        %v4334 = vrot.slane %v4326, %v4333
        %v4336 = vunpack.c.l.s4 1934713408
        %v4337 = vunpack.c.0.s8 %v4336
        %v4338 = vlaneseq
        %v4339 = vshrl.u32 %v4338, 7
        %v4340 = vsub.s32 %v4337, %v4339
        %v4341 = vrot.slane %v4327, %v4340
        %v4342 = vcombine.low %v4318, %v4334
        %v4343 = vcombine.high %v4318, %v4334
        %v4344 = vcombine.low %v4325, %v4341
        %v4345 = vcombine.high %v4325, %v4341
        %v4346 = vcombine.low %v4114, %v4121
        %v4348 = vunpack.c.l.s4 1983009808
        %v4349 = vunpack.c.0.s8 %v4348
        %v4350 = vlaneseq
        %v4351 = vshrl.u32 %v4350, 7
        %v4352 = vsub.s32 %v4349, %v4351
        %v4353 = vrot.slane %v4346, %v4352
        %v4354 = vcombine.low %v4138, %v4139
        %v4356 = vunpack.c.l.s4 1983009808
        %v4357 = vunpack.c.0.s8 %v4356
        %v4358 = vlaneseq
        %v4359 = vshrl.u32 %v4358, 7
        %v4360 = vsub.s32 %v4357, %v4359
        %v4361 = vrot.slane %v4354, %v4360
        %v4362 = vcombine.low %v4130, %v4137
        %v4364 = vunpack.c.l.s4 1983009808
        %v4365 = vunpack.c.0.s8 %v4364
        %v4366 = vlaneseq
        %v4367 = vshrl.u32 %v4366, 7
        %v4368 = vsub.s32 %v4365, %v4367
        %v4369 = vrot.slane %v4362, %v4368
        %v4370 = vcombine.low %v4140, %v4141
        %v4372 = vunpack.c.l.s4 1983009808
        %v4373 = vunpack.c.0.s8 %v4372
        %v4374 = vlaneseq
        %v4375 = vshrl.u32 %v4374, 7
        %v4376 = vsub.s32 %v4373, %v4375
        %v4377 = vrot.slane %v4370, %v4376
        %v4378 = vcombine.low %v4353, %v4361
        %v4379 = vcombine.high %v4353, %v4361
        %v4381 = vunpack.c.l.s4 1934713408
        %v4382 = vunpack.c.0.s8 %v4381
        %v4383 = vlaneseq
        %v4384 = vshrl.u32 %v4383, 7
        %v4385 = vsub.s32 %v4382, %v4384
        %v4386 = vrot.slane %v4378, %v4385
        %v4388 = vunpack.c.l.s4 1934713408
        %v4389 = vunpack.c.0.s8 %v4388
        %v4390 = vlaneseq
        %v4391 = vshrl.u32 %v4390, 7
        %v4392 = vsub.s32 %v4389, %v4391
        %v4393 = vrot.slane %v4379, %v4392
        %v4394 = vcombine.low %v4369, %v4377
        %v4395 = vcombine.high %v4369, %v4377
        %v4397 = vunpack.c.l.s4 1934713408
        %v4398 = vunpack.c.0.s8 %v4397
        %v4399 = vlaneseq
        %v4400 = vshrl.u32 %v4399, 7
        %v4401 = vsub.s32 %v4398, %v4400
        %v4402 = vrot.slane %v4394, %v4401
        %v4404 = vunpack.c.l.s4 1934713408
        %v4405 = vunpack.c.0.s8 %v4404
        %v4406 = vlaneseq
        %v4407 = vshrl.u32 %v4406, 7
        %v4408 = vsub.s32 %v4405, %v4407
        %v4409 = vrot.slane %v4395, %v4408
        %v4410 = vcombine.low %v4386, %v4402
        %v4411 = vcombine.high %v4386, %v4402
        %v4412 = vcombine.low %v4393, %v4409
        %v4413 = vcombine.high %v4393, %v4409
        %4418 = vrot.lane.b32.xlu0 %v4207, 16
        %v4419 = vpop.permute.xlu0 %4418
        %4420 = vrot.lane.b32.xlu0 %v4275, 16
        %v4421 = vpop.permute.xlu0 %4420
        %4422 = vrot.lane.b32.xlu0 %v4343, 16
        %v4423 = vpop.permute.xlu0 %4422
        %4424 = vrot.lane.b32.xlu0 %v4411, 16
        %v4425 = vpop.permute.xlu0 %4424
        %4434 = vrot.lane.b32.xlu0 %v4208, 32
        %v4435 = vpop.permute.xlu0 %4434
        %4436 = vrot.lane.b32.xlu0 %v4276, 32
        %v4437 = vpop.permute.xlu0 %4436
        %4438 = vrot.lane.b32.xlu0 %v4344, 32
        %v4439 = vpop.permute.xlu0 %4438
        %4440 = vrot.lane.b32.xlu0 %v4412, 32
        %v4441 = vpop.permute.xlu0 %4440
        %4450 = vrot.lane.b32.xlu0 %v4209, 48
        %v4451 = vpop.permute.xlu0 %4450
        %4452 = vrot.lane.b32.xlu0 %v4277, 48
        %v4453 = vpop.permute.xlu0 %4452
        %4454 = vrot.lane.b32.xlu0 %v4345, 48
        %v4455 = vpop.permute.xlu0 %4454
        %4456 = vrot.lane.b32.xlu0 %v4413, 48
        %v4457 = vpop.permute.xlu0 %4456
        %v4462 = vsel %vm2301, %v4206, %v4419
        %v4463 = vsel %vm2301, %v4274, %v4421
        %v4464 = vsel %vm2301, %v4342, %v4423
        %v4465 = vsel %vm2301, %v4410, %v4425
        %vm4466 = vcmask 261120
        %v4467 = vsel %vm4466, %v4462, %v4435
        %v4468 = vsel %vm4466, %v4463, %v4437
        %v4469 = vsel %vm4466, %v4464, %v4439
        %v4470 = vsel %vm4466, %v4465, %v4441
        %vm4471 = vcmask 392192
        %v4472 = vsel %vm4471, %v4467, %v4451
        %v4473 = vsel %vm4471, %v4468, %v4453
        %v4474 = vsel %vm4471, %v4469, %v4455
        %v4475 = vsel %vm4471, %v4470, %v4457
        %v4476 = vld [vmem:[%s389] sm:$0xff]
        %v4477 = vld [vmem:[%s389 + $0x8] sm:$0xff]
        %v4478 = vld [vmem:[%s389 + $0x10] sm:$0xff]
        %v4479 = vld [vmem:[%s389 + $0x18] sm:$0xff]
        %v4480 = vld [vmem:[%s389 + $0x20] sm:$0xff]
        %v4481 = vld [vmem:[%s389 + $0x28] sm:$0xff]
        %v4482 = vld [vmem:[%s389 + $0x30] sm:$0xff]
        %v4483 = vld [vmem:[%s389 + $0x38] sm:$0xff]
        %v4484 = vlaneseq
        %v4485 = vshrl.u32 %v4484, 7
        %v4486 = vsub.s32 1, %v4485
        %v4487 = vrot.slane %v413, %v4486
        %v4489 = vsel %vm439, %v4472, 0
        %v4492 = vsel %vm439, %v4473, 0
        %v4495 = vsel %vm439, %v4474, 0
        %v4498 = vsel %vm439, %v4475, 0
        %4500 = vmatprep.subr.mxu0 0.0
        %4501 = vmatpush1.msra.mxu0 %v4476
        %4502 = vmatprep.subr.mxu0 0.0
        %4503 = vmatpush1.msra.mxu0 %v4477
        %4504 = vmatprep.subr.mxu0 0.0
        %4505 = vmatpush1.msra.mxu0 %v4478
        %4506 = vmatprep.subr.mxu0 0.0
        %4507 = vmatpush1.msra.mxu0 %v4479
        %4508 = vmatprep.subr.mxu0 0.0
        %4509 = vmatpush1.msra.mxu0 %v4480
        %4510 = vmatprep.subr.mxu0 0.0
        %4511 = vmatpush1.msra.mxu0 %v4481
        %4512 = vmatprep.subr.mxu0 0.0
        %4513 = vmatpush1.msra.mxu0 %v4482
        %4514 = vmatprep.subr.mxu0 0.0
        %4515 = vmatpush1.msra.mxu0 %v4483
        %4516 = vmatprep.subr.mxu0 0.0
        %4517 = vmatpush1.msra.mxu0 0.0
        %4518 = vmatprep.subr.mxu0 0.0
        %4519 = vmatpush1.msra.mxu0 0.0
        %4520 = vmatprep.subr.mxu0 0.0
        %4521 = vmatpush1.msra.mxu0 0.0
        %4522 = vmatprep.subr.mxu0 0.0
        %4523 = vmatpush1.msra.mxu0 0.0
        %4524 = vmatprep.subr.mxu0 0.0
        %4525 = vmatpush1.msra.mxu0 0.0
        %4526 = vmatprep.subr.mxu0 0.0
        %4527 = vmatpush1.msra.mxu0 0.0
        %4528 = vmatprep.subr.mxu0 0.0
        %4529 = vmatpush1.msra.mxu0 0.0
        %4530 = vmatprep.subr.mxu0 0.0
        %4531 = vmatpush1.msra.mxu0 0.0
        %4532 = vmatprep.subr.mxu0 0.0
        %4533 = vmatpush1.msra.mxu0 0.0
        %4534 = vmatprep.subr.mxu0 0.0
        %4535 = vmatpush1.msra.mxu0 0.0
        %4536 = vmatprep.subr.mxu0 0.0
        %4537 = vmatpush1.msra.mxu0 0.0
        %4538 = vmatprep.subr.mxu0 0.0
        %4539 = vmatpush1.msra.mxu0 0.0
        %4540 = vmatprep.subr.mxu0 0.0
        %4541 = vmatpush1.msra.mxu0 0.0
        %4542 = vmatprep.subr.mxu0 0.0
        %4543 = vmatpush1.msra.mxu0 0.0
        %4544 = vmatprep.subr.mxu0 0.0
        %4545 = vmatpush1.msra.mxu0 0.0
        %4546 = vmatprep.subr.mxu0 0.0
        %4547 = vmatpush1.msra.mxu0 0.0
        %4548 = vmatprep.subr.mxu0 0.0
        %4549 = vmatpush1.msra.mxu0 0.0
        %4550 = vmatprep.subr.mxu0 0.0
        %4551 = vmatpush1.msra.mxu0 0.0
        %4552 = vmatprep.subr.mxu0 0.0
        %4553 = vmatpush1.msra.mxu0 0.0
        %4554 = vmatprep.subr.mxu0 0.0
        %4555 = vmatpush1.msra.mxu0 0.0
        %4556 = vmatprep.subr.mxu0 0.0
        %4557 = vmatpush1.msra.mxu0 0.0
        %4558 = vmatprep.subr.mxu0 0.0
        %4559 = vmatpush1.msra.mxu0 0.0
        %4560 = vmatprep.subr.mxu0 0.0
        %4561 = vmatpush1.msra.mxu0 0.0
        %4562 = vmatprep.subr.mxu0 0.0
        %4563 = vmatpush1.msra.mxu0 0.0
        %4564 = vmatprep.mubr.f32.mxu0 0.0
        %4565 = vmatmul.mubr.f32.gmra.mrb[0].mxu0 %v4489
        %v4566 = vpop.f32.mrb[0].mxu0
        %v4567 = vadd.f32 %v4487, %v4566
        %v4568 = vpop.f32.mrb[0].mxu0
        %4569 = vmatprep.mubr.f32.mxu0 0.0
        %4570 = vmatmul.mubr.f32.gmra.mrb[0].mxu0 %v4492
        %v4571 = vpop.f32.mrb[0].mxu0
        %v4572 = vadd.f32 %v4487, %v4571
        %v4573 = vpop.f32.mrb[0].mxu0
        %4574 = vmatprep.mubr.f32.mxu0 0.0
        %4575 = vmatmul.mubr.f32.gmra.mrb[0].mxu0 %v4495
        %v4576 = vpop.f32.mrb[0].mxu0
        %v4577 = vadd.f32 %v4487, %v4576
        %v4578 = vpop.f32.mrb[0].mxu0
        %4579 = vmatprep.mubr.f32.mxu0 0.0
        %4580 = vmatmul.mubr.f32.gmra.mrb[0].mxu0 %v4498
        %v4581 = vpop.f32.mrb[0].mxu0
        %v4582 = vadd.f32 %v4487, %v4581
        %v4583 = vpop.f32.mrb[0].mxu0
        %4584 = vdwg.mxu0
        %v4585 = vadd.f32 %v409, %v4567
        %v4586 = vadd.f32 %v410, %v4572
        %v4587 = vadd.f32 %v411, %v4577
        %v4588 = vadd.f32 %v412, %v4582
        %v4589 = vsel %vm439, %v4585, 0.0
        %4590 = vadd.xlane.f32.xlu0 %v4589
        %v4591 = vpop.xlane.xlu0 %4590
        %v4592 = vsel %vm439, %v4586, 0.0
        %4593 = vadd.xlane.f32.xlu0 %v4592
        %v4594 = vpop.xlane.xlu0 %4593
        %v4595 = vsel %vm439, %v4587, 0.0
        %4596 = vadd.xlane.f32.xlu0 %v4595
        %v4597 = vpop.xlane.xlu0 %4596
        %v4598 = vsel %vm439, %v4588, 0.0
        %4599 = vadd.xlane.f32.xlu0 %v4598
        %v4600 = vpop.xlane.xlu0 %4599
        %v4601 = vrcp.pop 64.0
        %v4602 = vmul.f32 %v4591, %v4601
        %v4603 = vmul.f32 %v4594, %v4601
        %v4604 = vmul.f32 %v4597, %v4601
        %v4605 = vmul.f32 %v4600, %v4601
        %v4606 = vsub.f32 %v4585, %v4602
        %v4607 = vsub.f32 %v4586, %v4603
        %v4608 = vsub.f32 %v4587, %v4604
        %v4609 = vsub.f32 %v4588, %v4605
        %v4610 = vmul.f32 %v4606, %v4606
        %v4611 = vmul.f32 %v4607, %v4607
        %v4612 = vmul.f32 %v4608, %v4608
        %v4613 = vmul.f32 %v4609, %v4609
        %v4614 = vsel %vm439, %v4610, 0.0
        %4615 = vadd.xlane.f32.xlu0 %v4614
        %v4616 = vpop.xlane.xlu0 %4615
        %v4617 = vsel %vm439, %v4611, 0.0
        %4618 = vadd.xlane.f32.xlu0 %v4617
        %v4619 = vpop.xlane.xlu0 %4618
        %v4620 = vsel %vm439, %v4612, 0.0
        %4621 = vadd.xlane.f32.xlu0 %v4620
        %v4622 = vpop.xlane.xlu0 %4621
        %v4623 = vsel %vm439, %v4613, 0.0
        %4624 = vadd.xlane.f32.xlu0 %v4623
        %v4625 = vpop.xlane.xlu0 %4624
        %v4626 = vmul.f32 %v4616, %v4601
        %v4627 = vmul.f32 %v4619, %v4601
        %v4628 = vmul.f32 %v4622, %v4601
        %v4629 = vmul.f32 %v4625, %v4601
        %v4630 = vadd.f32 %v4626, 1e-05
        %v4631 = vadd.f32 %v4627, 1e-05
        %v4632 = vadd.f32 %v4628, 1e-05
        %v4633 = vadd.f32 %v4629, 1e-05
        %v4634 = vrsqrt.pop %v4630
        %v4635 = vrsqrt.pop %v4631
        %v4636 = vrsqrt.pop %v4632
        %v4637 = vrsqrt.pop %v4633
        %v4638 = vmul.f32 %v4606, %v4634
        %v4639 = vmul.f32 %v4607, %v4635
        %v4640 = vmul.f32 %v4608, %v4636
        %v4641 = vmul.f32 %v4609, %v4637
        %v4642 = vlaneseq
        %v4643 = vshrl.u32 %v4642, 7
        %v4644 = vsub.s32 4, %v4643
        %v4645 = vrot.slane %v413, %v4644
        %v4646 = vmul.f32 %v4638, %v4645
        %v4647 = vmul.f32 %v4639, %v4645
        %v4648 = vmul.f32 %v4640, %v4645
        %v4649 = vmul.f32 %v4641, %v4645
        %v4650 = vlaneseq
        %v4651 = vshrl.u32 %v4650, 7
        %v4652 = vsub.s32 5, %v4651
        %v4653 = vrot.slane %v413, %v4652
        %v4654 = vadd.f32 %v4646, %v4653
        %v4655 = vadd.f32 %v4647, %v4653
        %v4656 = vadd.f32 %v4648, %v4653
        %v4657 = vadd.f32 %v4649, %v4653
        %v4658 = vld [vmem:[%s326] sm:$0xff]
        %v4659 = vld [vmem:[%s326 + $0x8] sm:$0xff]
        %v4660 = vld [vmem:[%s326 + $0x10] sm:$0xff]
        %v4661 = vld [vmem:[%s326 + $0x18] sm:$0xff]
        %v4662 = vld [vmem:[%s326 + $0x20] sm:$0xff]
        %v4663 = vld [vmem:[%s326 + $0x28] sm:$0xff]
        %v4664 = vld [vmem:[%s326 + $0x30] sm:$0xff]
        %v4665 = vld [vmem:[%s326 + $0x38] sm:$0xff]
        %v4666 = vlaneseq
        %v4667 = vshrl.u32 %v4666, 7
        %v4668 = vsub.s32 2, %v4667
        %v4669 = vrot.slane %v413, %v4668
        %v4671 = vsel %vm439, %v4654, 0
        %v4674 = vsel %vm439, %v4655, 0
        %v4677 = vsel %vm439, %v4656, 0
        %v4680 = vsel %vm439, %v4657, 0
        %4682 = vmatprep.subr.mxu0 0.0
        %4683 = vmatpush1.msra.mxu0 %v4658
        %4684 = vmatprep.subr.mxu0 0.0
        %4685 = vmatpush1.msra.mxu0 %v4659
        %4686 = vmatprep.subr.mxu0 0.0
        %4687 = vmatpush1.msra.mxu0 %v4660
        %4688 = vmatprep.subr.mxu0 0.0
        %4689 = vmatpush1.msra.mxu0 %v4661
        %4690 = vmatprep.subr.mxu0 0.0
        %4691 = vmatpush1.msra.mxu0 %v4662
        %4692 = vmatprep.subr.mxu0 0.0
        %4693 = vmatpush1.msra.mxu0 %v4663
        %4694 = vmatprep.subr.mxu0 0.0
        %4695 = vmatpush1.msra.mxu0 %v4664
        %4696 = vmatprep.subr.mxu0 0.0
        %4697 = vmatpush1.msra.mxu0 %v4665
        %4698 = vmatprep.subr.mxu0 0.0
        %4699 = vmatpush1.msra.mxu0 0.0
        %4700 = vmatprep.subr.mxu0 0.0
        %4701 = vmatpush1.msra.mxu0 0.0
        %4702 = vmatprep.subr.mxu0 0.0
        %4703 = vmatpush1.msra.mxu0 0.0
        %4704 = vmatprep.subr.mxu0 0.0
        %4705 = vmatpush1.msra.mxu0 0.0
        %4706 = vmatprep.subr.mxu0 0.0
        %4707 = vmatpush1.msra.mxu0 0.0
        %4708 = vmatprep.subr.mxu0 0.0
        %4709 = vmatpush1.msra.mxu0 0.0
        %4710 = vmatprep.subr.mxu0 0.0
        %4711 = vmatpush1.msra.mxu0 0.0
        %4712 = vmatprep.subr.mxu0 0.0
        %4713 = vmatpush1.msra.mxu0 0.0
        %4714 = vmatprep.subr.mxu0 0.0
        %4715 = vmatpush1.msra.mxu0 0.0
        %4716 = vmatprep.subr.mxu0 0.0
        %4717 = vmatpush1.msra.mxu0 0.0
        %4718 = vmatprep.subr.mxu0 0.0
        %4719 = vmatpush1.msra.mxu0 0.0
        %4720 = vmatprep.subr.mxu0 0.0
        %4721 = vmatpush1.msra.mxu0 0.0
        %4722 = vmatprep.subr.mxu0 0.0
        %4723 = vmatpush1.msra.mxu0 0.0
        %4724 = vmatprep.subr.mxu0 0.0
        %4725 = vmatpush1.msra.mxu0 0.0
        %4726 = vmatprep.subr.mxu0 0.0
        %4727 = vmatpush1.msra.mxu0 0.0
        %4728 = vmatprep.subr.mxu0 0.0
        %4729 = vmatpush1.msra.mxu0 0.0
        %4730 = vmatprep.subr.mxu0 0.0
        %4731 = vmatpush1.msra.mxu0 0.0
        %4732 = vmatprep.subr.mxu0 0.0
        %4733 = vmatpush1.msra.mxu0 0.0
        %4734 = vmatprep.subr.mxu0 0.0
        %4735 = vmatpush1.msra.mxu0 0.0
        %4736 = vmatprep.subr.mxu0 0.0
        %4737 = vmatpush1.msra.mxu0 0.0
        %4738 = vmatprep.subr.mxu0 0.0
        %4739 = vmatpush1.msra.mxu0 0.0
        %4740 = vmatprep.subr.mxu0 0.0
        %4741 = vmatpush1.msra.mxu0 0.0
        %4742 = vmatprep.subr.mxu0 0.0
        %4743 = vmatpush1.msra.mxu0 0.0
        %4744 = vmatprep.subr.mxu0 0.0
        %4745 = vmatpush1.msra.mxu0 0.0
        %4746 = vmatprep.mubr.f32.mxu0 0.0
        %4747 = vmatmul.mubr.f32.gmra.mrb[0].mxu0 %v4671
        %v4748 = vpop.f32.mrb[0].mxu0
        %v4749 = vadd.f32 %v4669, %v4748
        %v4750 = vpop.f32.mrb[0].mxu0
        %4751 = vmatprep.mubr.f32.mxu0 0.0
        %4752 = vmatmul.mubr.f32.gmra.mrb[0].mxu0 %v4674
        %v4753 = vpop.f32.mrb[0].mxu0
        %v4754 = vadd.f32 %v4669, %v4753
        %v4755 = vpop.f32.mrb[0].mxu0
        %4756 = vmatprep.mubr.f32.mxu0 0.0
        %4757 = vmatmul.mubr.f32.gmra.mrb[0].mxu0 %v4677
        %v4758 = vpop.f32.mrb[0].mxu0
        %v4759 = vadd.f32 %v4669, %v4758
        %v4760 = vpop.f32.mrb[0].mxu0
        %4761 = vmatprep.mubr.f32.mxu0 0.0
        %4762 = vmatmul.mubr.f32.gmra.mrb[0].mxu0 %v4680
        %v4763 = vpop.f32.mrb[0].mxu0
        %v4764 = vadd.f32 %v4669, %v4763
        %v4765 = vpop.f32.mrb[0].mxu0
        %4766 = vdwg.mxu0
        %v4767 = vmax.f32 %v4749, 0.0
        %v4768 = vmax.f32 %v4754, 0.0
        %v4769 = vmax.f32 %v4759, 0.0
        %v4770 = vmax.f32 %v4764, 0.0
        %v4771 = vld [vmem:[%s394] sm:$0xff]
        %v4772 = vld [vmem:[%s394 + $0x8] sm:$0xff]
        %v4773 = vld [vmem:[%s394 + $0x10] sm:$0xff]
        %v4774 = vld [vmem:[%s394 + $0x18] sm:$0xff]
        %v4775 = vld [vmem:[%s394 + $0x20] sm:$0xff]
        %v4776 = vld [vmem:[%s394 + $0x28] sm:$0xff]
        %v4777 = vld [vmem:[%s394 + $0x30] sm:$0xff]
        %v4778 = vld [vmem:[%s394 + $0x38] sm:$0xff]
        %v4779 = vld [vmem:[%s394 + $0x40] sm:$0xff]
        %v4780 = vld [vmem:[%s394 + $0x48] sm:$0xff]
        %v4781 = vld [vmem:[%s394 + $0x50] sm:$0xff]
        %v4782 = vld [vmem:[%s394 + $0x58] sm:$0xff]
        %v4783 = vld [vmem:[%s394 + $0x60] sm:$0xff]
        %v4784 = vld [vmem:[%s394 + $0x68] sm:$0xff]
        %v4785 = vld [vmem:[%s394 + $0x70] sm:$0xff]
        %v4786 = vld [vmem:[%s394 + $0x78] sm:$0xff]
        %v4787 = vlaneseq
        %v4788 = vshrl.u32 %v4787, 7
        %v4789 = vsub.s32 3, %v4788
        %v4790 = vrot.slane %v413, %v4789
        %4791 = vmatprep.subr.mxu0 0.0
        %4792 = vmatpush1.msra.mxu0 %v4771
        %4793 = vmatprep.subr.mxu0 0.0
        %4794 = vmatpush1.msra.mxu0 %v4772
        %4795 = vmatprep.subr.mxu0 0.0
        %4796 = vmatpush1.msra.mxu0 %v4773
        %4797 = vmatprep.subr.mxu0 0.0
        %4798 = vmatpush1.msra.mxu0 %v4774
        %4799 = vmatprep.subr.mxu0 0.0
        %4800 = vmatpush1.msra.mxu0 %v4775
        %4801 = vmatprep.subr.mxu0 0.0
        %4802 = vmatpush1.msra.mxu0 %v4776
        %4803 = vmatprep.subr.mxu0 0.0
        %4804 = vmatpush1.msra.mxu0 %v4777
        %4805 = vmatprep.subr.mxu0 0.0
        %4806 = vmatpush1.msra.mxu0 %v4778
        %4807 = vmatprep.subr.mxu0 0.0
        %4808 = vmatpush1.msra.mxu0 %v4779
        %4809 = vmatprep.subr.mxu0 0.0
        %4810 = vmatpush1.msra.mxu0 %v4780
        %4811 = vmatprep.subr.mxu0 0.0
        %4812 = vmatpush1.msra.mxu0 %v4781
        %4813 = vmatprep.subr.mxu0 0.0
        %4814 = vmatpush1.msra.mxu0 %v4782
        %4815 = vmatprep.subr.mxu0 0.0
        %4816 = vmatpush1.msra.mxu0 %v4783
        %4817 = vmatprep.subr.mxu0 0.0
        %4818 = vmatpush1.msra.mxu0 %v4784
        %4819 = vmatprep.subr.mxu0 0.0
        %4820 = vmatpush1.msra.mxu0 %v4785
        %4821 = vmatprep.subr.mxu0 0.0
        %4822 = vmatpush1.msra.mxu0 %v4786
        %4823 = vmatprep.subr.mxu0 0.0
        %4824 = vmatpush1.msra.mxu0 0.0
        %4825 = vmatprep.subr.mxu0 0.0
        %4826 = vmatpush1.msra.mxu0 0.0
        %4827 = vmatprep.subr.mxu0 0.0
        %4828 = vmatpush1.msra.mxu0 0.0
        %4829 = vmatprep.subr.mxu0 0.0
        %4830 = vmatpush1.msra.mxu0 0.0
        %4831 = vmatprep.subr.mxu0 0.0
        %4832 = vmatpush1.msra.mxu0 0.0
        %4833 = vmatprep.subr.mxu0 0.0
        %4834 = vmatpush1.msra.mxu0 0.0
        %4835 = vmatprep.subr.mxu0 0.0
        %4836 = vmatpush1.msra.mxu0 0.0
        %4837 = vmatprep.subr.mxu0 0.0
        %4838 = vmatpush1.msra.mxu0 0.0
        %4839 = vmatprep.subr.mxu0 0.0
        %4840 = vmatpush1.msra.mxu0 0.0
        %4841 = vmatprep.subr.mxu0 0.0
        %4842 = vmatpush1.msra.mxu0 0.0
        %4843 = vmatprep.subr.mxu0 0.0
        %4844 = vmatpush1.msra.mxu0 0.0
        %4845 = vmatprep.subr.mxu0 0.0
        %4846 = vmatpush1.msra.mxu0 0.0
        %4847 = vmatprep.subr.mxu0 0.0
        %4848 = vmatpush1.msra.mxu0 0.0
        %4849 = vmatprep.subr.mxu0 0.0
        %4850 = vmatpush1.msra.mxu0 0.0
        %4851 = vmatprep.subr.mxu0 0.0
        %4852 = vmatpush1.msra.mxu0 0.0
        %4853 = vmatprep.subr.mxu0 0.0
        %4854 = vmatpush1.msra.mxu0 0.0
        %4855 = vmatprep.mubr.f32.mxu0 0.0
        %4856 = vmatmul.mubr.f32.gmra.mrb[0].mxu0 %v4767
        %v4857 = vpop.f32.mrb[0].mxu0
        %v4858 = vadd.f32 %v4790, %v4857
        %v4859 = vpop.f32.mrb[0].mxu0
        %4860 = vmatprep.mubr.f32.mxu0 0.0
        %4861 = vmatmul.mubr.f32.gmra.mrb[0].mxu0 %v4768
        %v4862 = vpop.f32.mrb[0].mxu0
        %v4863 = vadd.f32 %v4790, %v4862
        %v4864 = vpop.f32.mrb[0].mxu0
        %4865 = vmatprep.mubr.f32.mxu0 0.0
        %4866 = vmatmul.mubr.f32.gmra.mrb[0].mxu0 %v4769
        %v4867 = vpop.f32.mrb[0].mxu0
        %v4868 = vadd.f32 %v4790, %v4867
        %v4869 = vpop.f32.mrb[0].mxu0
        %4870 = vmatprep.mubr.f32.mxu0 0.0
        %4871 = vmatmul.mubr.f32.gmra.mrb[0].mxu0 %v4770
        %v4872 = vpop.f32.mrb[0].mxu0
        %v4873 = vadd.f32 %v4790, %v4872
        %v4874 = vpop.f32.mrb[0].mxu0
        %4875 = vdwg.mxu0
        %v4876 = vadd.f32 %v4654, %v4858
        %v4877 = vadd.f32 %v4655, %v4863
        %v4878 = vadd.f32 %v4656, %v4868
        %v4879 = vadd.f32 %v4657, %v4873
        %v4880 = vsel %vm439, %v4876, 0.0
        %4881 = vadd.xlane.f32.xlu0 %v4880
        %v4882 = vpop.xlane.xlu0 %4881
        %v4883 = vsel %vm439, %v4877, 0.0
        %4884 = vadd.xlane.f32.xlu0 %v4883
        %v4885 = vpop.xlane.xlu0 %4884
        %v4886 = vsel %vm439, %v4878, 0.0
        %4887 = vadd.xlane.f32.xlu0 %v4886
        %v4888 = vpop.xlane.xlu0 %4887
        %v4889 = vsel %vm439, %v4879, 0.0
        %4890 = vadd.xlane.f32.xlu0 %v4889
        %v4891 = vpop.xlane.xlu0 %4890
        %v4892 = vmul.f32 %v4882, %v4601
        %v4893 = vmul.f32 %v4885, %v4601
        %v4894 = vmul.f32 %v4888, %v4601
        %v4895 = vmul.f32 %v4891, %v4601
        %v4896 = vsub.f32 %v4876, %v4892
        %v4897 = vsub.f32 %v4877, %v4893
        %v4898 = vsub.f32 %v4878, %v4894
        %v4899 = vsub.f32 %v4879, %v4895
        %v4900 = vmul.f32 %v4896, %v4896
        %v4901 = vmul.f32 %v4897, %v4897
        %v4902 = vmul.f32 %v4898, %v4898
        %v4903 = vmul.f32 %v4899, %v4899
        %v4904 = vsel %vm439, %v4900, 0.0
        %4905 = vadd.xlane.f32.xlu0 %v4904
        %v4906 = vpop.xlane.xlu0 %4905
        %v4907 = vsel %vm439, %v4901, 0.0
        %4908 = vadd.xlane.f32.xlu0 %v4907
        %v4909 = vpop.xlane.xlu0 %4908
        %v4910 = vsel %vm439, %v4902, 0.0
        %4911 = vadd.xlane.f32.xlu0 %v4910
        %v4912 = vpop.xlane.xlu0 %4911
        %v4913 = vsel %vm439, %v4903, 0.0
        %4914 = vadd.xlane.f32.xlu0 %v4913
        %v4915 = vpop.xlane.xlu0 %4914
        %v4916 = vmul.f32 %v4906, %v4601
        %v4917 = vmul.f32 %v4909, %v4601
        %v4918 = vmul.f32 %v4912, %v4601
        %v4919 = vmul.f32 %v4915, %v4601
        %v4920 = vadd.f32 %v4916, 1e-05
        %v4921 = vadd.f32 %v4917, 1e-05
        %v4922 = vadd.f32 %v4918, 1e-05
        %v4923 = vadd.f32 %v4919, 1e-05
        %v4924 = vrsqrt.pop %v4920
        %v4925 = vrsqrt.pop %v4921
        %v4926 = vrsqrt.pop %v4922
        %v4927 = vrsqrt.pop %v4923
        %v4928 = vmul.f32 %v4896, %v4924
        %v4929 = vmul.f32 %v4897, %v4925
        %v4930 = vmul.f32 %v4898, %v4926
        %v4931 = vmul.f32 %v4899, %v4927
        %v4932 = vlaneseq
        %v4933 = vshrl.u32 %v4932, 7
        %v4934 = vsub.s32 6, %v4933
        %v4935 = vrot.slane %v413, %v4934
        %v4936 = vmul.f32 %v4928, %v4935
        %v4937 = vmul.f32 %v4929, %v4935
        %v4938 = vmul.f32 %v4930, %v4935
        %v4939 = vmul.f32 %v4931, %v4935
        %v4940 = vlaneseq
        %v4941 = vshrl.u32 %v4940, 7
        %v4942 = vsub.s32 7, %v4941
        %v4943 = vrot.slane %v413, %v4942
        %v4944 = vadd.f32 %v4936, %v4943
        %v4945 = vadd.f32 %v4937, %v4943
        %v4946 = vadd.f32 %v4938, %v4943
        %v4947 = vadd.f32 %v4939, %v4943
        %4948 = vst.msk [vmem:[#allocation8] sm:$0xff] %vm439, %v4944
        %4949 = vst.msk [vmem:[#allocation8 + $0x8] sm:$0xff] %vm439, %v4945
        %4950 = vst.msk [vmem:[#allocation8 + $0x10] sm:$0xff] %vm439, %v4946
        %4951 = vst.msk [vmem:[#allocation8 + $0x18] sm:$0xff] %vm439, %v4947
        // Predicated region
        $region61: #{tpu_custom_call.1} parent=43 // pred_check
          %p4952 = pneg %p208
        $region62: #{tpu_custom_call.1} parent=43 // pred_check_branch
          %4954 = sbr.rel (%p4952) target = $region64
        $region63: #{tpu_custom_call.1} parent=43 // pred_region
          %s4955 = smul.u32 2, %s26
          %s4957 = ssub.s32 512, 512
          %4958 = vsyncadd [#allocation4], %s4957
          %s4959 = smul.addr %s4955, 2
          %s4960 = smul.addr %s4959, 128
          %s4961 = scalar_lea.hbm %s6, %s4960
          %s4962 = sshll.u32 [#allocation8], 4
          %s4963 = int_to_ptr.vmem [resolvable:$true] %s4962
          %4968 = dma.vmem_to_hbm [thread:$0]  %s4963, 512, %s4961, [#allocation4], 128, 128, 8
        $region64: #{tpu_custom_call.1} parent=43 // pred_fallthru
          _
        // Predicated region
        $region65: #{tpu_custom_call.1} parent=43 // pred_check
          %p4969 = pneg %p208
        $region66: #{tpu_custom_call.1} parent=43 // pred_check_branch
          %4971 = sbr.rel (%p4969) target = $region68
        $region67: #{tpu_custom_call.1} parent=43 // pred_region
          %4972 = dma.done [#allocation4], 512
        $region68: #{tpu_custom_call.1} parent=43 // pred_fallthru
          _
      $region44: #{tpu_custom_call.1} parent=5 // pred_fallthru
        _
      %p4973 = scmp.le.s32.totalorder 2, %s17
      // Predicated region
      $region69: #{tpu_custom_call.1} parent=5 // pred_check
        %p4974 = pneg %p4973
      $region70: #{tpu_custom_call.1} parent=5 // pred_check_branch
        %4976 = sbr.rel (%p4974) target = $region72
      $region71: #{tpu_custom_call.1} parent=5 // pred_region
        %s4977 = ssub.s32 %s17, 2
      $region72: #{tpu_custom_call.1} parent=5 // pred_fallthru
        _
    $region6: #{tpu_custom_call.1} parent=1 // loop_footer
      %s21 = sadd.s32 1, %s17
    $region7: #{tpu_custom_call.1} parent=1 // loop_footer_branch
      %16 = sbr.rel target = $region3
    $region8: #{tpu_custom_call.1} parent=1 // loop_exit
      _
    %4978 = vsyncpa [#allocation3], 1
    %s4979 = scalar_lea.sflag [#allocation3], 1
    %4980 = vsyncpa %s4979, 1
    %4981 = vsyncpa [#allocation6], 1
    %s4982 = scalar_lea.sflag [#allocation6], 1
    %4983 = vsyncpa %s4982, 1
    %4984 = vsyncpa [#allocation4], 1
    %s4985 = scalar_lea.sflag [#allocation4], 1
    %4986 = vsyncpa %s4985, 1

</llo_original>
